<compile_context>
chip_gen: v6e
topology: v6e:2x2x1
jax: 0.10.0
libtpu: 0.0.40
codegen_flags: <defaults>
</compile_context>

<pallas_src>
import functools

import numpy as np
import jax
import jax.numpy as jnp
from jax import lax
from jax.experimental import pallas as pl
from jax.experimental.pallas import tpu as pltpu  # noqa: F401  (default VMEM specs used)

_BN_EPS = 1e-5
_BN_SCALE = float(1.0 / np.sqrt(1.0 + _BN_EPS))  # eval-mode BN, fresh running stats


def _round_up(x, m):
    return (x + m - 1) // m * m


# ----------------------------------------------------------------------------
# The single fused kernel
# ----------------------------------------------------------------------------
def _fused_kernel(*refs, n_layers):
    """refs = [x, (wt, shift, re, ro) * n_layers, w1, b1, w2, b2, w3, b3, out].

    Activation layout (per layer): rows = per-image blocks of S (8-aligned,
    row 0 and rows H+1.. are the zero h-halo), lanes = (branch, w, channel),
    always a multiple of 128 lanes wide.
    """
    x_ref = refs[0]
    o_ref = refs[-1]
    (w1_ref, b1_ref, w2_ref, b2_ref, w3_ref, b3_ref) = refs[
        1 + 4 * n_layers: 1 + 4 * n_layers + 6]

    cur = x_ref[...]                                         # (N*S0, 128) f32
    for l in range(n_layers):
        wt_ref, sh_ref, re_ref, ro_ref = refs[1 + 4 * l: 1 + 4 * (l + 1)]
        mv = re_ref.shape[1]                                 # rows with valid conv output
        # 3x3 conv as three row-tap matmuls against banded bf16 weights
        # (kw + cin folded into the 128-lane contraction, branches block-diag).
        x0 = cur[0:mv, :].astype(jnp.bfloat16)
        x1 = cur[1:1 + mv, :].astype(jnp.bfloat16)
        x2 = cur[2:2 + mv, :].astype(jnp.bfloat16)
        y = (jnp.dot(x0, wt_ref[0], preferred_element_type=jnp.float32)
             + jnp.dot(x1, wt_ref[1], preferred_element_type=jnp.float32)
             + jnp.dot(x2, wt_ref[2], preferred_element_type=jnp.float32))
        # 2x2 max-pool along w: even/odd output columns are the two lane halves
        # of y (chosen by the banded weight's column ordering).
        half = y.shape[1] // 2
        yw = jnp.maximum(y[:, :half], y[:, half:])
        # BN shift (scale already folded into the weights) + ReLU.  Pooling
        # before shift+ReLU is exact (per-channel shift, monotone relu/max).
        act = jnp.maximum(yw + sh_ref[...], 0.0).astype(jnp.bfloat16)
        # 2x2 max-pool along h + scatter into the next layer's padded row slab
        # (or into one row per image for the head) via two 0/1 selection
        # matmuls; all-zero selector rows create the next layer's zero halo.
        cur = jnp.maximum(
            jnp.dot(re_ref[...], act, preferred_element_type=jnp.float32),
            jnp.dot(ro_ref[...], act, preferred_element_type=jnp.float32))

    # --- regression head: Linear+BN+ReLU, Linear+BN+ReLU, Linear+Sigmoid ----
    # cur is now (N, 128) = torch.cat([bleed, source], dim=1) flattened exactly.
    h = jnp.dot(cur.astype(jnp.bfloat16), w1_ref[...],
                preferred_element_type=jnp.float32)
    h = jnp.maximum(h + b1_ref[...], 0.0)
    # TODO(synk): Dropout(0.5) after each hidden ReLU is identity in eval mode.
    h = jnp.dot(h.astype(jnp.bfloat16), w2_ref[...],
                preferred_element_type=jnp.float32)
    h = jnp.maximum(h + b2_ref[...], 0.0)
    # Final Linear(128 -> 1) as a lane reduction (avoids an N=1 matmul).
    z = jnp.sum(h * w3_ref[...], axis=1, keepdims=True) + b3_ref[...]
    # Manual sigmoid: saturates correctly in f32 (exp overflow -> 0 / 1 limits).
    o_ref[...] = (1.0 / (1.0 + jnp.exp(-z))).astype(o_ref.dtype)


# ----------------------------------------------------------------------------
# Wrapper (the only XLA glue is the one-time layer-0 input slab construction)
# ----------------------------------------------------------------------------
def make_forward(n_layers):
    kernel = functools.partial(_fused_kernel, n_layers=n_layers)

    @jax.jit
    def forward(x, conv_params, head_params):
        n, two, hgt, wid = x.shape
        assert two == 2 and hgt == wid
        s0 = _round_up(hgt + 2, 8)
        kp0 = _round_up(2 * wid, 128)
        # Layer-0 slab: lanes = (branch, w), rows = per-image blocks of s0 rows
        # with the zero h-halo built in.
        xb = x.transpose(0, 2, 1, 3).reshape(n, hgt, 2 * wid)
        xb = jnp.pad(xb, ((0, 0), (1, s0 - hgt - 1), (0, kp0 - 2 * wid)))
        xb = xb.reshape(n * s0, kp0)
        flat = [xb]
        for p in conv_params:
            flat.extend(p)
        flat.extend(head_params[k] for k in ("w1", "b1", "w2", "b2", "w3", "b3"))
        # All operands / outputs are whole-array VMEM blocks (default specs);
        # total footprint ~1.4 MiB -> fits every TPU generation's VMEM.
        return pl.pallas_call(
            kernel,
            out_shape=jax.ShapeDtypeStruct((n, 1), jnp.float32),
        )(*flat)

    return forward


# ----------------------------------------------------------------------------
# Parameter construction (deterministic) + banded-weight / selector builders
# ----------------------------------------------------------------------------
def _banded_conv_weights(w_b0, w_b1, wdt, cin, cout, kp):
    """Banded row-tap weights for one layer (both branches, BN scale folded in).

    Input lane  = br*(wdt*cin) + w_in*cin + ci
    Output col  = pw*(wdt*cout) + br*((wdt//2)*cout) + wo*cout + co, w_out=2*wo+pw
    Returns (3, kp, 2*wdt*cout) float32 (one slab per kh tap).
    """
    wo_n = wdt // 2
    wt = np.zeros((3, kp, 2 * wdt * cout), np.float32)
    for br, wf in enumerate((w_b0, w_b1)):
        for kh in range(3):
            for w_out in range(wdt):
                pw, wo = w_out % 2, w_out // 2
                col = pw * (wdt * cout) + br * (wo_n * cout) + wo * cout
                for kw in range(3):
                    w_in = w_out + kw - 1
                    if 0 <= w_in < wdt:           # w-halo handled by omission
                        row = br * (wdt * cin) + w_in * cin
                        wt[kh, row:row + cin, col:col + cout] = wf[:, :, kh, kw].T
    return wt


def _pool_select_matrices(n, s_in, h_in, s_out):
    """0/1 matrices implementing the 2x2 h-pool row picks fused with the scatter
    into the next layer's zero-padded row slab (s_out=None -> one row per image,
    i.e. the regression-head feature rows)."""
    ho = h_in // 2
    mv = n * s_in - 2
    m_out = n if s_out is None else n * s_out
    re = np.zeros((m_out, mv), np.float32)
    ro = np.zeros((m_out, mv), np.float32)
    for i in range(n):
        for j in range(ho):
            dst = i if s_out is None else i * s_out + 1 + j
            re[dst, i * s_in + 2 * j] = 1.0
            ro[dst, i * s_in + 2 * j + 1] = 1.0
    return re, ro


def init_params(key, n_layers=5, f0=4, h=32):
    """Deterministic torch-layout parameters (conv OIHW, linear (out, in))."""
    chans = [1] + [f0 * (2 ** i) for i in range(n_layers)]
    keys = jax.random.split(key, 2 * n_layers + 3)
    conv = []
    for l in range(n_layers):
        cin, cout = chans[l], chans[l + 1]
        per_branch = []
        for br in range(2):
            kw, kb = jax.random.split(keys[2 * l + br])
            w = jax.random.normal(kw, (cout, cin, 3, 3), jnp.float32) / np.sqrt(9.0 * cin)
            b = 0.05 * jax.random.normal(kb, (cout,), jnp.float32)
            per_branch += [w, b]
        conv.append(tuple(per_branch))    # (w_bleed, b_bleed, w_source, b_source)

    feat = 2 * chans[-1] * (h // 2 ** n_layers) ** 2

    def lin(k, din, dout):
        kw, kb = jax.random.split(k)
        return (jax.random.normal(kw, (dout, din), jnp.float32) / np.sqrt(din),
                0.05 * jax.random.normal(kb, (dout,), jnp.float32))

    w1, b1 = lin(keys[2 * n_layers + 0], feat, 512)
    w2, b2 = lin(keys[2 * n_layers + 1], 512, 128)
    w3, b3 = lin(keys[2 * n_layers + 2], 128, 1)
    return conv, (w1, b1, w2, b2, w3, b3)


def build_kernel_params(raw_conv, raw_head, n, h):
    """Fold eval-mode BN into the weights and build banded / selector arrays."""
    conv_k = []
    hl = h
    n_layers = len(raw_conv)
    in_lanes = _round_up(2 * hl, 128)
    for l, (w_bl, b_bl, w_sr, b_sr) in enumerate(raw_conv):
        cout, cin = int(w_bl.shape[0]), int(w_bl.shape[1])
        wdt = hl
        wo = wdt // 2
        kp = _round_up(2 * wdt * cin, 128)
        assert kp == in_lanes, "lane layout mismatch between consecutive layers"
        wt = _banded_conv_weights(np.asarray(w_bl, np.float32) * _BN_SCALE,
                                  np.asarray(w_sr, np.float32) * _BN_SCALE,
                                  wdt, cin, cout, kp)
        shift = np.concatenate(
            [np.tile(np.asarray(b_bl, np.float32) * _BN_SCALE, wo),
             np.tile(np.asarray(b_sr, np.float32) * _BN_SCALE, wo)])
        s_in = _round_up(hl + 2, 8)
        ho = hl // 2
        last = (l == n_layers - 1)
        if last:
            assert ho == 1 and wo == 1, "fused head expects a 1x1 final spatial size"
            s_out = None
        else:
            s_out = _round_up(ho + 2, 8)
        re, ro = _pool_select_matrices(n, s_in, hl, s_out)
        conv_k.append((jnp.asarray(wt, jnp.bfloat16),
                       jnp.asarray(shift[None, :], jnp.float32),
                       jnp.asarray(re, jnp.bfloat16),
                       jnp.asarray(ro, jnp.bfloat16)))
        hl = ho
        in_lanes = wdt * cout              # next layer's (unpadded) lane width
    w1, b1, w2, b2, w3, b3 = (np.asarray(a, np.float32) for a in raw_head)
    head_k = {
        "w1": jnp.asarray(w1.T * _BN_SCALE, jnp.bfloat16),       # (feat, 512)
        "b1": jnp.asarray((b1 * _BN_SCALE)[None, :], jnp.float32),
        "w2": jnp.asarray(w2.T * _BN_SCALE, jnp.bfloat16),       # (512, 128)
        "b2": jnp.asarray((b2 * _BN_SCALE)[None, :], jnp.float32),
        "w3": jnp.asarray(w3, jnp.float32),                      # (1, 128)
        "b3": jnp.asarray(b3[None, :], jnp.float32),             # (1, 1)
    }
    return conv_k, head_k


# ----------------------------------------------------------------------------
# Pure-JAX f32 reference (matches the PyTorch module in eval mode)
# ----------------------------------------------------------------------------
def reference_forward(x, raw_conv, raw_head):
    hp = lax.Precision.HIGHEST

    def branch(img, idx):
        h = img
        for (w_bl, b_bl, w_sr, b_sr) in raw_conv:
            w, b = (w_bl, b_bl) if idx == 0 else (w_sr, b_sr)
            h = lax.conv_general_dilated(
                h, w, (1, 1), "SAME",
                dimension_numbers=("NCHW", "OIHW", "NCHW"), precision=hp)
            h = (h + b[None, :, None, None]) * _BN_SCALE     # BatchNorm2d (eval)
            h = jnp.maximum(h, 0.0)
            nn_, c, hh, ww = h.shape
            h = h.reshape(nn_, c, hh // 2, 2, ww // 2, 2).max(axis=(3, 5))
        return h

    fb = branch(x[:, 0:1], 0)
    fs = branch(x[:, 1:2], 1)
    f = jnp.concatenate([fb, fs], axis=1).reshape(x.shape[0], -1)
    w1, b1, w2, b2, w3, b3 = raw_head
    h = jnp.maximum((jnp.dot(f, w1.T, precision=hp) + b1) * _BN_SCALE, 0.0)
    h = jnp.maximum((jnp.dot(h, w2.T, precision=hp) + b2) * _BN_SCALE, 0.0)
    z = jnp.dot(h, w3.T, precision=hp) + b3
    return jax.nn.sigmoid(z)


# ----------------------------------------------------------------------------
if __name__ == "__main__":
    # Small config consistent with the module: 5 conv blocks per branch (each
    # halving the spatial dims), 32x32 input -> 1x1x(16*F0) per branch,
    # regression-head input = 2 * 64 = 128.
    N, H, F0, N_LAYERS = 2, 32, 4, 5

    key = jax.random.PRNGKey(0)
    k_params, k_x = jax.random.split(key)
    raw_conv, raw_head = init_params(k_params, n_layers=N_LAYERS, f0=F0, h=H)
    conv_k, head_k = build_kernel_params(raw_conv, raw_head, N, H)
    x = jax.random.normal(k_x, (N, 2, H, H), jnp.float32)   # NCHW, 2 input channels

    fwd = make_forward(N_LAYERS)
    out = jax.block_until_ready(fwd(x, conv_k, head_k))
    assert out.shape == (N, 1)
    assert bool(jnp.all(jnp.isfinite(out)))
    assert bool(jnp.all((out >= 0.0) & (out <= 1.0)))        # sigmoid range

    # Tolerance-check against the pure-f32 reference (kernel uses bf16 matmuls).
    ref = jax.block_until_ready(reference_forward(x, raw_conv, raw_head))
    max_diff = float(jnp.max(jnp.abs(out - ref)))
    assert max_diff < 5e-2, f"kernel vs f32 reference mismatch: {max_diff:.4f}"

    print("KERNEL_OK")
</pallas_src>

<mosaic_0001>
module attributes {stable_mosaic.version = 11 : i64} {
  func.func @_fused_kernel(%arg0: memref<80x128xf32, #tpu.memory_space<vmem>>, %arg1: memref<3x128x256xbf16, #tpu.memory_space<vmem>>, %arg2: memref<1x128xf32, #tpu.memory_space<vmem>>, %arg3: memref<48x78xbf16, #tpu.memory_space<vmem>>, %arg4: memref<48x78xbf16, #tpu.memory_space<vmem>>, %arg5: memref<3x128x256xbf16, #tpu.memory_space<vmem>>, %arg6: memref<1x128xf32, #tpu.memory_space<vmem>>, %arg7: memref<32x46xbf16, #tpu.memory_space<vmem>>, %arg8: memref<32x46xbf16, #tpu.memory_space<vmem>>, %arg9: memref<3x128x256xbf16, #tpu.memory_space<vmem>>, %arg10: memref<1x128xf32, #tpu.memory_space<vmem>>, %arg11: memref<16x30xbf16, #tpu.memory_space<vmem>>, %arg12: memref<16x30xbf16, #tpu.memory_space<vmem>>, %arg13: memref<3x128x256xbf16, #tpu.memory_space<vmem>>, %arg14: memref<1x128xf32, #tpu.memory_space<vmem>>, %arg15: memref<16x14xbf16, #tpu.memory_space<vmem>>, %arg16: memref<16x14xbf16, #tpu.memory_space<vmem>>, %arg17: memref<3x128x256xbf16, #tpu.memory_space<vmem>>, %arg18: memref<1x128xf32, #tpu.memory_space<vmem>>, %arg19: memref<2x14xbf16, #tpu.memory_space<vmem>>, %arg20: memref<2x14xbf16, #tpu.memory_space<vmem>>, %arg21: memref<128x512xbf16, #tpu.memory_space<vmem>>, %arg22: memref<1x512xf32, #tpu.memory_space<vmem>>, %arg23: memref<512x128xbf16, #tpu.memory_space<vmem>>, %arg24: memref<1x128xf32, #tpu.memory_space<vmem>>, %arg25: memref<1x128xf32, #tpu.memory_space<vmem>>, %arg26: memref<1x1xf32, #tpu.memory_space<vmem>>, %arg27: memref<2x1xf32, #tpu.memory_space<vmem>>) attributes {dimension_semantics = [], scalar_prefetch = 0 : i64, scratch_operands = 0 : i64, tpu.core_type = #tpu.core_type<tc>} {
    %c0 = arith.constant 0 : index
    %c0_0 = arith.constant 0 : index
    %0 = vector.load %arg0[%c0, %c0_0] : memref<80x128xf32, #tpu.memory_space<vmem>>, vector<80x128xf32>
    %1 = vector.extract_strided_slice %0 {offsets = [0, 0], sizes = [78, 128], strides = [1, 1]} : vector<80x128xf32> to vector<78x128xf32>
    %2 = arith.truncf %1 : vector<78x128xf32> to vector<78x128xbf16>
    %3 = vector.extract_strided_slice %0 {offsets = [1, 0], sizes = [78, 128], strides = [1, 1]} : vector<80x128xf32> to vector<78x128xf32>
    %4 = arith.truncf %3 : vector<78x128xf32> to vector<78x128xbf16>
    %5 = vector.extract_strided_slice %0 {offsets = [2, 0], sizes = [78, 128], strides = [1, 1]} : vector<80x128xf32> to vector<78x128xf32>
    %6 = arith.truncf %5 : vector<78x128xf32> to vector<78x128xbf16>
    %c0_1 = arith.constant 0 : index
    %c0_2 = arith.constant 0 : index
    %c0_3 = arith.constant 0 : index
    %7 = vector.load %arg1[%c0_1, %c0_2, %c0_3] : memref<3x128x256xbf16, #tpu.memory_space<vmem>>, vector<1x128x256xbf16>
    %8 = vector.shape_cast %7 : vector<1x128x256xbf16> to vector<128x256xbf16>
    %cst = arith.constant dense<0.000000e+00> : vector<78x256xf32>
    %9 = tpu.matmul %2, %8, %cst {dimension_numbers = #tpu.dot_dimension_numbers<[1], [0], [0], [1], [0, 0, 1, 1], [], []>} : vector<78x128xbf16>, vector<128x256xbf16>, vector<78x256xf32> -> vector<78x256xf32>
    %c1 = arith.constant 1 : index
    %c0_4 = arith.constant 0 : index
    %c0_5 = arith.constant 0 : index
    %10 = vector.load %arg1[%c1, %c0_4, %c0_5] : memref<3x128x256xbf16, #tpu.memory_space<vmem>>, vector<1x128x256xbf16>
    %11 = vector.shape_cast %10 : vector<1x128x256xbf16> to vector<128x256xbf16>
    %cst_6 = arith.constant dense<0.000000e+00> : vector<78x256xf32>
    %12 = tpu.matmul %4, %11, %cst_6 {dimension_numbers = #tpu.dot_dimension_numbers<[1], [0], [0], [1], [0, 0, 1, 1], [], []>} : vector<78x128xbf16>, vector<128x256xbf16>, vector<78x256xf32> -> vector<78x256xf32>
    %13 = arith.addf %9, %12 : vector<78x256xf32>
    %c2 = arith.constant 2 : index
    %c0_7 = arith.constant 0 : index
    %c0_8 = arith.constant 0 : index
    %14 = vector.load %arg1[%c2, %c0_7, %c0_8] : memref<3x128x256xbf16, #tpu.memory_space<vmem>>, vector<1x128x256xbf16>
    %15 = vector.shape_cast %14 : vector<1x128x256xbf16> to vector<128x256xbf16>
    %cst_9 = arith.constant dense<0.000000e+00> : vector<78x256xf32>
    %16 = tpu.matmul %6, %15, %cst_9 {dimension_numbers = #tpu.dot_dimension_numbers<[1], [0], [0], [1], [0, 0, 1, 1], [], []>} : vector<78x128xbf16>, vector<128x256xbf16>, vector<78x256xf32> -> vector<78x256xf32>
    %17 = arith.addf %13, %16 : vector<78x256xf32>
    %18 = vector.extract_strided_slice %17 {offsets = [0, 0], sizes = [78, 128], strides = [1, 1]} : vector<78x256xf32> to vector<78x128xf32>
    %19 = vector.extract_strided_slice %17 {offsets = [0, 128], sizes = [78, 128], strides = [1, 1]} : vector<78x256xf32> to vector<78x128xf32>
    %20 = arith.maximumf %18, %19 : vector<78x128xf32>
    %c0_10 = arith.constant 0 : index
    %c0_11 = arith.constant 0 : index
    %21 = vector.load %arg2[%c0_10, %c0_11] : memref<1x128xf32, #tpu.memory_space<vmem>>, vector<1x128xf32>
    %22 = vector.broadcast %21 : vector<1x128xf32> to vector<78x128xf32>
    %23 = arith.addf %20, %22 : vector<78x128xf32>
    %cst_12 = arith.constant 0.000000e+00 : f32
    %24 = vector.broadcast %cst_12 : f32 to vector<78x128xf32>
    %25 = arith.maximumf %23, %24 : vector<78x128xf32>
    %26 = arith.truncf %25 : vector<78x128xf32> to vector<78x128xbf16>
    %c0_13 = arith.constant 0 : index
    %c0_14 = arith.constant 0 : index
    %27 = vector.load %arg3[%c0_13, %c0_14] : memref<48x78xbf16, #tpu.memory_space<vmem>>, vector<48x78xbf16>
    %cst_15 = arith.constant dense<0.000000e+00> : vector<48x128xf32>
    %28 = tpu.matmul %27, %26, %cst_15 {dimension_numbers = #tpu.dot_dimension_numbers<[1], [0], [0], [1], [0, 0, 1, 1], [], []>} : vector<48x78xbf16>, vector<78x128xbf16>, vector<48x128xf32> -> vector<48x128xf32>
    %c0_16 = arith.constant 0 : index
    %c0_17 = arith.constant 0 : index
    %29 = vector.load %arg4[%c0_16, %c0_17] : memref<48x78xbf16, #tpu.memory_space<vmem>>, vector<48x78xbf16>
    %cst_18 = arith.constant dense<0.000000e+00> : vector<48x128xf32>
    %30 = tpu.matmul %29, %26, %cst_18 {dimension_numbers = #tpu.dot_dimension_numbers<[1], [0], [0], [1], [0, 0, 1, 1], [], []>} : vector<48x78xbf16>, vector<78x128xbf16>, vector<48x128xf32> -> vector<48x128xf32>
    %31 = arith.maximumf %28, %30 : vector<48x128xf32>
    %32 = vector.extract_strided_slice %31 {offsets = [0, 0], sizes = [46, 128], strides = [1, 1]} : vector<48x128xf32> to vector<46x128xf32>
    %33 = arith.truncf %32 : vector<46x128xf32> to vector<46x128xbf16>
    %34 = vector.extract_strided_slice %31 {offsets = [1, 0], sizes = [46, 128], strides = [1, 1]} : vector<48x128xf32> to vector<46x128xf32>
    %35 = arith.truncf %34 : vector<46x128xf32> to vector<46x128xbf16>
    %36 = vector.extract_strided_slice %31 {offsets = [2, 0], sizes = [46, 128], strides = [1, 1]} : vector<48x128xf32> to vector<46x128xf32>
    %37 = arith.truncf %36 : vector<46x128xf32> to vector<46x128xbf16>
    %c0_19 = arith.constant 0 : index
    %c0_20 = arith.constant 0 : index
    %c0_21 = arith.constant 0 : index
    %38 = vector.load %arg5[%c0_19, %c0_20, %c0_21] : memref<3x128x256xbf16, #tpu.memory_space<vmem>>, vector<1x128x256xbf16>
    %39 = vector.shape_cast %38 : vector<1x128x256xbf16> to vector<128x256xbf16>
    %cst_22 = arith.constant dense<0.000000e+00> : vector<46x256xf32>
    %40 = tpu.matmul %33, %39, %cst_22 {dimension_numbers = #tpu.dot_dimension_numbers<[1], [0], [0], [1], [0, 0, 1, 1], [], []>} : vector<46x128xbf16>, vector<128x256xbf16>, vector<46x256xf32> -> vector<46x256xf32>
    %c1_23 = arith.constant 1 : index
    %c0_24 = arith.constant 0 : index
    %c0_25 = arith.constant 0 : index
    %41 = vector.load %arg5[%c1_23, %c0_24, %c0_25] : memref<3x128x256xbf16, #tpu.memory_space<vmem>>, vector<1x128x256xbf16>
    %42 = vector.shape_cast %41 : vector<1x128x256xbf16> to vector<128x256xbf16>
    %cst_26 = arith.constant dense<0.000000e+00> : vector<46x256xf32>
    %43 = tpu.matmul %35, %42, %cst_26 {dimension_numbers = #tpu.dot_dimension_numbers<[1], [0], [0], [1], [0, 0, 1, 1], [], []>} : vector<46x128xbf16>, vector<128x256xbf16>, vector<46x256xf32> -> vector<46x256xf32>
    %44 = arith.addf %40, %43 : vector<46x256xf32>
    %c2_27 = arith.constant 2 : index
    %c0_28 = arith.constant 0 : index
    %c0_29 = arith.constant 0 : index
    %45 = vector.load %arg5[%c2_27, %c0_28, %c0_29] : memref<3x128x256xbf16, #tpu.memory_space<vmem>>, vector<1x128x256xbf16>
    %46 = vector.shape_cast %45 : vector<1x128x256xbf16> to vector<128x256xbf16>
    %cst_30 = arith.constant dense<0.000000e+00> : vector<46x256xf32>
    %47 = tpu.matmul %37, %46, %cst_30 {dimension_numbers = #tpu.dot_dimension_numbers<[1], [0], [0], [1], [0, 0, 1, 1], [], []>} : vector<46x128xbf16>, vector<128x256xbf16>, vector<46x256xf32> -> vector<46x256xf32>
    %48 = arith.addf %44, %47 : vector<46x256xf32>
    %49 = vector.extract_strided_slice %48 {offsets = [0, 0], sizes = [46, 128], strides = [1, 1]} : vector<46x256xf32> to vector<46x128xf32>
    %50 = vector.extract_strided_slice %48 {offsets = [0, 128], sizes = [46, 128], strides = [1, 1]} : vector<46x256xf32> to vector<46x128xf32>
    %51 = arith.maximumf %49, %50 : vector<46x128xf32>
    %c0_31 = arith.constant 0 : index
    %c0_32 = arith.constant 0 : index
    %52 = vector.load %arg6[%c0_31, %c0_32] : memref<1x128xf32, #tpu.memory_space<vmem>>, vector<1x128xf32>
    %53 = vector.broadcast %52 : vector<1x128xf32> to vector<46x128xf32>
    %54 = arith.addf %51, %53 : vector<46x128xf32>
    %cst_33 = arith.constant 0.000000e+00 : f32
    %55 = vector.broadcast %cst_33 : f32 to vector<46x128xf32>
    %56 = arith.maximumf %54, %55 : vector<46x128xf32>
    %57 = arith.truncf %56 : vector<46x128xf32> to vector<46x128xbf16>
    %c0_34 = arith.constant 0 : index
    %c0_35 = arith.constant 0 : index
    %58 = vector.load %arg7[%c0_34, %c0_35] : memref<32x46xbf16, #tpu.memory_space<vmem>>, vector<32x46xbf16>
    %cst_36 = arith.constant dense<0.000000e+00> : vector<32x128xf32>
    %59 = tpu.matmul %58, %57, %cst_36 {dimension_numbers = #tpu.dot_dimension_numbers<[1], [0], [0], [1], [0, 0, 1, 1], [], []>} : vector<32x46xbf16>, vector<46x128xbf16>, vector<32x128xf32> -> vector<32x128xf32>
    %c0_37 = arith.constant 0 : index
    %c0_38 = arith.constant 0 : index
    %60 = vector.load %arg8[%c0_37, %c0_38] : memref<32x46xbf16, #tpu.memory_space<vmem>>, vector<32x46xbf16>
    %cst_39 = arith.constant dense<0.000000e+00> : vector<32x128xf32>
    %61 = tpu.matmul %60, %57, %cst_39 {dimension_numbers = #tpu.dot_dimension_numbers<[1], [0], [0], [1], [0, 0, 1, 1], [], []>} : vector<32x46xbf16>, vector<46x128xbf16>, vector<32x128xf32> -> vector<32x128xf32>
    %62 = arith.maximumf %59, %61 : vector<32x128xf32>
    %63 = vector.extract_strided_slice %62 {offsets = [0, 0], sizes = [30, 128], strides = [1, 1]} : vector<32x128xf32> to vector<30x128xf32>
    %64 = arith.truncf %63 : vector<30x128xf32> to vector<30x128xbf16>
    %65 = vector.extract_strided_slice %62 {offsets = [1, 0], sizes = [30, 128], strides = [1, 1]} : vector<32x128xf32> to vector<30x128xf32>
    %66 = arith.truncf %65 : vector<30x128xf32> to vector<30x128xbf16>
    %67 = vector.extract_strided_slice %62 {offsets = [2, 0], sizes = [30, 128], strides = [1, 1]} : vector<32x128xf32> to vector<30x128xf32>
    %68 = arith.truncf %67 : vector<30x128xf32> to vector<30x128xbf16>
    %c0_40 = arith.constant 0 : index
    %c0_41 = arith.constant 0 : index
    %c0_42 = arith.constant 0 : index
    %69 = vector.load %arg9[%c0_40, %c0_41, %c0_42] : memref<3x128x256xbf16, #tpu.memory_space<vmem>>, vector<1x128x256xbf16>
    %70 = vector.shape_cast %69 : vector<1x128x256xbf16> to vector<128x256xbf16>
    %cst_43 = arith.constant dense<0.000000e+00> : vector<30x256xf32>
    %71 = tpu.matmul %64, %70, %cst_43 {dimension_numbers = #tpu.dot_dimension_numbers<[1], [0], [0], [1], [0, 0, 1, 1], [], []>} : vector<30x128xbf16>, vector<128x256xbf16>, vector<30x256xf32> -> vector<30x256xf32>
    %c1_44 = arith.constant 1 : index
    %c0_45 = arith.constant 0 : index
    %c0_46 = arith.constant 0 : index
    %72 = vector.load %arg9[%c1_44, %c0_45, %c0_46] : memref<3x128x256xbf16, #tpu.memory_space<vmem>>, vector<1x128x256xbf16>
    %73 = vector.shape_cast %72 : vector<1x128x256xbf16> to vector<128x256xbf16>
    %cst_47 = arith.constant dense<0.000000e+00> : vector<30x256xf32>
    %74 = tpu.matmul %66, %73, %cst_47 {dimension_numbers = #tpu.dot_dimension_numbers<[1], [0], [0], [1], [0, 0, 1, 1], [], []>} : vector<30x128xbf16>, vector<128x256xbf16>, vector<30x256xf32> -> vector<30x256xf32>
    %75 = arith.addf %71, %74 : vector<30x256xf32>
    %c2_48 = arith.constant 2 : index
    %c0_49 = arith.constant 0 : index
    %c0_50 = arith.constant 0 : index
    %76 = vector.load %arg9[%c2_48, %c0_49, %c0_50] : memref<3x128x256xbf16, #tpu.memory_space<vmem>>, vector<1x128x256xbf16>
    %77 = vector.shape_cast %76 : vector<1x128x256xbf16> to vector<128x256xbf16>
    %cst_51 = arith.constant dense<0.000000e+00> : vector<30x256xf32>
    %78 = tpu.matmul %68, %77, %cst_51 {dimension_numbers = #tpu.dot_dimension_numbers<[1], [0], [0], [1], [0, 0, 1, 1], [], []>} : vector<30x128xbf16>, vector<128x256xbf16>, vector<30x256xf32> -> vector<30x256xf32>
    %79 = arith.addf %75, %78 : vector<30x256xf32>
    %80 = vector.extract_strided_slice %79 {offsets = [0, 0], sizes = [30, 128], strides = [1, 1]} : vector<30x256xf32> to vector<30x128xf32>
    %81 = vector.extract_strided_slice %79 {offsets = [0, 128], sizes = [30, 128], strides = [1, 1]} : vector<30x256xf32> to vector<30x128xf32>
    %82 = arith.maximumf %80, %81 : vector<30x128xf32>
    %c0_52 = arith.constant 0 : index
    %c0_53 = arith.constant 0 : index
    %83 = vector.load %arg10[%c0_52, %c0_53] : memref<1x128xf32, #tpu.memory_space<vmem>>, vector<1x128xf32>
    %84 = vector.broadcast %83 : vector<1x128xf32> to vector<30x128xf32>
    %85 = arith.addf %82, %84 : vector<30x128xf32>
    %cst_54 = arith.constant 0.000000e+00 : f32
    %86 = vector.broadcast %cst_54 : f32 to vector<30x128xf32>
    %87 = arith.maximumf %85, %86 : vector<30x128xf32>
    %88 = arith.truncf %87 : vector<30x128xf32> to vector<30x128xbf16>
    %c0_55 = arith.constant 0 : index
    %c0_56 = arith.constant 0 : index
    %89 = vector.load %arg11[%c0_55, %c0_56] : memref<16x30xbf16, #tpu.memory_space<vmem>>, vector<16x30xbf16>
    %cst_57 = arith.constant dense<0.000000e+00> : vector<16x128xf32>
    %90 = tpu.matmul %89, %88, %cst_57 {dimension_numbers = #tpu.dot_dimension_numbers<[1], [0], [0], [1], [0, 0, 1, 1], [], []>} : vector<16x30xbf16>, vector<30x128xbf16>, vector<16x128xf32> -> vector<16x128xf32>
    %c0_58 = arith.constant 0 : index
    %c0_59 = arith.constant 0 : index
    %91 = vector.load %arg12[%c0_58, %c0_59] : memref<16x30xbf16, #tpu.memory_space<vmem>>, vector<16x30xbf16>
    %cst_60 = arith.constant dense<0.000000e+00> : vector<16x128xf32>
    %92 = tpu.matmul %91, %88, %cst_60 {dimension_numbers = #tpu.dot_dimension_numbers<[1], [0], [0], [1], [0, 0, 1, 1], [], []>} : vector<16x30xbf16>, vector<30x128xbf16>, vector<16x128xf32> -> vector<16x128xf32>
    %93 = arith.maximumf %90, %92 : vector<16x128xf32>
    %94 = vector.extract_strided_slice %93 {offsets = [0, 0], sizes = [14, 128], strides = [1, 1]} : vector<16x128xf32> to vector<14x128xf32>
    %95 = arith.truncf %94 : vector<14x128xf32> to vector<14x128xbf16>
    %96 = vector.extract_strided_slice %93 {offsets = [1, 0], sizes = [14, 128], strides = [1, 1]} : vector<16x128xf32> to vector<14x128xf32>
    %97 = arith.truncf %96 : vector<14x128xf32> to vector<14x128xbf16>
    %98 = vector.extract_strided_slice %93 {offsets = [2, 0], sizes = [14, 128], strides = [1, 1]} : vector<16x128xf32> to vector<14x128xf32>
    %99 = arith.truncf %98 : vector<14x128xf32> to vector<14x128xbf16>
    %c0_61 = arith.constant 0 : index
    %c0_62 = arith.constant 0 : index
    %c0_63 = arith.constant 0 : index
    %100 = vector.load %arg13[%c0_61, %c0_62, %c0_63] : memref<3x128x256xbf16, #tpu.memory_space<vmem>>, vector<1x128x256xbf16>
    %101 = vector.shape_cast %100 : vector<1x128x256xbf16> to vector<128x256xbf16>
    %cst_64 = arith.constant dense<0.000000e+00> : vector<14x256xf32>
    %102 = tpu.matmul %95, %101, %cst_64 {dimension_numbers = #tpu.dot_dimension_numbers<[1], [0], [0], [1], [0, 0, 1, 1], [], []>} : vector<14x128xbf16>, vector<128x256xbf16>, vector<14x256xf32> -> vector<14x256xf32>
    %c1_65 = arith.constant 1 : index
    %c0_66 = arith.constant 0 : index
    %c0_67 = arith.constant 0 : index
    %103 = vector.load %arg13[%c1_65, %c0_66, %c0_67] : memref<3x128x256xbf16, #tpu.memory_space<vmem>>, vector<1x128x256xbf16>
    %104 = vector.shape_cast %103 : vector<1x128x256xbf16> to vector<128x256xbf16>
    %cst_68 = arith.constant dense<0.000000e+00> : vector<14x256xf32>
    %105 = tpu.matmul %97, %104, %cst_68 {dimension_numbers = #tpu.dot_dimension_numbers<[1], [0], [0], [1], [0, 0, 1, 1], [], []>} : vector<14x128xbf16>, vector<128x256xbf16>, vector<14x256xf32> -> vector<14x256xf32>
    %106 = arith.addf %102, %105 : vector<14x256xf32>
    %c2_69 = arith.constant 2 : index
    %c0_70 = arith.constant 0 : index
    %c0_71 = arith.constant 0 : index
    %107 = vector.load %arg13[%c2_69, %c0_70, %c0_71] : memref<3x128x256xbf16, #tpu.memory_space<vmem>>, vector<1x128x256xbf16>
    %108 = vector.shape_cast %107 : vector<1x128x256xbf16> to vector<128x256xbf16>
    %cst_72 = arith.constant dense<0.000000e+00> : vector<14x256xf32>
    %109 = tpu.matmul %99, %108, %cst_72 {dimension_numbers = #tpu.dot_dimension_numbers<[1], [0], [0], [1], [0, 0, 1, 1], [], []>} : vector<14x128xbf16>, vector<128x256xbf16>, vector<14x256xf32> -> vector<14x256xf32>
    %110 = arith.addf %106, %109 : vector<14x256xf32>
    %111 = vector.extract_strided_slice %110 {offsets = [0, 0], sizes = [14, 128], strides = [1, 1]} : vector<14x256xf32> to vector<14x128xf32>
    %112 = vector.extract_strided_slice %110 {offsets = [0, 128], sizes = [14, 128], strides = [1, 1]} : vector<14x256xf32> to vector<14x128xf32>
    %113 = arith.maximumf %111, %112 : vector<14x128xf32>
    %c0_73 = arith.constant 0 : index
    %c0_74 = arith.constant 0 : index
    %114 = vector.load %arg14[%c0_73, %c0_74] : memref<1x128xf32, #tpu.memory_space<vmem>>, vector<1x128xf32>
    %115 = vector.broadcast %114 : vector<1x128xf32> to vector<14x128xf32>
    %116 = arith.addf %113, %115 : vector<14x128xf32>
    %cst_75 = arith.constant 0.000000e+00 : f32
    %117 = vector.broadcast %cst_75 : f32 to vector<14x128xf32>
    %118 = arith.maximumf %116, %117 : vector<14x128xf32>
    %119 = arith.truncf %118 : vector<14x128xf32> to vector<14x128xbf16>
    %c0_76 = arith.constant 0 : index
    %c0_77 = arith.constant 0 : index
    %120 = vector.load %arg15[%c0_76, %c0_77] : memref<16x14xbf16, #tpu.memory_space<vmem>>, vector<16x14xbf16>
    %cst_78 = arith.constant dense<0.000000e+00> : vector<16x128xf32>
    %121 = tpu.matmul %120, %119, %cst_78 {dimension_numbers = #tpu.dot_dimension_numbers<[1], [0], [0], [1], [0, 0, 1, 1], [], []>} : vector<16x14xbf16>, vector<14x128xbf16>, vector<16x128xf32> -> vector<16x128xf32>
    %c0_79 = arith.constant 0 : index
    %c0_80 = arith.constant 0 : index
    %122 = vector.load %arg16[%c0_79, %c0_80] : memref<16x14xbf16, #tpu.memory_space<vmem>>, vector<16x14xbf16>
    %cst_81 = arith.constant dense<0.000000e+00> : vector<16x128xf32>
    %123 = tpu.matmul %122, %119, %cst_81 {dimension_numbers = #tpu.dot_dimension_numbers<[1], [0], [0], [1], [0, 0, 1, 1], [], []>} : vector<16x14xbf16>, vector<14x128xbf16>, vector<16x128xf32> -> vector<16x128xf32>
    %124 = arith.maximumf %121, %123 : vector<16x128xf32>
    %125 = vector.extract_strided_slice %124 {offsets = [0, 0], sizes = [14, 128], strides = [1, 1]} : vector<16x128xf32> to vector<14x128xf32>
    %126 = arith.truncf %125 : vector<14x128xf32> to vector<14x128xbf16>
    %127 = vector.extract_strided_slice %124 {offsets = [1, 0], sizes = [14, 128], strides = [1, 1]} : vector<16x128xf32> to vector<14x128xf32>
    %128 = arith.truncf %127 : vector<14x128xf32> to vector<14x128xbf16>
    %129 = vector.extract_strided_slice %124 {offsets = [2, 0], sizes = [14, 128], strides = [1, 1]} : vector<16x128xf32> to vector<14x128xf32>
    %130 = arith.truncf %129 : vector<14x128xf32> to vector<14x128xbf16>
    %c0_82 = arith.constant 0 : index
    %c0_83 = arith.constant 0 : index
    %c0_84 = arith.constant 0 : index
    %131 = vector.load %arg17[%c0_82, %c0_83, %c0_84] : memref<3x128x256xbf16, #tpu.memory_space<vmem>>, vector<1x128x256xbf16>
    %132 = vector.shape_cast %131 : vector<1x128x256xbf16> to vector<128x256xbf16>
    %cst_85 = arith.constant dense<0.000000e+00> : vector<14x256xf32>
    %133 = tpu.matmul %126, %132, %cst_85 {dimension_numbers = #tpu.dot_dimension_numbers<[1], [0], [0], [1], [0, 0, 1, 1], [], []>} : vector<14x128xbf16>, vector<128x256xbf16>, vector<14x256xf32> -> vector<14x256xf32>
    %c1_86 = arith.constant 1 : index
    %c0_87 = arith.constant 0 : index
    %c0_88 = arith.constant 0 : index
    %134 = vector.load %arg17[%c1_86, %c0_87, %c0_88] : memref<3x128x256xbf16, #tpu.memory_space<vmem>>, vector<1x128x256xbf16>
    %135 = vector.shape_cast %134 : vector<1x128x256xbf16> to vector<128x256xbf16>
    %cst_89 = arith.constant dense<0.000000e+00> : vector<14x256xf32>
    %136 = tpu.matmul %128, %135, %cst_89 {dimension_numbers = #tpu.dot_dimension_numbers<[1], [0], [0], [1], [0, 0, 1, 1], [], []>} : vector<14x128xbf16>, vector<128x256xbf16>, vector<14x256xf32> -> vector<14x256xf32>
    %137 = arith.addf %133, %136 : vector<14x256xf32>
    %c2_90 = arith.constant 2 : index
    %c0_91 = arith.constant 0 : index
    %c0_92 = arith.constant 0 : index
    %138 = vector.load %arg17[%c2_90, %c0_91, %c0_92] : memref<3x128x256xbf16, #tpu.memory_space<vmem>>, vector<1x128x256xbf16>
    %139 = vector.shape_cast %138 : vector<1x128x256xbf16> to vector<128x256xbf16>
    %cst_93 = arith.constant dense<0.000000e+00> : vector<14x256xf32>
    %140 = tpu.matmul %130, %139, %cst_93 {dimension_numbers = #tpu.dot_dimension_numbers<[1], [0], [0], [1], [0, 0, 1, 1], [], []>} : vector<14x128xbf16>, vector<128x256xbf16>, vector<14x256xf32> -> vector<14x256xf32>
    %141 = arith.addf %137, %140 : vector<14x256xf32>
    %142 = vector.extract_strided_slice %141 {offsets = [0, 0], sizes = [14, 128], strides = [1, 1]} : vector<14x256xf32> to vector<14x128xf32>
    %143 = vector.extract_strided_slice %141 {offsets = [0, 128], sizes = [14, 128], strides = [1, 1]} : vector<14x256xf32> to vector<14x128xf32>
    %144 = arith.maximumf %142, %143 : vector<14x128xf32>
    %c0_94 = arith.constant 0 : index
    %c0_95 = arith.constant 0 : index
    %145 = vector.load %arg18[%c0_94, %c0_95] : memref<1x128xf32, #tpu.memory_space<vmem>>, vector<1x128xf32>
    %146 = vector.broadcast %145 : vector<1x128xf32> to vector<14x128xf32>
    %147 = arith.addf %144, %146 : vector<14x128xf32>
    %cst_96 = arith.constant 0.000000e+00 : f32
    %148 = vector.broadcast %cst_96 : f32 to vector<14x128xf32>
    %149 = arith.maximumf %147, %148 : vector<14x128xf32>
    %150 = arith.truncf %149 : vector<14x128xf32> to vector<14x128xbf16>
    %c0_97 = arith.constant 0 : index
    %c0_98 = arith.constant 0 : index
    %151 = vector.load %arg19[%c0_97, %c0_98] : memref<2x14xbf16, #tpu.memory_space<vmem>>, vector<2x14xbf16>
    %cst_99 = arith.constant dense<0.000000e+00> : vector<2x128xf32>
    %152 = tpu.matmul %151, %150, %cst_99 {dimension_numbers = #tpu.dot_dimension_numbers<[1], [0], [0], [1], [0, 0, 1, 1], [], []>} : vector<2x14xbf16>, vector<14x128xbf16>, vector<2x128xf32> -> vector<2x128xf32>
    %c0_100 = arith.constant 0 : index
    %c0_101 = arith.constant 0 : index
    %153 = vector.load %arg20[%c0_100, %c0_101] : memref<2x14xbf16, #tpu.memory_space<vmem>>, vector<2x14xbf16>
    %cst_102 = arith.constant dense<0.000000e+00> : vector<2x128xf32>
    %154 = tpu.matmul %153, %150, %cst_102 {dimension_numbers = #tpu.dot_dimension_numbers<[1], [0], [0], [1], [0, 0, 1, 1], [], []>} : vector<2x14xbf16>, vector<14x128xbf16>, vector<2x128xf32> -> vector<2x128xf32>
    %155 = arith.maximumf %152, %154 : vector<2x128xf32>
    %156 = arith.truncf %155 : vector<2x128xf32> to vector<2x128xbf16>
    %c0_103 = arith.constant 0 : index
    %c0_104 = arith.constant 0 : index
    %157 = vector.load %arg21[%c0_103, %c0_104] : memref<128x512xbf16, #tpu.memory_space<vmem>>, vector<128x512xbf16>
    %cst_105 = arith.constant dense<0.000000e+00> : vector<2x512xf32>
    %158 = tpu.matmul %156, %157, %cst_105 {dimension_numbers = #tpu.dot_dimension_numbers<[1], [0], [0], [1], [0, 0, 1, 1], [], []>} : vector<2x128xbf16>, vector<128x512xbf16>, vector<2x512xf32> -> vector<2x512xf32>
    %c0_106 = arith.constant 0 : index
    %c0_107 = arith.constant 0 : index
    %159 = vector.load %arg22[%c0_106, %c0_107] : memref<1x512xf32, #tpu.memory_space<vmem>>, vector<1x512xf32>
    %160 = vector.broadcast %159 : vector<1x512xf32> to vector<2x512xf32>
    %161 = arith.addf %158, %160 : vector<2x512xf32>
    %cst_108 = arith.constant 0.000000e+00 : f32
    %162 = vector.broadcast %cst_108 : f32 to vector<2x512xf32>
    %163 = arith.maximumf %161, %162 : vector<2x512xf32>
    %164 = arith.truncf %163 : vector<2x512xf32> to vector<2x512xbf16>
    %c0_109 = arith.constant 0 : index
    %c0_110 = arith.constant 0 : index
    %165 = vector.load %arg23[%c0_109, %c0_110] : memref<512x128xbf16, #tpu.memory_space<vmem>>, vector<512x128xbf16>
    %cst_111 = arith.constant dense<0.000000e+00> : vector<2x128xf32>
    %166 = tpu.matmul %164, %165, %cst_111 {dimension_numbers = #tpu.dot_dimension_numbers<[1], [0], [0], [1], [0, 0, 1, 1], [], []>} : vector<2x512xbf16>, vector<512x128xbf16>, vector<2x128xf32> -> vector<2x128xf32>
    %c0_112 = arith.constant 0 : index
    %c0_113 = arith.constant 0 : index
    %167 = vector.load %arg24[%c0_112, %c0_113] : memref<1x128xf32, #tpu.memory_space<vmem>>, vector<1x128xf32>
    %168 = vector.broadcast %167 : vector<1x128xf32> to vector<2x128xf32>
    %169 = arith.addf %166, %168 : vector<2x128xf32>
    %cst_114 = arith.constant 0.000000e+00 : f32
    %170 = vector.broadcast %cst_114 : f32 to vector<2x128xf32>
    %171 = arith.maximumf %169, %170 : vector<2x128xf32>
    %c0_115 = arith.constant 0 : index
    %c0_116 = arith.constant 0 : index
    %172 = vector.load %arg25[%c0_115, %c0_116] : memref<1x128xf32, #tpu.memory_space<vmem>>, vector<1x128xf32>
    %173 = vector.broadcast %172 : vector<1x128xf32> to vector<2x128xf32>
    %174 = arith.mulf %171, %173 : vector<2x128xf32>
    %cst_117 = arith.constant dense<0.000000e+00> : vector<2xf32>
    %175 = vector.multi_reduction <add>, %174, %cst_117 [1] : vector<2x128xf32> to vector<2xf32>
    %176 = vector.shape_cast %175 : vector<2xf32> to vector<2x1xf32>
    %c0_118 = arith.constant 0 : index
    %c0_119 = arith.constant 0 : index
    %177 = vector.load %arg26[%c0_118, %c0_119] : memref<1x1xf32, #tpu.memory_space<vmem>>, vector<1x1xf32>
    %178 = vector.broadcast %177 : vector<1x1xf32> to vector<2x1xf32>
    %179 = arith.addf %176, %178 : vector<2x1xf32>
    %cst_120 = arith.constant 0.000000e+00 : f32
    %180 = vector.broadcast %cst_120 : f32 to vector<2x1xf32>
    %181 = arith.subf %180, %179 : vector<2x1xf32>
    %182 = math.exp %181 : vector<2x1xf32>
    %cst_121 = arith.constant 1.000000e+00 : f32
    %183 = vector.broadcast %cst_121 : f32 to vector<2x1xf32>
    %184 = arith.addf %183, %182 : vector<2x1xf32>
    %cst_122 = arith.constant 1.000000e+00 : f32
    %185 = vector.broadcast %cst_122 : f32 to vector<2x1xf32>
    %186 = arith.divf %185, %184 : vector<2x1xf32>
    %c0_123 = arith.constant 0 : index
    %c0_124 = arith.constant 0 : index
    %187 = vector.load %arg27[%c0_123, %c0_124] : memref<2x1xf32, #tpu.memory_space<vmem>>, vector<2x1xf32>
    tpu.vector_store %arg27[%c0_123, %c0_124], %186 {strides = array<i32>} : memref<2x1xf32, #tpu.memory_space<vmem>>, vector<2x1xf32>,
    return
  }
}

</mosaic_0001>

<llo_original>
// kernel: forward.1
$region0: #{forward.1}
  #allocation0 [shape = 'u32[]', space=smem, size = 0x4, offset = 0x4, fixed_abs, tag = 'smem constant byte address 0x4 - core index']
  #allocation1 [shape = 'u32[144,128]{1,0:T(1,128)}', space=vmem, size = 0x12000, scoped, tag = 'internal scratch']
  #allocation2 [shape = 'f32[1,1]{1,0:T(1,128)S(1)}', space=vmem, size = 0x200, scoped, tag = 'scoped memory for forward.1']
  %s0 = inlined_call_operand.vmem [shape: f32[80,128], index: 0, kind: input, shape index: {}]
  %s1 = inlined_call_operand.vmem [shape: bf16[3,128,256], index: 1, kind: input, shape index: {}]
  %s2 = inlined_call_operand.vmem [shape: f32[1,128], index: 2, kind: input, shape index: {}]
  %s3 = inlined_call_operand.hbm [shape: bf16[48,78], index: 3, kind: input, shape index: {}]
  %s4 = inlined_call_operand.hbm [shape: bf16[48,78], index: 4, kind: input, shape index: {}]
  %s5 = inlined_call_operand.hbm [shape: bf16[3,128,256], index: 5, kind: input, shape index: {}]
  %s6 = inlined_call_operand.vmem [shape: f32[1,128], index: 6, kind: input, shape index: {}]
  %s7 = inlined_call_operand.hbm [shape: bf16[32,46], index: 7, kind: input, shape index: {}]
  %s8 = inlined_call_operand.hbm [shape: bf16[32,46], index: 8, kind: input, shape index: {}]
  %s9 = inlined_call_operand.hbm [shape: bf16[3,128,256], index: 9, kind: input, shape index: {}]
  %s10 = inlined_call_operand.hbm [shape: f32[1,128], index: 10, kind: input, shape index: {}]
  %s11 = inlined_call_operand.hbm [shape: bf16[16,30], index: 11, kind: input, shape index: {}]
  %s12 = inlined_call_operand.hbm [shape: bf16[16,30], index: 12, kind: input, shape index: {}]
  %s13 = inlined_call_operand.hbm [shape: bf16[3,128,256], index: 13, kind: input, shape index: {}]
  %s14 = inlined_call_operand.hbm [shape: f32[1,128], index: 14, kind: input, shape index: {}]
  %s15 = inlined_call_operand.hbm [shape: bf16[16,14], index: 15, kind: input, shape index: {}]
  %s16 = inlined_call_operand.hbm [shape: bf16[16,14], index: 16, kind: input, shape index: {}]
  %s17 = inlined_call_operand.hbm [shape: bf16[3,128,256], index: 17, kind: input, shape index: {}]
  %s18 = inlined_call_operand.hbm [shape: f32[1,128], index: 18, kind: input, shape index: {}]
  %s19 = inlined_call_operand.hbm [shape: bf16[2,14], index: 19, kind: input, shape index: {}]
  %s20 = inlined_call_operand.hbm [shape: bf16[2,14], index: 20, kind: input, shape index: {}]
  %s21 = inlined_call_operand.vmem [shape: bf16[128,512], index: 21, kind: input, shape index: {}]
  %s22 = inlined_call_operand.hbm [shape: f32[1,512], index: 22, kind: input, shape index: {}]
  %s23 = inlined_call_operand.hbm [shape: bf16[512,128], index: 23, kind: input, shape index: {}]
  %s24 = inlined_call_operand.hbm [shape: f32[1,128], index: 24, kind: input, shape index: {}]
  %s25 = inlined_call_operand.hbm [shape: f32[1,128], index: 25, kind: input, shape index: {}]
  %s26 = inlined_call_operand.<no memory space> [shape: f32[1,1], index: 26, kind: input, shape index: {}]
  %s27 = inlined_call_operand.vmem [shape: f32[2,1], index: 27, kind: output, shape index: {}]
  %s28 = sld [smem:[#allocation0]]
  $region202: #{forward.1} parent=0
    _
  %s30 = ssub.s32 1, %s28
  %s31 = scalar_select 0, %s30, %s28
  %v32 = vstv %s26
  %33 = vst [vmem:[#allocation2] sm:$0x1] %v32
  $region1: #{forward.1} parent=0
    #allocation3 [shape = 'u8[12288]{0}', space=vmem, size = 0x3000, scoped, tag = 'input window, operand 3, single buffered']
    #allocation4 [shape = 's32[1]{0}', space=sflag, size = 0x4, scoped, tag = 'scoped memory for forward.1']
    #allocation5 [shape = 'u8[12288]{0}', space=vmem, size = 0x3000, scoped, tag = 'input window, operand 4, single buffered']
    #allocation6 [shape = 's32[1]{0}', space=sflag, size = 0x4, scoped, tag = 'scoped memory for forward.1']
    #allocation7 [shape = 'u8[196608]{0}', space=vmem, size = 0x30000, scoped, tag = 'input window, operand 5, single buffered']
    #allocation8 [shape = 'u8[8192]{0}', space=vmem, size = 0x2000, scoped, tag = 'input window, operand 7, single buffered']
    #allocation9 [shape = 's32[1]{0}', space=sflag, size = 0x4, scoped, tag = 'scoped memory for forward.1']
    #allocation10 [shape = 'u8[8192]{0}', space=vmem, size = 0x2000, scoped, tag = 'input window, operand 8, single buffered']
    #allocation11 [shape = 'u8[196608]{0}', space=vmem, size = 0x30000, scoped, tag = 'input window, operand 9, single buffered']
    #allocation12 [shape = 's32[1]{0}', space=sflag, size = 0x4, scoped, tag = 'scoped memory for forward.1']
    #allocation13 [shape = 'u8[512]{0}', space=vmem, size = 0x400, scoped, tag = 'input window, operand 10, single buffered']
    #allocation14 [shape = 'u8[4096]{0}', space=vmem, size = 0x1000, scoped, tag = 'input window, operand 11, single buffered']
    #allocation15 [shape = 's32[1]{0}', space=sflag, size = 0x4, scoped, tag = 'scoped memory for forward.1']
    #allocation16 [shape = 'u8[4096]{0}', space=vmem, size = 0x1000, scoped, tag = 'input window, operand 12, single buffered']
    #allocation17 [shape = 'u8[196608]{0}', space=vmem, size = 0x30000, scoped, tag = 'input window, operand 13, single buffered']
    #allocation18 [shape = 's32[1]{0}', space=sflag, size = 0x4, scoped, tag = 'scoped memory for forward.1']
    #allocation19 [shape = 'u8[512]{0}', space=vmem, size = 0x400, scoped, tag = 'input window, operand 14, single buffered']
    #allocation20 [shape = 'u8[4096]{0}', space=vmem, size = 0x1000, scoped, tag = 'input window, operand 15, single buffered']
    #allocation21 [shape = 's32[1]{0}', space=sflag, size = 0x4, scoped, tag = 'scoped memory for forward.1']
    #allocation22 [shape = 'u8[4096]{0}', space=vmem, size = 0x1000, scoped, tag = 'input window, operand 16, single buffered']
    #allocation23 [shape = 'u8[196608]{0}', space=vmem, size = 0x30000, scoped, tag = 'input window, operand 17, single buffered']
    #allocation24 [shape = 's32[1]{0}', space=sflag, size = 0x4, scoped, tag = 'scoped memory for forward.1']
    #allocation25 [shape = 'u8[512]{0}', space=vmem, size = 0x400, scoped, tag = 'input window, operand 18, single buffered']
    #allocation26 [shape = 'u8[512]{0}', space=vmem, size = 0x400, scoped, tag = 'input window, operand 19, single buffered']
    #allocation27 [shape = 's32[1]{0}', space=sflag, size = 0x4, scoped, tag = 'scoped memory for forward.1']
    #allocation28 [shape = 'u8[512]{0}', space=vmem, size = 0x400, scoped, tag = 'input window, operand 20, single buffered']
    #allocation29 [shape = 'u8[2048]{0}', space=vmem, size = 0x800, scoped, tag = 'input window, operand 22, single buffered']
    #allocation30 [shape = 's32[1]{0}', space=sflag, size = 0x4, scoped, tag = 'scoped memory for forward.1']
    #allocation31 [shape = 'u8[131072]{0}', space=vmem, size = 0x20000, scoped, tag = 'input window, operand 23, single buffered']
    #allocation32 [shape = 'u8[512]{0}', space=vmem, size = 0x400, scoped, tag = 'input window, operand 24, single buffered']
    #allocation33 [shape = 's32[1]{0}', space=sflag, size = 0x4, scoped, tag = 'scoped memory for forward.1']
    #allocation34 [shape = 'u8[512]{0}', space=vmem, size = 0x400, scoped, tag = 'input window, operand 25, single buffered']
    %34 = vsyncpa [#allocation4], 0
    %35 = vsyncpa [#allocation6], 0
    %36 = vsyncpa [#allocation9], 0
    %37 = vsyncpa [#allocation12], 0
    %38 = vsyncpa [#allocation15], 0
    %39 = vsyncpa [#allocation18], 0
    %40 = vsyncpa [#allocation21], 0
    %41 = vsyncpa [#allocation24], 0
    %42 = vsyncpa [#allocation27], 0
    %43 = vsyncpa [#allocation30], 0
    %44 = vsyncpa [#allocation33], 0
    // Predicated region
    $region2: #{forward.1} parent=1 // pred_check
      _
    $region3: #{forward.1} parent=1 // pred_check_branch
      %46 = sbr.rel (0) target = $region5
    $region4: #{forward.1} parent=1 // pred_region
      _
    $region5: #{forward.1} parent=1 // pred_fallthru
      _
    // Predicated region
    $region6: #{forward.1} parent=1 // pred_check
      _
    $region7: #{forward.1} parent=1 // pred_check_branch
      %48 = sbr.rel (0) target = $region9
    $region8: #{forward.1} parent=1 // pred_region
      _
    $region9: #{forward.1} parent=1 // pred_fallthru
      _
    // Predicated region
    $region10: #{forward.1} parent=1 // pred_check
      _
    $region11: #{forward.1} parent=1 // pred_check_branch
      %50 = sbr.rel (0) target = $region13
    $region12: #{forward.1} parent=1 // pred_region
      _
    $region13: #{forward.1} parent=1 // pred_fallthru
      _
    // Predicated region
    $region14: #{forward.1} parent=1 // pred_check
      _
    $region15: #{forward.1} parent=1 // pred_check_branch
      %52 = sbr.rel (0) target = $region17
    $region16: #{forward.1} parent=1 // pred_region
      %s54 = ssub.s32 384, 384
      %55 = vsyncadd [#allocation4], %s54
      %s56 = sshll.u32 [#allocation3], 4
      %s57 = int_to_ptr.vmem [resolvable:$true] %s56
      %62 = dma.hbm_to_vmem [thread:$0]  %s3, 384, %s57, [#allocation4], 64, 64, 4
    $region17: #{forward.1} parent=1 // pred_fallthru
      _
    // Predicated region
    $region18: #{forward.1} parent=1 // pred_check
      _
    $region19: #{forward.1} parent=1 // pred_check_branch
      %64 = sbr.rel (0) target = $region21
    $region20: #{forward.1} parent=1 // pred_region
      %s66 = ssub.s32 384, 384
      %67 = vsyncadd [#allocation6], %s66
      %s68 = sshll.u32 [#allocation5], 4
      %s69 = int_to_ptr.vmem [resolvable:$true] %s68
      %74 = dma.hbm_to_vmem [thread:$0]  %s4, 384, %s69, [#allocation6], 64, 64, 4
    $region21: #{forward.1} parent=1 // pred_fallthru
      _
    // Predicated region
    $region22: #{forward.1} parent=1 // pred_check
      _
    $region23: #{forward.1} parent=1 // pred_check_branch
      %76 = sbr.rel (0) target = $region25
    $region24: #{forward.1} parent=1 // pred_region
      %s78 = ssub.s32 6144, 6144
      %79 = vsyncadd [#allocation6], %s78
      %s80 = sshll.u32 [#allocation7], 4
      %s81 = int_to_ptr.vmem [resolvable:$true] %s80
      %86 = dma.hbm_to_vmem [thread:$0]  %s5, 6144, %s81, [#allocation6], 128, 128, 8
    $region25: #{forward.1} parent=1 // pred_fallthru
      _
    // Predicated region
    $region26: #{forward.1} parent=1 // pred_check
      _
    $region27: #{forward.1} parent=1 // pred_check_branch
      %88 = sbr.rel (0) target = $region29
    $region28: #{forward.1} parent=1 // pred_region
      _
    $region29: #{forward.1} parent=1 // pred_fallthru
      _
    // Predicated region
    $region30: #{forward.1} parent=1 // pred_check
      _
    $region31: #{forward.1} parent=1 // pred_check_branch
      %90 = sbr.rel (0) target = $region33
    $region32: #{forward.1} parent=1 // pred_region
      %s92 = ssub.s32 256, 256
      %93 = vsyncadd [#allocation9], %s92
      %s94 = sshll.u32 [#allocation8], 4
      %s95 = int_to_ptr.vmem [resolvable:$true] %s94
      %100 = dma.hbm_to_vmem [thread:$0]  %s7, 256, %s95, [#allocation9], 64, 64, 4
    $region33: #{forward.1} parent=1 // pred_fallthru
      _
    // Predicated region
    $region34: #{forward.1} parent=1 // pred_check
      _
    $region35: #{forward.1} parent=1 // pred_check_branch
      %102 = sbr.rel (0) target = $region37
    $region36: #{forward.1} parent=1 // pred_region
      %s104 = ssub.s32 256, 256
      %105 = vsyncadd [#allocation9], %s104
      %s106 = sshll.u32 [#allocation10], 4
      %s107 = int_to_ptr.vmem [resolvable:$true] %s106
      %112 = dma.hbm_to_vmem [thread:$0]  %s8, 256, %s107, [#allocation9], 64, 64, 4
    $region37: #{forward.1} parent=1 // pred_fallthru
      _
    // Predicated region
    $region38: #{forward.1} parent=1 // pred_check
      _
    $region39: #{forward.1} parent=1 // pred_check_branch
      %114 = sbr.rel (0) target = $region41
    $region40: #{forward.1} parent=1 // pred_region
      %s116 = ssub.s32 6144, 6144
      %117 = vsyncadd [#allocation12], %s116
      %s118 = sshll.u32 [#allocation11], 4
      %s119 = int_to_ptr.vmem [resolvable:$true] %s118
      %124 = dma.hbm_to_vmem [thread:$0]  %s9, 6144, %s119, [#allocation12], 128, 128, 8
    $region41: #{forward.1} parent=1 // pred_fallthru
      _
    // Predicated region
    $region42: #{forward.1} parent=1 // pred_check
      _
    $region43: #{forward.1} parent=1 // pred_check_branch
      %126 = sbr.rel (0) target = $region45
    $region44: #{forward.1} parent=1 // pred_region
      %s128 = ssub.s32 16, 16
      %129 = vsyncadd [#allocation12], %s128
      %s131 = sshll.u32 [#allocation13], 4
      %s132 = int_to_ptr.vmem [resolvable:$true] %s131
      %134 = dma.hbm_to_vmem [thread:$0]  %s10, 16, %s132, [#allocation12]
    $region45: #{forward.1} parent=1 // pred_fallthru
      _
    // Predicated region
    $region46: #{forward.1} parent=1 // pred_check
      _
    $region47: #{forward.1} parent=1 // pred_check_branch
      %136 = sbr.rel (0) target = $region49
    $region48: #{forward.1} parent=1 // pred_region
      %s138 = ssub.s32 128, 128
      %139 = vsyncadd [#allocation15], %s138
      %s140 = sshll.u32 [#allocation14], 4
      %s141 = int_to_ptr.vmem [resolvable:$true] %s140
      %146 = dma.hbm_to_vmem [thread:$0]  %s11, 128, %s141, [#allocation15], 64, 64, 4
    $region49: #{forward.1} parent=1 // pred_fallthru
      _
    // Predicated region
    $region50: #{forward.1} parent=1 // pred_check
      _
    $region51: #{forward.1} parent=1 // pred_check_branch
      %148 = sbr.rel (0) target = $region53
    $region52: #{forward.1} parent=1 // pred_region
      %s150 = ssub.s32 128, 128
      %151 = vsyncadd [#allocation15], %s150
      %s152 = sshll.u32 [#allocation16], 4
      %s153 = int_to_ptr.vmem [resolvable:$true] %s152
      %158 = dma.hbm_to_vmem [thread:$0]  %s12, 128, %s153, [#allocation15], 64, 64, 4
    $region53: #{forward.1} parent=1 // pred_fallthru
      _
    // Predicated region
    $region54: #{forward.1} parent=1 // pred_check
      _
    $region55: #{forward.1} parent=1 // pred_check_branch
      %160 = sbr.rel (0) target = $region57
    $region56: #{forward.1} parent=1 // pred_region
      %s162 = ssub.s32 6144, 6144
      %163 = vsyncadd [#allocation18], %s162
      %s164 = sshll.u32 [#allocation17], 4
      %s165 = int_to_ptr.vmem [resolvable:$true] %s164
      %170 = dma.hbm_to_vmem [thread:$0]  %s13, 6144, %s165, [#allocation18], 128, 128, 8
    $region57: #{forward.1} parent=1 // pred_fallthru
      _
    // Predicated region
    $region58: #{forward.1} parent=1 // pred_check
      _
    $region59: #{forward.1} parent=1 // pred_check_branch
      %172 = sbr.rel (0) target = $region61
    $region60: #{forward.1} parent=1 // pred_region
      %s174 = ssub.s32 16, 16
      %175 = vsyncadd [#allocation18], %s174
      %s177 = sshll.u32 [#allocation19], 4
      %s178 = int_to_ptr.vmem [resolvable:$true] %s177
      %180 = dma.hbm_to_vmem [thread:$0]  %s14, 16, %s178, [#allocation18]
    $region61: #{forward.1} parent=1 // pred_fallthru
      _
    // Predicated region
    $region62: #{forward.1} parent=1 // pred_check
      _
    $region63: #{forward.1} parent=1 // pred_check_branch
      %182 = sbr.rel (0) target = $region65
    $region64: #{forward.1} parent=1 // pred_region
      %s184 = ssub.s32 128, 128
      %185 = vsyncadd [#allocation21], %s184
      %s186 = sshll.u32 [#allocation20], 4
      %s187 = int_to_ptr.vmem [resolvable:$true] %s186
      %192 = dma.hbm_to_vmem [thread:$0]  %s15, 128, %s187, [#allocation21], 64, 64, 4
    $region65: #{forward.1} parent=1 // pred_fallthru
      _
    // Predicated region
    $region66: #{forward.1} parent=1 // pred_check
      _
    $region67: #{forward.1} parent=1 // pred_check_branch
      %194 = sbr.rel (0) target = $region69
    $region68: #{forward.1} parent=1 // pred_region
      %s196 = ssub.s32 128, 128
      %197 = vsyncadd [#allocation21], %s196
      %s198 = sshll.u32 [#allocation22], 4
      %s199 = int_to_ptr.vmem [resolvable:$true] %s198
      %204 = dma.hbm_to_vmem [thread:$0]  %s16, 128, %s199, [#allocation21], 64, 64, 4
    $region69: #{forward.1} parent=1 // pred_fallthru
      _
    // Predicated region
    $region70: #{forward.1} parent=1 // pred_check
      _
    $region71: #{forward.1} parent=1 // pred_check_branch
      %206 = sbr.rel (0) target = $region73
    $region72: #{forward.1} parent=1 // pred_region
      %s208 = ssub.s32 6144, 6144
      %209 = vsyncadd [#allocation24], %s208
      %s210 = sshll.u32 [#allocation23], 4
      %s211 = int_to_ptr.vmem [resolvable:$true] %s210
      %216 = dma.hbm_to_vmem [thread:$0]  %s17, 6144, %s211, [#allocation24], 128, 128, 8
    $region73: #{forward.1} parent=1 // pred_fallthru
      _
    // Predicated region
    $region74: #{forward.1} parent=1 // pred_check
      _
    $region75: #{forward.1} parent=1 // pred_check_branch
      %218 = sbr.rel (0) target = $region77
    $region76: #{forward.1} parent=1 // pred_region
      %s220 = ssub.s32 16, 16
      %221 = vsyncadd [#allocation24], %s220
      %s223 = sshll.u32 [#allocation25], 4
      %s224 = int_to_ptr.vmem [resolvable:$true] %s223
      %226 = dma.hbm_to_vmem [thread:$0]  %s18, 16, %s224, [#allocation24]
    $region77: #{forward.1} parent=1 // pred_fallthru
      _
    // Predicated region
    $region78: #{forward.1} parent=1 // pred_check
      _
    $region79: #{forward.1} parent=1 // pred_check_branch
      %228 = sbr.rel (0) target = $region81
    $region80: #{forward.1} parent=1 // pred_region
      %s230 = ssub.s32 16, 16
      %231 = vsyncadd [#allocation27], %s230
      %s233 = sshll.u32 [#allocation26], 4
      %s234 = int_to_ptr.vmem [resolvable:$true] %s233
      %236 = dma.hbm_to_vmem [thread:$0]  %s19, 16, %s234, [#allocation27]
    $region81: #{forward.1} parent=1 // pred_fallthru
      _
    // Predicated region
    $region82: #{forward.1} parent=1 // pred_check
      _
    $region83: #{forward.1} parent=1 // pred_check_branch
      %238 = sbr.rel (0) target = $region85
    $region84: #{forward.1} parent=1 // pred_region
      %s240 = ssub.s32 16, 16
      %241 = vsyncadd [#allocation27], %s240
      %s243 = sshll.u32 [#allocation28], 4
      %s244 = int_to_ptr.vmem [resolvable:$true] %s243
      %246 = dma.hbm_to_vmem [thread:$0]  %s20, 16, %s244, [#allocation27]
    $region85: #{forward.1} parent=1 // pred_fallthru
      _
    // Predicated region
    $region86: #{forward.1} parent=1 // pred_check
      _
    $region87: #{forward.1} parent=1 // pred_check_branch
      %248 = sbr.rel (0) target = $region89
    $region88: #{forward.1} parent=1 // pred_region
      _
    $region89: #{forward.1} parent=1 // pred_fallthru
      _
    // Predicated region
    $region90: #{forward.1} parent=1 // pred_check
      _
    $region91: #{forward.1} parent=1 // pred_check_branch
      %250 = sbr.rel (0) target = $region93
    $region92: #{forward.1} parent=1 // pred_region
      %s252 = ssub.s32 64, 64
      %253 = vsyncadd [#allocation30], %s252
      %s255 = sshll.u32 [#allocation29], 4
      %s256 = int_to_ptr.vmem [resolvable:$true] %s255
      %258 = dma.hbm_to_vmem [thread:$0]  %s22, 64, %s256, [#allocation30]
    $region93: #{forward.1} parent=1 // pred_fallthru
      _
    // Predicated region
    $region94: #{forward.1} parent=1 // pred_check
      _
    $region95: #{forward.1} parent=1 // pred_check_branch
      %260 = sbr.rel (0) target = $region97
    $region96: #{forward.1} parent=1 // pred_region
      %s262 = ssub.s32 4096, 4096
      %263 = vsyncadd [#allocation30], %s262
      %s264 = sshll.u32 [#allocation31], 4
      %s265 = int_to_ptr.vmem [resolvable:$true] %s264
      %270 = dma.hbm_to_vmem [thread:$0]  %s23, 4096, %s265, [#allocation30], 64, 64, 4
    $region97: #{forward.1} parent=1 // pred_fallthru
      _
    // Predicated region
    $region98: #{forward.1} parent=1 // pred_check
      _
    $region99: #{forward.1} parent=1 // pred_check_branch
      %272 = sbr.rel (0) target = $region101
    $region100: #{forward.1} parent=1 // pred_region
      %s274 = ssub.s32 16, 16
      %275 = vsyncadd [#allocation33], %s274
      %s277 = sshll.u32 [#allocation32], 4
      %s278 = int_to_ptr.vmem [resolvable:$true] %s277
      %280 = dma.hbm_to_vmem [thread:$0]  %s24, 16, %s278, [#allocation33]
    $region101: #{forward.1} parent=1 // pred_fallthru
      _
    // Predicated region
    $region102: #{forward.1} parent=1 // pred_check
      _
    $region103: #{forward.1} parent=1 // pred_check_branch
      %282 = sbr.rel (0) target = $region105
    $region104: #{forward.1} parent=1 // pred_region
      %s284 = ssub.s32 16, 16
      %285 = vsyncadd [#allocation33], %s284
      %s287 = sshll.u32 [#allocation34], 4
      %s288 = int_to_ptr.vmem [resolvable:$true] %s287
      %290 = dma.hbm_to_vmem [thread:$0]  %s25, 16, %s288, [#allocation33]
    $region105: #{forward.1} parent=1 // pred_fallthru
      _
    // Predicated region
    $region106: #{forward.1} parent=1 // pred_check
      _
    $region107: #{forward.1} parent=1 // pred_check_branch
      %292 = sbr.rel (0) target = $region109
    $region108: #{forward.1} parent=1 // pred_region
      _
    $region109: #{forward.1} parent=1 // pred_fallthru
      _
    // Predicated region
    $region110: #{forward.1} parent=1 // pred_check
      _
    $region111: #{forward.1} parent=1 // pred_check_branch
      %294 = sbr.rel (0) target = $region113
    $region112: #{forward.1} parent=1 // pred_region
      %295 = dma.done [#allocation4], 384
    $region113: #{forward.1} parent=1 // pred_fallthru
      _
    // Predicated region
    $region114: #{forward.1} parent=1 // pred_check
      _
    $region115: #{forward.1} parent=1 // pred_check_branch
      %297 = sbr.rel (0) target = $region117
    $region116: #{forward.1} parent=1 // pred_region
      %298 = dma.done [#allocation6], 384
    $region117: #{forward.1} parent=1 // pred_fallthru
      _
    // Predicated region
    $region118: #{forward.1} parent=1 // pred_check
      _
    $region119: #{forward.1} parent=1 // pred_check_branch
      %300 = sbr.rel (0) target = $region121
    $region120: #{forward.1} parent=1 // pred_region
      %301 = dma.done [#allocation6], 6144
    $region121: #{forward.1} parent=1 // pred_fallthru
      _
    // Predicated region
    $region122: #{forward.1} parent=1 // pred_check
      _
    $region123: #{forward.1} parent=1 // pred_check_branch
      %303 = sbr.rel (0) target = $region125
    $region124: #{forward.1} parent=1 // pred_region
      %304 = dma.done [#allocation9], 256
    $region125: #{forward.1} parent=1 // pred_fallthru
      _
    // Predicated region
    $region126: #{forward.1} parent=1 // pred_check
      _
    $region127: #{forward.1} parent=1 // pred_check_branch
      %306 = sbr.rel (0) target = $region129
    $region128: #{forward.1} parent=1 // pred_region
      %307 = dma.done [#allocation9], 256
    $region129: #{forward.1} parent=1 // pred_fallthru
      _
    // Predicated region
    $region130: #{forward.1} parent=1 // pred_check
      _
    $region131: #{forward.1} parent=1 // pred_check_branch
      %309 = sbr.rel (0) target = $region133
    $region132: #{forward.1} parent=1 // pred_region
      %310 = dma.done [#allocation12], 6144
    $region133: #{forward.1} parent=1 // pred_fallthru
      _
    // Predicated region
    $region134: #{forward.1} parent=1 // pred_check
      _
    $region135: #{forward.1} parent=1 // pred_check_branch
      %312 = sbr.rel (0) target = $region137
    $region136: #{forward.1} parent=1 // pred_region
      %313 = dma.done [#allocation12], 16
    $region137: #{forward.1} parent=1 // pred_fallthru
      _
    // Predicated region
    $region138: #{forward.1} parent=1 // pred_check
      _
    $region139: #{forward.1} parent=1 // pred_check_branch
      %315 = sbr.rel (0) target = $region141
    $region140: #{forward.1} parent=1 // pred_region
      %316 = dma.done [#allocation15], 128
    $region141: #{forward.1} parent=1 // pred_fallthru
      _
    // Predicated region
    $region142: #{forward.1} parent=1 // pred_check
      _
    $region143: #{forward.1} parent=1 // pred_check_branch
      %318 = sbr.rel (0) target = $region145
    $region144: #{forward.1} parent=1 // pred_region
      %319 = dma.done [#allocation15], 128
    $region145: #{forward.1} parent=1 // pred_fallthru
      _
    // Predicated region
    $region146: #{forward.1} parent=1 // pred_check
      _
    $region147: #{forward.1} parent=1 // pred_check_branch
      %321 = sbr.rel (0) target = $region149
    $region148: #{forward.1} parent=1 // pred_region
      %322 = dma.done [#allocation18], 6144
    $region149: #{forward.1} parent=1 // pred_fallthru
      _
    // Predicated region
    $region150: #{forward.1} parent=1 // pred_check
      _
    $region151: #{forward.1} parent=1 // pred_check_branch
      %324 = sbr.rel (0) target = $region153
    $region152: #{forward.1} parent=1 // pred_region
      %325 = dma.done [#allocation18], 16
    $region153: #{forward.1} parent=1 // pred_fallthru
      _
    // Predicated region
    $region154: #{forward.1} parent=1 // pred_check
      _
    $region155: #{forward.1} parent=1 // pred_check_branch
      %327 = sbr.rel (0) target = $region157
    $region156: #{forward.1} parent=1 // pred_region
      %328 = dma.done [#allocation21], 128
    $region157: #{forward.1} parent=1 // pred_fallthru
      _
    // Predicated region
    $region158: #{forward.1} parent=1 // pred_check
      _
    $region159: #{forward.1} parent=1 // pred_check_branch
      %330 = sbr.rel (0) target = $region161
    $region160: #{forward.1} parent=1 // pred_region
      %331 = dma.done [#allocation21], 128
    $region161: #{forward.1} parent=1 // pred_fallthru
      _
    // Predicated region
    $region162: #{forward.1} parent=1 // pred_check
      _
    $region163: #{forward.1} parent=1 // pred_check_branch
      %333 = sbr.rel (0) target = $region165
    $region164: #{forward.1} parent=1 // pred_region
      %334 = dma.done [#allocation24], 6144
    $region165: #{forward.1} parent=1 // pred_fallthru
      _
    // Predicated region
    $region166: #{forward.1} parent=1 // pred_check
      _
    $region167: #{forward.1} parent=1 // pred_check_branch
      %336 = sbr.rel (0) target = $region169
    $region168: #{forward.1} parent=1 // pred_region
      %337 = dma.done [#allocation24], 16
    $region169: #{forward.1} parent=1 // pred_fallthru
      _
    // Predicated region
    $region170: #{forward.1} parent=1 // pred_check
      _
    $region171: #{forward.1} parent=1 // pred_check_branch
      %339 = sbr.rel (0) target = $region173
    $region172: #{forward.1} parent=1 // pred_region
      %340 = dma.done [#allocation27], 16
    $region173: #{forward.1} parent=1 // pred_fallthru
      _
    // Predicated region
    $region174: #{forward.1} parent=1 // pred_check
      _
    $region175: #{forward.1} parent=1 // pred_check_branch
      %342 = sbr.rel (0) target = $region177
    $region176: #{forward.1} parent=1 // pred_region
      %343 = dma.done [#allocation27], 16
    $region177: #{forward.1} parent=1 // pred_fallthru
      _
    // Predicated region
    $region178: #{forward.1} parent=1 // pred_check
      _
    $region179: #{forward.1} parent=1 // pred_check_branch
      %345 = sbr.rel (0) target = $region181
    $region180: #{forward.1} parent=1 // pred_region
      %346 = dma.done [#allocation30], 64
    $region181: #{forward.1} parent=1 // pred_fallthru
      _
    // Predicated region
    $region182: #{forward.1} parent=1 // pred_check
      _
    $region183: #{forward.1} parent=1 // pred_check_branch
      %348 = sbr.rel (0) target = $region185
    $region184: #{forward.1} parent=1 // pred_region
      %349 = dma.done [#allocation30], 4096
    $region185: #{forward.1} parent=1 // pred_fallthru
      _
    // Predicated region
    $region186: #{forward.1} parent=1 // pred_check
      _
    $region187: #{forward.1} parent=1 // pred_check_branch
      %351 = sbr.rel (0) target = $region189
    $region188: #{forward.1} parent=1 // pred_region
      %352 = dma.done [#allocation33], 16
    $region189: #{forward.1} parent=1 // pred_fallthru
      _
    // Predicated region
    $region190: #{forward.1} parent=1 // pred_check
      _
    $region191: #{forward.1} parent=1 // pred_check_branch
      %354 = sbr.rel (0) target = $region193
    $region192: #{forward.1} parent=1 // pred_region
      %355 = dma.done [#allocation33], 16
    $region193: #{forward.1} parent=1 // pred_fallthru
      _
    %v357 = vld [vmem:[%s0] sm:$0xff]
    %v358 = vld [vmem:[%s0 + $0x8] sm:$0xff]
    %v359 = vld [vmem:[%s0 + $0x10] sm:$0xff]
    %v360 = vld [vmem:[%s0 + $0x18] sm:$0xff]
    %v361 = vld [vmem:[%s0 + $0x20] sm:$0xff]
    %v362 = vld [vmem:[%s0 + $0x28] sm:$0xff]
    %v363 = vld [vmem:[%s0 + $0x30] sm:$0xff]
    %v364 = vld [vmem:[%s0 + $0x38] sm:$0xff]
    %v365 = vld [vmem:[%s0 + $0x40] sm:$0xff]
    %v366 = vld [vmem:[%s0 + $0x48] sm:$0xff]
    %v367 = vpack.c.bf16 %v358, %v357
    %v368 = vpack.c.bf16 %v360, %v359
    %v369 = vpack.c.bf16 %v362, %v361
    %v370 = vpack.c.bf16 %v364, %v363
    %v371 = vpack.c.bf16 %v366, %v365
    %v372 = vld [vmem:[%s1] sm:$0xff]
    %v373 = vld [vmem:[%s1 + $0x8] sm:$0xff]
    %v374 = vld [vmem:[%s1 + $0x10] sm:$0xff]
    %v375 = vld [vmem:[%s1 + $0x18] sm:$0xff]
    %v376 = vld [vmem:[%s1 + $0x20] sm:$0xff]
    %v377 = vld [vmem:[%s1 + $0x28] sm:$0xff]
    %v378 = vld [vmem:[%s1 + $0x30] sm:$0xff]
    %v379 = vld [vmem:[%s1 + $0x38] sm:$0xff]
    %v380 = vld [vmem:[%s1 + $0x40] sm:$0xff]
    %v381 = vld [vmem:[%s1 + $0x48] sm:$0xff]
    %v382 = vld [vmem:[%s1 + $0x50] sm:$0xff]
    %v383 = vld [vmem:[%s1 + $0x58] sm:$0xff]
    %v384 = vld [vmem:[%s1 + $0x60] sm:$0xff]
    %v385 = vld [vmem:[%s1 + $0x68] sm:$0xff]
    %v386 = vld [vmem:[%s1 + $0x70] sm:$0xff]
    %v387 = vld [vmem:[%s1 + $0x78] sm:$0xff]
    %s388 = scalar_lea.vmem %s1, 128
    %v389 = vld [vmem:[%s388] sm:$0xff]
    %v390 = vld [vmem:[%s388 + $0x8] sm:$0xff]
    %v391 = vld [vmem:[%s388 + $0x10] sm:$0xff]
    %v392 = vld [vmem:[%s388 + $0x18] sm:$0xff]
    %v393 = vld [vmem:[%s388 + $0x20] sm:$0xff]
    %v394 = vld [vmem:[%s388 + $0x28] sm:$0xff]
    %v395 = vld [vmem:[%s388 + $0x30] sm:$0xff]
    %v396 = vld [vmem:[%s388 + $0x38] sm:$0xff]
    %v397 = vld [vmem:[%s388 + $0x40] sm:$0xff]
    %v398 = vld [vmem:[%s388 + $0x48] sm:$0xff]
    %v399 = vld [vmem:[%s388 + $0x50] sm:$0xff]
    %v400 = vld [vmem:[%s388 + $0x58] sm:$0xff]
    %v401 = vld [vmem:[%s388 + $0x60] sm:$0xff]
    %v402 = vld [vmem:[%s388 + $0x68] sm:$0xff]
    %v403 = vld [vmem:[%s388 + $0x70] sm:$0xff]
    %v404 = vld [vmem:[%s388 + $0x78] sm:$0xff]
    %vm405 = vsmask.f32 7424
    %v407 = vshrl.u32 %v367, 16
    %v409 = vshll.u32 %v367, 16
    %v411 = vrot.slane %v409, 1
    %v412 = vor.u32 %v407, %v411
    %v414 = vshll.u32 %v368, 16
    %v416 = vrot.slane %v414, 1
    %v417 = vsel %vm405, %v412, %v416
    %v418 = vshrl.u32 %v368, 16
    %v420 = vor.u32 %v418, %v416
    %v422 = vshll.u32 %v369, 16
    %v424 = vrot.slane %v422, 1
    %v425 = vsel %vm405, %v420, %v424
    %v426 = vshrl.u32 %v369, 16
    %v428 = vor.u32 %v426, %v424
    %v430 = vshll.u32 %v370, 16
    %v432 = vrot.slane %v430, 1
    %v433 = vsel %vm405, %v428, %v432
    %v434 = vshrl.u32 %v370, 16
    %v436 = vor.u32 %v434, %v432
    %v438 = vshll.u32 %v371, 16
    %v440 = vrot.slane %v438, 1
    %v441 = vsel %vm405, %v436, %v440
    %v442 = vshrl.u32 %v371, 16
    %v444 = vor.u32 %v442, %v440
    %v466 = vunpack.c.l.b16 %v389
    %v467 = vunpack.c.h.b16 %v389
    %v468 = vunpack.c.l.b16 %v390
    %v469 = vunpack.c.h.b16 %v390
    %v470 = vunpack.c.l.b16 %v391
    %v471 = vunpack.c.h.b16 %v391
    %v472 = vunpack.c.l.b16 %v392
    %v473 = vunpack.c.h.b16 %v392
    %v474 = vunpack.c.l.b16 %v393
    %v475 = vunpack.c.h.b16 %v393
    %v476 = vunpack.c.l.b16 %v394
    %v477 = vunpack.c.h.b16 %v394
    %v478 = vunpack.c.l.b16 %v395
    %v479 = vunpack.c.h.b16 %v395
    %v480 = vunpack.c.l.b16 %v396
    %v481 = vunpack.c.h.b16 %v396
    %v482 = vunpack.c.l.b16 %v397
    %v483 = vunpack.c.h.b16 %v397
    %v484 = vunpack.c.l.b16 %v398
    %v485 = vunpack.c.h.b16 %v398
    %v486 = vunpack.c.l.b16 %v399
    %v487 = vunpack.c.h.b16 %v399
    %v488 = vunpack.c.l.b16 %v400
    %v489 = vunpack.c.h.b16 %v400
    %v490 = vunpack.c.l.b16 %v401
    %v491 = vunpack.c.h.b16 %v401
    %v492 = vunpack.c.l.b16 %v402
    %v493 = vunpack.c.h.b16 %v402
    %v494 = vunpack.c.l.b16 %v403
    %v495 = vunpack.c.h.b16 %v403
    %v496 = vunpack.c.l.b16 %v404
    %v497 = vunpack.c.h.b16 %v404
    %v498 = vpack.c.b16 %v468, %v466
    %v499 = vpack.c.b16 %v469, %v467
    %v500 = vpack.c.b16 %v472, %v470
    %v501 = vpack.c.b16 %v473, %v471
    %v502 = vpack.c.b16 %v476, %v474
    %v503 = vpack.c.b16 %v477, %v475
    %v504 = vpack.c.b16 %v480, %v478
    %v505 = vpack.c.b16 %v481, %v479
    %v506 = vpack.c.b16 %v484, %v482
    %v507 = vpack.c.b16 %v485, %v483
    %v508 = vpack.c.b16 %v488, %v486
    %v509 = vpack.c.b16 %v489, %v487
    %v510 = vpack.c.b16 %v492, %v490
    %v511 = vpack.c.b16 %v493, %v491
    %v512 = vpack.c.b16 %v496, %v494
    %v513 = vpack.c.b16 %v497, %v495
    %530 = vmatprep.subr.bf16.mxu0 %v513
    %531 = vmatpush1.bf16.msra.mxu0 %v512
    %532 = vmatprep.subr.bf16.mxu0 %v511
    %533 = vmatpush1.bf16.msra.mxu0 %v510
    %534 = vmatprep.subr.bf16.mxu0 %v509
    %535 = vmatpush1.bf16.msra.mxu0 %v508
    %536 = vmatprep.subr.bf16.mxu0 %v507
    %537 = vmatpush1.bf16.msra.mxu0 %v506
    %538 = vmatprep.subr.bf16.mxu0 %v505
    %539 = vmatpush1.bf16.msra.mxu0 %v504
    %540 = vmatprep.subr.bf16.mxu0 %v503
    %541 = vmatpush1.bf16.msra.mxu0 %v502
    %542 = vmatprep.subr.bf16.mxu0 %v501
    %543 = vmatpush1.bf16.msra.mxu0 %v500
    %544 = vmatprep.subr.bf16.mxu0 %v499
    %545 = vmatpush1.bf16.msra.mxu0 %v498
    %546 = vmatprep.subr.bf16.mxu0 0
    %547 = vmatpush2.bf16.msra.mxu0 0
    %548 = vmatprep.subr.bf16.mxu0 0
    %549 = vmatpush2.bf16.msra.mxu0 0
    %550 = vmatprep.subr.bf16.mxu0 0
    %551 = vmatpush2.bf16.msra.mxu0 0
    %552 = vmatprep.subr.bf16.mxu0 0
    %553 = vmatpush2.bf16.msra.mxu0 0
    %554 = vmatprep.subr.bf16.mxu0 0
    %555 = vmatpush2.bf16.msra.mxu0 0
    %556 = vmatprep.subr.bf16.mxu0 0
    %557 = vmatpush2.bf16.msra.mxu0 0
    %558 = vmatprep.subr.bf16.mxu0 0
    %559 = vmatpush2.bf16.msra.mxu0 0
    %560 = vmatprep.subr.bf16.mxu0 0
    %561 = vmatpush2.bf16.msra.mxu0 0
    %562 = vmatprep.mubr.bf16.mxu0 0
    %563 = vmatmul.mubr.bf16.gmra.mxu0 %v417
    %v564 = vpop.f32.mrf.mxu0
    %v565 = vadd.f32 0.0, %v564
    %v566 = vpop.f32.mrf.mxu0
    %v567 = vadd.f32 0.0, %v566
    %v568 = vpop.f32.mrf.mxu0
    %v569 = vadd.f32 0.0, %v568
    %v570 = vpop.f32.mrf.mxu0
    %v571 = vadd.f32 0.0, %v570
    %572 = vmatprep.mubr.bf16.mxu0 0
    %573 = vmatmul.mubr.bf16.gmra.mxu0 %v425
    %v574 = vpop.f32.mrf.mxu0
    %v575 = vadd.f32 0.0, %v574
    %v576 = vpop.f32.mrf.mxu0
    %v577 = vadd.f32 0.0, %v576
    %v578 = vpop.f32.mrf.mxu0
    %v579 = vadd.f32 0.0, %v578
    %v580 = vpop.f32.mrf.mxu0
    %v581 = vadd.f32 0.0, %v580
    %582 = vmatprep.mubr.bf16.mxu0 0
    %583 = vmatmul.mubr.bf16.gmra.mxu0 %v433
    %v584 = vpop.f32.mrf.mxu0
    %v585 = vadd.f32 0.0, %v584
    %v586 = vpop.f32.mrf.mxu0
    %v587 = vadd.f32 0.0, %v586
    %v588 = vpop.f32.mrf.mxu0
    %v589 = vadd.f32 0.0, %v588
    %v590 = vpop.f32.mrf.mxu0
    %v591 = vadd.f32 0.0, %v590
    %592 = vmatprep.mubr.bf16.mxu0 0
    %593 = vmatmul.mubr.bf16.gmra.mxu0 %v441
    %v594 = vpop.f32.mrf.mxu0
    %v595 = vadd.f32 0.0, %v594
    %v596 = vpop.f32.mrf.mxu0
    %v597 = vadd.f32 0.0, %v596
    %v598 = vpop.f32.mrf.mxu0
    %v599 = vadd.f32 0.0, %v598
    %v600 = vpop.f32.mrf.mxu0
    %v601 = vadd.f32 0.0, %v600
    %602 = vmatprep.mubr.bf16.mxu0 0
    %603 = vmatmul.mubr.bf16.gmra.mxu0 %v444
    %v604 = vpop.f32.mrf.mxu0
    %v605 = vadd.f32 0.0, %v604
    %v606 = vpop.f32.mrf.mxu0
    %v607 = vadd.f32 0.0, %v606
    %v608 = vpop.f32.mrf.mxu0
    %v609 = vadd.f32 0.0, %v608
    %v610 = vpop.f32.mrf.mxu0
    %v611 = vadd.f32 0.0, %v610
    %612 = vdwg.mxu0
    %v629 = vunpack.c.l.b16 %v372
    %v630 = vunpack.c.h.b16 %v372
    %v631 = vunpack.c.l.b16 %v373
    %v632 = vunpack.c.h.b16 %v373
    %v633 = vunpack.c.l.b16 %v374
    %v634 = vunpack.c.h.b16 %v374
    %v635 = vunpack.c.l.b16 %v375
    %v636 = vunpack.c.h.b16 %v375
    %v637 = vunpack.c.l.b16 %v376
    %v638 = vunpack.c.h.b16 %v376
    %v639 = vunpack.c.l.b16 %v377
    %v640 = vunpack.c.h.b16 %v377
    %v641 = vunpack.c.l.b16 %v378
    %v642 = vunpack.c.h.b16 %v378
    %v643 = vunpack.c.l.b16 %v379
    %v644 = vunpack.c.h.b16 %v379
    %v645 = vunpack.c.l.b16 %v380
    %v646 = vunpack.c.h.b16 %v380
    %v647 = vunpack.c.l.b16 %v381
    %v648 = vunpack.c.h.b16 %v381
    %v649 = vunpack.c.l.b16 %v382
    %v650 = vunpack.c.h.b16 %v382
    %v651 = vunpack.c.l.b16 %v383
    %v652 = vunpack.c.h.b16 %v383
    %v653 = vunpack.c.l.b16 %v384
    %v654 = vunpack.c.h.b16 %v384
    %v655 = vunpack.c.l.b16 %v385
    %v656 = vunpack.c.h.b16 %v385
    %v657 = vunpack.c.l.b16 %v386
    %v658 = vunpack.c.h.b16 %v386
    %v659 = vunpack.c.l.b16 %v387
    %v660 = vunpack.c.h.b16 %v387
    %v661 = vpack.c.b16 %v631, %v629
    %v662 = vpack.c.b16 %v632, %v630
    %v663 = vpack.c.b16 %v635, %v633
    %v664 = vpack.c.b16 %v636, %v634
    %v665 = vpack.c.b16 %v639, %v637
    %v666 = vpack.c.b16 %v640, %v638
    %v667 = vpack.c.b16 %v643, %v641
    %v668 = vpack.c.b16 %v644, %v642
    %v669 = vpack.c.b16 %v647, %v645
    %v670 = vpack.c.b16 %v648, %v646
    %v671 = vpack.c.b16 %v651, %v649
    %v672 = vpack.c.b16 %v652, %v650
    %v673 = vpack.c.b16 %v655, %v653
    %v674 = vpack.c.b16 %v656, %v654
    %v675 = vpack.c.b16 %v659, %v657
    %v676 = vpack.c.b16 %v660, %v658
    %693 = vmatprep.subr.bf16.mxu0 %v676
    %694 = vmatpush1.bf16.msra.mxu0 %v675
    %695 = vmatprep.subr.bf16.mxu0 %v674
    %696 = vmatpush1.bf16.msra.mxu0 %v673
    %697 = vmatprep.subr.bf16.mxu0 %v672
    %698 = vmatpush1.bf16.msra.mxu0 %v671
    %699 = vmatprep.subr.bf16.mxu0 %v670
    %700 = vmatpush1.bf16.msra.mxu0 %v669
    %701 = vmatprep.subr.bf16.mxu0 %v668
    %702 = vmatpush1.bf16.msra.mxu0 %v667
    %703 = vmatprep.subr.bf16.mxu0 %v666
    %704 = vmatpush1.bf16.msra.mxu0 %v665
    %705 = vmatprep.subr.bf16.mxu0 %v664
    %706 = vmatpush1.bf16.msra.mxu0 %v663
    %707 = vmatprep.subr.bf16.mxu0 %v662
    %708 = vmatpush1.bf16.msra.mxu0 %v661
    %709 = vmatprep.subr.bf16.mxu0 0
    %710 = vmatpush2.bf16.msra.mxu0 0
    %711 = vmatprep.subr.bf16.mxu0 0
    %712 = vmatpush2.bf16.msra.mxu0 0
    %713 = vmatprep.subr.bf16.mxu0 0
    %714 = vmatpush2.bf16.msra.mxu0 0
    %715 = vmatprep.subr.bf16.mxu0 0
    %716 = vmatpush2.bf16.msra.mxu0 0
    %717 = vmatprep.subr.bf16.mxu0 0
    %718 = vmatpush2.bf16.msra.mxu0 0
    %719 = vmatprep.subr.bf16.mxu0 0
    %720 = vmatpush2.bf16.msra.mxu0 0
    %721 = vmatprep.subr.bf16.mxu0 0
    %722 = vmatpush2.bf16.msra.mxu0 0
    %723 = vmatprep.subr.bf16.mxu0 0
    %724 = vmatpush2.bf16.msra.mxu0 0
    %725 = vmatprep.mubr.bf16.mxu0 0
    %726 = vmatmul.mubr.bf16.gmra.mxu0 %v367
    %v727 = vpop.f32.mrf.mxu0
    %v728 = vadd.f32 %v565, %v727
    %v729 = vpop.f32.mrf.mxu0
    %v730 = vadd.f32 %v567, %v729
    %v731 = vpop.f32.mrf.mxu0
    %v732 = vadd.f32 %v569, %v731
    %v733 = vpop.f32.mrf.mxu0
    %v734 = vadd.f32 %v571, %v733
    %735 = vmatprep.mubr.bf16.mxu0 0
    %736 = vmatmul.mubr.bf16.gmra.mxu0 %v368
    %v737 = vpop.f32.mrf.mxu0
    %v738 = vadd.f32 %v575, %v737
    %v739 = vpop.f32.mrf.mxu0
    %v740 = vadd.f32 %v577, %v739
    %v741 = vpop.f32.mrf.mxu0
    %v742 = vadd.f32 %v579, %v741
    %v743 = vpop.f32.mrf.mxu0
    %v744 = vadd.f32 %v581, %v743
    %745 = vmatprep.mubr.bf16.mxu0 0
    %746 = vmatmul.mubr.bf16.gmra.mxu0 %v369
    %v747 = vpop.f32.mrf.mxu0
    %v748 = vadd.f32 %v585, %v747
    %v749 = vpop.f32.mrf.mxu0
    %v750 = vadd.f32 %v587, %v749
    %v751 = vpop.f32.mrf.mxu0
    %v752 = vadd.f32 %v589, %v751
    %v753 = vpop.f32.mrf.mxu0
    %v754 = vadd.f32 %v591, %v753
    %755 = vmatprep.mubr.bf16.mxu0 0
    %756 = vmatmul.mubr.bf16.gmra.mxu0 %v370
    %v757 = vpop.f32.mrf.mxu0
    %v758 = vadd.f32 %v595, %v757
    %v759 = vpop.f32.mrf.mxu0
    %v760 = vadd.f32 %v597, %v759
    %v761 = vpop.f32.mrf.mxu0
    %v762 = vadd.f32 %v599, %v761
    %v763 = vpop.f32.mrf.mxu0
    %v764 = vadd.f32 %v601, %v763
    %765 = vmatprep.mubr.bf16.mxu0 0
    %766 = vmatmul.mubr.bf16.gmra.mxu0 %v371
    %v767 = vpop.f32.mrf.mxu0
    %v768 = vadd.f32 %v605, %v767
    %v769 = vpop.f32.mrf.mxu0
    %v770 = vadd.f32 %v607, %v769
    %v771 = vpop.f32.mrf.mxu0
    %v772 = vadd.f32 %v609, %v771
    %v773 = vpop.f32.mrf.mxu0
    %v774 = vadd.f32 %v611, %v773
    %775 = vdwg.mxu0
    %s776 = scalar_lea.vmem %s1, 256
    %v777 = vld [vmem:[%s776] sm:$0xff]
    %v778 = vld [vmem:[%s776 + $0x8] sm:$0xff]
    %v779 = vld [vmem:[%s776 + $0x10] sm:$0xff]
    %v780 = vld [vmem:[%s776 + $0x18] sm:$0xff]
    %v781 = vld [vmem:[%s776 + $0x20] sm:$0xff]
    %v782 = vld [vmem:[%s776 + $0x28] sm:$0xff]
    %v783 = vld [vmem:[%s776 + $0x30] sm:$0xff]
    %v784 = vld [vmem:[%s776 + $0x38] sm:$0xff]
    %v785 = vld [vmem:[%s776 + $0x40] sm:$0xff]
    %v786 = vld [vmem:[%s776 + $0x48] sm:$0xff]
    %v787 = vld [vmem:[%s776 + $0x50] sm:$0xff]
    %v788 = vld [vmem:[%s776 + $0x58] sm:$0xff]
    %v789 = vld [vmem:[%s776 + $0x60] sm:$0xff]
    %v790 = vld [vmem:[%s776 + $0x68] sm:$0xff]
    %v791 = vld [vmem:[%s776 + $0x70] sm:$0xff]
    %v792 = vld [vmem:[%s776 + $0x78] sm:$0xff]
    %vm798 = vcmask 1046528
    %v799 = vrot.slane %v367, 1
    %v800 = vrot.slane %v368, 1
    %v801 = vsel %vm798, %v799, %v800
    %v802 = vrot.slane %v369, 1
    %v803 = vsel %vm798, %v800, %v802
    %v804 = vrot.slane %v370, 1
    %v805 = vsel %vm798, %v802, %v804
    %v806 = vrot.slane %v371, 1
    %v807 = vsel %vm798, %v804, %v806
    %v829 = vunpack.c.l.b16 %v777
    %v830 = vunpack.c.h.b16 %v777
    %v831 = vunpack.c.l.b16 %v778
    %v832 = vunpack.c.h.b16 %v778
    %v833 = vunpack.c.l.b16 %v779
    %v834 = vunpack.c.h.b16 %v779
    %v835 = vunpack.c.l.b16 %v780
    %v836 = vunpack.c.h.b16 %v780
    %v837 = vunpack.c.l.b16 %v781
    %v838 = vunpack.c.h.b16 %v781
    %v839 = vunpack.c.l.b16 %v782
    %v840 = vunpack.c.h.b16 %v782
    %v841 = vunpack.c.l.b16 %v783
    %v842 = vunpack.c.h.b16 %v783
    %v843 = vunpack.c.l.b16 %v784
    %v844 = vunpack.c.h.b16 %v784
    %v845 = vunpack.c.l.b16 %v785
    %v846 = vunpack.c.h.b16 %v785
    %v847 = vunpack.c.l.b16 %v786
    %v848 = vunpack.c.h.b16 %v786
    %v849 = vunpack.c.l.b16 %v787
    %v850 = vunpack.c.h.b16 %v787
    %v851 = vunpack.c.l.b16 %v788
    %v852 = vunpack.c.h.b16 %v788
    %v853 = vunpack.c.l.b16 %v789
    %v854 = vunpack.c.h.b16 %v789
    %v855 = vunpack.c.l.b16 %v790
    %v856 = vunpack.c.h.b16 %v790
    %v857 = vunpack.c.l.b16 %v791
    %v858 = vunpack.c.h.b16 %v791
    %v859 = vunpack.c.l.b16 %v792
    %v860 = vunpack.c.h.b16 %v792
    %v861 = vpack.c.b16 %v831, %v829
    %v862 = vpack.c.b16 %v832, %v830
    %v863 = vpack.c.b16 %v835, %v833
    %v864 = vpack.c.b16 %v836, %v834
    %v865 = vpack.c.b16 %v839, %v837
    %v866 = vpack.c.b16 %v840, %v838
    %v867 = vpack.c.b16 %v843, %v841
    %v868 = vpack.c.b16 %v844, %v842
    %v869 = vpack.c.b16 %v847, %v845
    %v870 = vpack.c.b16 %v848, %v846
    %v871 = vpack.c.b16 %v851, %v849
    %v872 = vpack.c.b16 %v852, %v850
    %v873 = vpack.c.b16 %v855, %v853
    %v874 = vpack.c.b16 %v856, %v854
    %v875 = vpack.c.b16 %v859, %v857
    %v876 = vpack.c.b16 %v860, %v858
    %893 = vmatprep.subr.bf16.mxu0 %v876
    %894 = vmatpush1.bf16.msra.mxu0 %v875
    %895 = vmatprep.subr.bf16.mxu0 %v874
    %896 = vmatpush1.bf16.msra.mxu0 %v873
    %897 = vmatprep.subr.bf16.mxu0 %v872
    %898 = vmatpush1.bf16.msra.mxu0 %v871
    %899 = vmatprep.subr.bf16.mxu0 %v870
    %900 = vmatpush1.bf16.msra.mxu0 %v869
    %901 = vmatprep.subr.bf16.mxu0 %v868
    %902 = vmatpush1.bf16.msra.mxu0 %v867
    %903 = vmatprep.subr.bf16.mxu0 %v866
    %904 = vmatpush1.bf16.msra.mxu0 %v865
    %905 = vmatprep.subr.bf16.mxu0 %v864
    %906 = vmatpush1.bf16.msra.mxu0 %v863
    %907 = vmatprep.subr.bf16.mxu0 %v862
    %908 = vmatpush1.bf16.msra.mxu0 %v861
    %909 = vmatprep.subr.bf16.mxu0 0
    %910 = vmatpush2.bf16.msra.mxu0 0
    %911 = vmatprep.subr.bf16.mxu0 0
    %912 = vmatpush2.bf16.msra.mxu0 0
    %913 = vmatprep.subr.bf16.mxu0 0
    %914 = vmatpush2.bf16.msra.mxu0 0
    %915 = vmatprep.subr.bf16.mxu0 0
    %916 = vmatpush2.bf16.msra.mxu0 0
    %917 = vmatprep.subr.bf16.mxu0 0
    %918 = vmatpush2.bf16.msra.mxu0 0
    %919 = vmatprep.subr.bf16.mxu0 0
    %920 = vmatpush2.bf16.msra.mxu0 0
    %921 = vmatprep.subr.bf16.mxu0 0
    %922 = vmatpush2.bf16.msra.mxu0 0
    %923 = vmatprep.subr.bf16.mxu0 0
    %924 = vmatpush2.bf16.msra.mxu0 0
    %925 = vmatprep.mubr.bf16.mxu0 0
    %926 = vmatmul.mubr.bf16.gmra.mxu0 %v801
    %v927 = vpop.f32.mrf.mxu0
    %v928 = vadd.f32 0.0, %v927
    %v929 = vpop.f32.mrf.mxu0
    %v930 = vadd.f32 0.0, %v929
    %v931 = vpop.f32.mrf.mxu0
    %v932 = vadd.f32 0.0, %v931
    %v933 = vpop.f32.mrf.mxu0
    %v934 = vadd.f32 0.0, %v933
    %935 = vmatprep.mubr.bf16.mxu0 0
    %936 = vmatmul.mubr.bf16.gmra.mxu0 %v803
    %v937 = vpop.f32.mrf.mxu0
    %v938 = vadd.f32 0.0, %v937
    %v939 = vpop.f32.mrf.mxu0
    %v940 = vadd.f32 0.0, %v939
    %v941 = vpop.f32.mrf.mxu0
    %v942 = vadd.f32 0.0, %v941
    %v943 = vpop.f32.mrf.mxu0
    %v944 = vadd.f32 0.0, %v943
    %945 = vmatprep.mubr.bf16.mxu0 0
    %946 = vmatmul.mubr.bf16.gmra.mxu0 %v805
    %v947 = vpop.f32.mrf.mxu0
    %v948 = vadd.f32 0.0, %v947
    %v949 = vpop.f32.mrf.mxu0
    %v950 = vadd.f32 0.0, %v949
    %v951 = vpop.f32.mrf.mxu0
    %v952 = vadd.f32 0.0, %v951
    %v953 = vpop.f32.mrf.mxu0
    %v954 = vadd.f32 0.0, %v953
    %955 = vmatprep.mubr.bf16.mxu0 0
    %956 = vmatmul.mubr.bf16.gmra.mxu0 %v807
    %v957 = vpop.f32.mrf.mxu0
    %v958 = vadd.f32 0.0, %v957
    %v959 = vpop.f32.mrf.mxu0
    %v960 = vadd.f32 0.0, %v959
    %v961 = vpop.f32.mrf.mxu0
    %v962 = vadd.f32 0.0, %v961
    %v963 = vpop.f32.mrf.mxu0
    %v964 = vadd.f32 0.0, %v963
    %965 = vmatprep.mubr.bf16.mxu0 0
    %966 = vmatmul.mubr.bf16.gmra.mxu0 %v806
    %v967 = vpop.f32.mrf.mxu0
    %v968 = vadd.f32 0.0, %v967
    %v969 = vpop.f32.mrf.mxu0
    %v970 = vadd.f32 0.0, %v969
    %v971 = vpop.f32.mrf.mxu0
    %v972 = vadd.f32 0.0, %v971
    %v973 = vpop.f32.mrf.mxu0
    %v974 = vadd.f32 0.0, %v973
    %975 = vdwg.mxu0
    %v976 = vadd.f32 %v728, %v928
    %v977 = vadd.f32 %v730, %v930
    %v978 = vadd.f32 %v732, %v932
    %v979 = vadd.f32 %v734, %v934
    %v980 = vadd.f32 %v738, %v938
    %v981 = vadd.f32 %v740, %v940
    %v982 = vadd.f32 %v742, %v942
    %v983 = vadd.f32 %v744, %v944
    %v984 = vadd.f32 %v748, %v948
    %v985 = vadd.f32 %v750, %v950
    %v986 = vadd.f32 %v752, %v952
    %v987 = vadd.f32 %v754, %v954
    %v988 = vadd.f32 %v758, %v958
    %v989 = vadd.f32 %v760, %v960
    %v990 = vadd.f32 %v762, %v962
    %v991 = vadd.f32 %v764, %v964
    %v992 = vadd.f32 %v768, %v968
    %v993 = vadd.f32 %v770, %v970
    %v994 = vadd.f32 %v772, %v972
    %v995 = vadd.f32 %v774, %v974
    %v996 = vmax.f32 %v976, %v977
    %v997 = vmax.f32 %v978, %v979
    %v998 = vmax.f32 %v980, %v981
    %v999 = vmax.f32 %v982, %v983
    %v1000 = vmax.f32 %v984, %v985
    %v1001 = vmax.f32 %v986, %v987
    %v1002 = vmax.f32 %v988, %v989
    %v1003 = vmax.f32 %v990, %v991
    %v1004 = vmax.f32 %v992, %v993
    %v1005 = vmax.f32 %v994, %v995
    %v1006 = vld [vmem:[%s2] sm:$0x1]
    %v1008 = vlaneseq
    %v1009 = vshrl.u32 %v1008, 7
    %v1010 = vsub.s32 0, %v1009
    %v1011 = vrot.slane %v1006, %v1010
    %v1013 = vadd.f32 %v996, %v1011
    %v1014 = vadd.f32 %v997, %v1011
    %v1015 = vadd.f32 %v998, %v1011
    %v1016 = vadd.f32 %v999, %v1011
    %v1017 = vadd.f32 %v1000, %v1011
    %v1018 = vadd.f32 %v1001, %v1011
    %v1019 = vadd.f32 %v1002, %v1011
    %v1020 = vadd.f32 %v1003, %v1011
    %v1021 = vadd.f32 %v1004, %v1011
    %v1022 = vadd.f32 %v1005, %v1011
    %v1023 = vmax.f32 %v1013, 0.0
    %v1024 = vmax.f32 %v1014, 0.0
    %v1025 = vmax.f32 %v1015, 0.0
    %v1026 = vmax.f32 %v1016, 0.0
    %v1027 = vmax.f32 %v1017, 0.0
    %v1028 = vmax.f32 %v1018, 0.0
    %v1029 = vmax.f32 %v1019, 0.0
    %v1030 = vmax.f32 %v1020, 0.0
    %v1031 = vmax.f32 %v1021, 0.0
    %v1032 = vmax.f32 %v1022, 0.0
    %v1033 = vpack.c.bf16 %v1024, %v1023
    %v1034 = vpack.c.bf16 %v1026, %v1025
    %v1035 = vpack.c.bf16 %v1028, %v1027
    %v1036 = vpack.c.bf16 %v1030, %v1029
    %v1037 = vpack.c.bf16 %v1032, %v1031
    %v1038 = vld [vmem:[#allocation3] sm:$0xf]
    %v1039 = vld [vmem:[#allocation3 + $0x4] sm:$0xf]
    %v1040 = vld [vmem:[#allocation3 + $0x8] sm:$0xf]
    %v1041 = vld [vmem:[#allocation3 + $0xc] sm:$0xf]
    %v1042 = vld [vmem:[#allocation3 + $0x10] sm:$0xf]
    %v1043 = vld [vmem:[#allocation3 + $0x14] sm:$0xf]
    %v1050 = vunpack.c.l.b16 %v1038
    %v1051 = vunpack.c.l.b16 %v1039
    %v1052 = vunpack.c.l.b16 %v1040
    %v1053 = vunpack.c.l.b16 %v1041
    %v1054 = vunpack.c.l.b16 %v1042
    %v1055 = vunpack.c.l.b16 %v1043
    %v1056 = vpack.c.b16 %v1051, %v1050
    %v1057 = vpack.c.b16 %v1053, %v1052
    %v1058 = vpack.c.b16 %v1055, %v1054
    %vm1059 = vcmask 637952
    %v1061 = vsel %vm1059, %v1056, 0
    %v1064 = vsel %vm1059, %v1057, 0
    %v1067 = vsel %vm1059, %v1058, 0
    %vm1069 = vcmask 1046528
    %v1071 = vsel %vm1069, %v1037, 0
    %1073 = vmatprep.subr.bf16.mxu0 0
    %1074 = vmatpush1.bf16.msra.mxu0 0
    %1075 = vmatprep.subr.bf16.mxu0 0
    %1076 = vmatpush1.bf16.msra.mxu0 0
    %1077 = vmatprep.subr.bf16.mxu0 0
    %1078 = vmatpush1.bf16.msra.mxu0 0
    %1079 = vmatprep.subr.bf16.mxu0 0
    %1080 = vmatpush1.bf16.msra.mxu0 %v1071
    %1081 = vmatprep.subr.bf16.mxu0 0
    %1082 = vmatpush1.bf16.msra.mxu0 %v1036
    %1083 = vmatprep.subr.bf16.mxu0 0
    %1084 = vmatpush1.bf16.msra.mxu0 %v1035
    %1085 = vmatprep.subr.bf16.mxu0 0
    %1086 = vmatpush1.bf16.msra.mxu0 %v1034
    %1087 = vmatprep.subr.bf16.mxu0 0
    %1088 = vmatpush1.bf16.msra.mxu0 %v1033
    %1089 = vmatprep.subr.bf16.mxu0 0
    %1090 = vmatpush2.bf16.msra.mxu0 0
    %1091 = vmatprep.subr.bf16.mxu0 0
    %1092 = vmatpush2.bf16.msra.mxu0 0
    %1093 = vmatprep.subr.bf16.mxu0 0
    %1094 = vmatpush2.bf16.msra.mxu0 0
    %1095 = vmatprep.subr.bf16.mxu0 0
    %1096 = vmatpush2.bf16.msra.mxu0 0
    %1097 = vmatprep.subr.bf16.mxu0 0
    %1098 = vmatpush2.bf16.msra.mxu0 0
    %1099 = vmatprep.subr.bf16.mxu0 0
    %1100 = vmatpush2.bf16.msra.mxu0 0
    %1101 = vmatprep.subr.bf16.mxu0 0
    %1102 = vmatpush2.bf16.msra.mxu0 0
    %1103 = vmatprep.subr.bf16.mxu0 0
    %1104 = vmatpush2.bf16.msra.mxu0 0
    %1105 = vmatprep.mubr.bf16.mxu0 0
    %1106 = vmatmul.mubr.bf16.gmra.mxu0 %v1061
    %v1107 = vpop.f32.mrf.mxu0
    %v1108 = vadd.f32 0.0, %v1107
    %v1109 = vpop.f32.mrf.mxu0
    %v1110 = vpop.f32.mrf.mxu0
    %v1111 = vadd.f32 0.0, %v1110
    %v1112 = vpop.f32.mrf.mxu0
    %1113 = vmatprep.mubr.bf16.mxu0 0
    %1114 = vmatmul.mubr.bf16.gmra.mxu0 %v1064
    %v1115 = vpop.f32.mrf.mxu0
    %v1116 = vadd.f32 0.0, %v1115
    %v1117 = vpop.f32.mrf.mxu0
    %v1118 = vpop.f32.mrf.mxu0
    %v1119 = vadd.f32 0.0, %v1118
    %v1120 = vpop.f32.mrf.mxu0
    %1121 = vmatprep.mubr.bf16.mxu0 0
    %1122 = vmatmul.mubr.bf16.gmra.mxu0 %v1067
    %v1123 = vpop.f32.mrf.mxu0
    %v1124 = vadd.f32 0.0, %v1123
    %v1125 = vpop.f32.mrf.mxu0
    %v1126 = vpop.f32.mrf.mxu0
    %v1127 = vadd.f32 0.0, %v1126
    %v1128 = vpop.f32.mrf.mxu0
    %1129 = vdwg.mxu0
    %v1130 = vld [vmem:[#allocation5] sm:$0xf]
    %v1131 = vld [vmem:[#allocation5 + $0x4] sm:$0xf]
    %v1132 = vld [vmem:[#allocation5 + $0x8] sm:$0xf]
    %v1133 = vld [vmem:[#allocation5 + $0xc] sm:$0xf]
    %v1134 = vld [vmem:[#allocation5 + $0x10] sm:$0xf]
    %v1135 = vld [vmem:[#allocation5 + $0x14] sm:$0xf]
    %v1142 = vunpack.c.l.b16 %v1130
    %v1143 = vunpack.c.l.b16 %v1131
    %v1144 = vunpack.c.l.b16 %v1132
    %v1145 = vunpack.c.l.b16 %v1133
    %v1146 = vunpack.c.l.b16 %v1134
    %v1147 = vunpack.c.l.b16 %v1135
    %v1148 = vpack.c.b16 %v1143, %v1142
    %v1149 = vpack.c.b16 %v1145, %v1144
    %v1150 = vpack.c.b16 %v1147, %v1146
    %v1152 = vsel %vm1059, %v1148, 0
    %v1155 = vsel %vm1059, %v1149, 0
    %v1158 = vsel %vm1059, %v1150, 0
    %1160 = vmatprep.subr.bf16.mxu0 0
    %1161 = vmatpush1.bf16.msra.mxu0 0
    %1162 = vmatprep.subr.bf16.mxu0 0
    %1163 = vmatpush1.bf16.msra.mxu0 0
    %1164 = vmatprep.subr.bf16.mxu0 0
    %1165 = vmatpush1.bf16.msra.mxu0 0
    %1166 = vmatprep.subr.bf16.mxu0 0
    %1167 = vmatpush1.bf16.msra.mxu0 %v1071
    %1168 = vmatprep.subr.bf16.mxu0 0
    %1169 = vmatpush1.bf16.msra.mxu0 %v1036
    %1170 = vmatprep.subr.bf16.mxu0 0
    %1171 = vmatpush1.bf16.msra.mxu0 %v1035
    %1172 = vmatprep.subr.bf16.mxu0 0
    %1173 = vmatpush1.bf16.msra.mxu0 %v1034
    %1174 = vmatprep.subr.bf16.mxu0 0
    %1175 = vmatpush1.bf16.msra.mxu0 %v1033
    %1176 = vmatprep.subr.bf16.mxu0 0
    %1177 = vmatpush2.bf16.msra.mxu0 0
    %1178 = vmatprep.subr.bf16.mxu0 0
    %1179 = vmatpush2.bf16.msra.mxu0 0
    %1180 = vmatprep.subr.bf16.mxu0 0
    %1181 = vmatpush2.bf16.msra.mxu0 0
    %1182 = vmatprep.subr.bf16.mxu0 0
    %1183 = vmatpush2.bf16.msra.mxu0 0
    %1184 = vmatprep.subr.bf16.mxu0 0
    %1185 = vmatpush2.bf16.msra.mxu0 0
    %1186 = vmatprep.subr.bf16.mxu0 0
    %1187 = vmatpush2.bf16.msra.mxu0 0
    %1188 = vmatprep.subr.bf16.mxu0 0
    %1189 = vmatpush2.bf16.msra.mxu0 0
    %1190 = vmatprep.subr.bf16.mxu0 0
    %1191 = vmatpush2.bf16.msra.mxu0 0
    %1192 = vmatprep.mubr.bf16.mxu0 0
    %1193 = vmatmul.mubr.bf16.gmra.mxu0 %v1152
    %v1194 = vpop.f32.mrf.mxu0
    %v1195 = vadd.f32 0.0, %v1194
    %v1196 = vpop.f32.mrf.mxu0
    %v1197 = vpop.f32.mrf.mxu0
    %v1198 = vadd.f32 0.0, %v1197
    %v1199 = vpop.f32.mrf.mxu0
    %1200 = vmatprep.mubr.bf16.mxu0 0
    %1201 = vmatmul.mubr.bf16.gmra.mxu0 %v1155
    %v1202 = vpop.f32.mrf.mxu0
    %v1203 = vadd.f32 0.0, %v1202
    %v1204 = vpop.f32.mrf.mxu0
    %v1205 = vpop.f32.mrf.mxu0
    %v1206 = vadd.f32 0.0, %v1205
    %v1207 = vpop.f32.mrf.mxu0
    %1208 = vmatprep.mubr.bf16.mxu0 0
    %1209 = vmatmul.mubr.bf16.gmra.mxu0 %v1158
    %v1210 = vpop.f32.mrf.mxu0
    %v1211 = vadd.f32 0.0, %v1210
    %v1212 = vpop.f32.mrf.mxu0
    %v1213 = vpop.f32.mrf.mxu0
    %v1214 = vadd.f32 0.0, %v1213
    %v1215 = vpop.f32.mrf.mxu0
    %1216 = vdwg.mxu0
    %v1217 = vmax.f32 %v1108, %v1195
    %v1218 = vmax.f32 %v1111, %v1198
    %v1219 = vmax.f32 %v1116, %v1203
    %v1220 = vmax.f32 %v1119, %v1206
    %v1221 = vmax.f32 %v1124, %v1211
    %v1222 = vmax.f32 %v1127, %v1214
    %v1223 = vpack.c.bf16 %v1218, %v1217
    %v1224 = vpack.c.bf16 %v1220, %v1219
    %v1225 = vpack.c.bf16 %v1222, %v1221
    %v1226 = vld [vmem:[#allocation7] sm:$0xff]
    %v1227 = vld [vmem:[#allocation7 + $0x8] sm:$0xff]
    %v1228 = vld [vmem:[#allocation7 + $0x10] sm:$0xff]
    %v1229 = vld [vmem:[#allocation7 + $0x18] sm:$0xff]
    %v1230 = vld [vmem:[#allocation7 + $0x20] sm:$0xff]
    %v1231 = vld [vmem:[#allocation7 + $0x28] sm:$0xff]
    %v1232 = vld [vmem:[#allocation7 + $0x30] sm:$0xff]
    %v1233 = vld [vmem:[#allocation7 + $0x38] sm:$0xff]
    %v1234 = vld [vmem:[#allocation7 + $0x40] sm:$0xff]
    %v1235 = vld [vmem:[#allocation7 + $0x48] sm:$0xff]
    %v1236 = vld [vmem:[#allocation7 + $0x50] sm:$0xff]
    %v1237 = vld [vmem:[#allocation7 + $0x58] sm:$0xff]
    %v1238 = vld [vmem:[#allocation7 + $0x60] sm:$0xff]
    %v1239 = vld [vmem:[#allocation7 + $0x68] sm:$0xff]
    %v1240 = vld [vmem:[#allocation7 + $0x70] sm:$0xff]
    %v1241 = vld [vmem:[#allocation7 + $0x78] sm:$0xff]
    %s1242 = scalar_lea.vmem [#allocation7], 128
    %v1243 = vld [vmem:[%s1242] sm:$0xff]
    %v1244 = vld [vmem:[%s1242 + $0x8] sm:$0xff]
    %v1245 = vld [vmem:[%s1242 + $0x10] sm:$0xff]
    %v1246 = vld [vmem:[%s1242 + $0x18] sm:$0xff]
    %v1247 = vld [vmem:[%s1242 + $0x20] sm:$0xff]
    %v1248 = vld [vmem:[%s1242 + $0x28] sm:$0xff]
    %v1249 = vld [vmem:[%s1242 + $0x30] sm:$0xff]
    %v1250 = vld [vmem:[%s1242 + $0x38] sm:$0xff]
    %v1251 = vld [vmem:[%s1242 + $0x40] sm:$0xff]
    %v1252 = vld [vmem:[%s1242 + $0x48] sm:$0xff]
    %v1253 = vld [vmem:[%s1242 + $0x50] sm:$0xff]
    %v1254 = vld [vmem:[%s1242 + $0x58] sm:$0xff]
    %v1255 = vld [vmem:[%s1242 + $0x60] sm:$0xff]
    %v1256 = vld [vmem:[%s1242 + $0x68] sm:$0xff]
    %v1257 = vld [vmem:[%s1242 + $0x70] sm:$0xff]
    %v1258 = vld [vmem:[%s1242 + $0x78] sm:$0xff]
    %v1260 = vshrl.u32 %v1223, 16
    %v1262 = vshll.u32 %v1223, 16
    %v1264 = vrot.slane %v1262, 1
    %v1265 = vor.u32 %v1260, %v1264
    %v1267 = vshll.u32 %v1224, 16
    %v1269 = vrot.slane %v1267, 1
    %v1270 = vsel %vm405, %v1265, %v1269
    %v1271 = vshrl.u32 %v1224, 16
    %v1273 = vor.u32 %v1271, %v1269
    %v1275 = vshll.u32 %v1225, 16
    %v1277 = vrot.slane %v1275, 1
    %v1278 = vsel %vm405, %v1273, %v1277
    %v1279 = vshrl.u32 %v1225, 16
    %v1281 = vor.u32 %v1279, %v1277
    %v1301 = vunpack.c.l.b16 %v1243
    %v1302 = vunpack.c.h.b16 %v1243
    %v1303 = vunpack.c.l.b16 %v1244
    %v1304 = vunpack.c.h.b16 %v1244
    %v1305 = vunpack.c.l.b16 %v1245
    %v1306 = vunpack.c.h.b16 %v1245
    %v1307 = vunpack.c.l.b16 %v1246
    %v1308 = vunpack.c.h.b16 %v1246
    %v1309 = vunpack.c.l.b16 %v1247
    %v1310 = vunpack.c.h.b16 %v1247
    %v1311 = vunpack.c.l.b16 %v1248
    %v1312 = vunpack.c.h.b16 %v1248
    %v1313 = vunpack.c.l.b16 %v1249
    %v1314 = vunpack.c.h.b16 %v1249
    %v1315 = vunpack.c.l.b16 %v1250
    %v1316 = vunpack.c.h.b16 %v1250
    %v1317 = vunpack.c.l.b16 %v1251
    %v1318 = vunpack.c.h.b16 %v1251
    %v1319 = vunpack.c.l.b16 %v1252
    %v1320 = vunpack.c.h.b16 %v1252
    %v1321 = vunpack.c.l.b16 %v1253
    %v1322 = vunpack.c.h.b16 %v1253
    %v1323 = vunpack.c.l.b16 %v1254
    %v1324 = vunpack.c.h.b16 %v1254
    %v1325 = vunpack.c.l.b16 %v1255
    %v1326 = vunpack.c.h.b16 %v1255
    %v1327 = vunpack.c.l.b16 %v1256
    %v1328 = vunpack.c.h.b16 %v1256
    %v1329 = vunpack.c.l.b16 %v1257
    %v1330 = vunpack.c.h.b16 %v1257
    %v1331 = vunpack.c.l.b16 %v1258
    %v1332 = vunpack.c.h.b16 %v1258
    %v1333 = vpack.c.b16 %v1303, %v1301
    %v1334 = vpack.c.b16 %v1304, %v1302
    %v1335 = vpack.c.b16 %v1307, %v1305
    %v1336 = vpack.c.b16 %v1308, %v1306
    %v1337 = vpack.c.b16 %v1311, %v1309
    %v1338 = vpack.c.b16 %v1312, %v1310
    %v1339 = vpack.c.b16 %v1315, %v1313
    %v1340 = vpack.c.b16 %v1316, %v1314
    %v1341 = vpack.c.b16 %v1319, %v1317
    %v1342 = vpack.c.b16 %v1320, %v1318
    %v1343 = vpack.c.b16 %v1323, %v1321
    %v1344 = vpack.c.b16 %v1324, %v1322
    %v1345 = vpack.c.b16 %v1327, %v1325
    %v1346 = vpack.c.b16 %v1328, %v1326
    %v1347 = vpack.c.b16 %v1331, %v1329
    %v1348 = vpack.c.b16 %v1332, %v1330
    %1365 = vmatprep.subr.bf16.mxu0 %v1348
    %1366 = vmatpush1.bf16.msra.mxu0 %v1347
    %1367 = vmatprep.subr.bf16.mxu0 %v1346
    %1368 = vmatpush1.bf16.msra.mxu0 %v1345
    %1369 = vmatprep.subr.bf16.mxu0 %v1344
    %1370 = vmatpush1.bf16.msra.mxu0 %v1343
    %1371 = vmatprep.subr.bf16.mxu0 %v1342
    %1372 = vmatpush1.bf16.msra.mxu0 %v1341
    %1373 = vmatprep.subr.bf16.mxu0 %v1340
    %1374 = vmatpush1.bf16.msra.mxu0 %v1339
    %1375 = vmatprep.subr.bf16.mxu0 %v1338
    %1376 = vmatpush1.bf16.msra.mxu0 %v1337
    %1377 = vmatprep.subr.bf16.mxu0 %v1336
    %1378 = vmatpush1.bf16.msra.mxu0 %v1335
    %1379 = vmatprep.subr.bf16.mxu0 %v1334
    %1380 = vmatpush1.bf16.msra.mxu0 %v1333
    %1381 = vmatprep.subr.bf16.mxu0 0
    %1382 = vmatpush2.bf16.msra.mxu0 0
    %1383 = vmatprep.subr.bf16.mxu0 0
    %1384 = vmatpush2.bf16.msra.mxu0 0
    %1385 = vmatprep.subr.bf16.mxu0 0
    %1386 = vmatpush2.bf16.msra.mxu0 0
    %1387 = vmatprep.subr.bf16.mxu0 0
    %1388 = vmatpush2.bf16.msra.mxu0 0
    %1389 = vmatprep.subr.bf16.mxu0 0
    %1390 = vmatpush2.bf16.msra.mxu0 0
    %1391 = vmatprep.subr.bf16.mxu0 0
    %1392 = vmatpush2.bf16.msra.mxu0 0
    %1393 = vmatprep.subr.bf16.mxu0 0
    %1394 = vmatpush2.bf16.msra.mxu0 0
    %1395 = vmatprep.subr.bf16.mxu0 0
    %1396 = vmatpush2.bf16.msra.mxu0 0
    %1397 = vmatprep.mubr.bf16.mxu0 0
    %1398 = vmatmul.mubr.bf16.gmra.mxu0 %v1270
    %v1399 = vpop.f32.mrf.mxu0
    %v1400 = vadd.f32 0.0, %v1399
    %v1401 = vpop.f32.mrf.mxu0
    %v1402 = vadd.f32 0.0, %v1401
    %v1403 = vpop.f32.mrf.mxu0
    %v1404 = vadd.f32 0.0, %v1403
    %v1405 = vpop.f32.mrf.mxu0
    %v1406 = vadd.f32 0.0, %v1405
    %1407 = vmatprep.mubr.bf16.mxu0 0
    %1408 = vmatmul.mubr.bf16.gmra.mxu0 %v1278
    %v1409 = vpop.f32.mrf.mxu0
    %v1410 = vadd.f32 0.0, %v1409
    %v1411 = vpop.f32.mrf.mxu0
    %v1412 = vadd.f32 0.0, %v1411
    %v1413 = vpop.f32.mrf.mxu0
    %v1414 = vadd.f32 0.0, %v1413
    %v1415 = vpop.f32.mrf.mxu0
    %v1416 = vadd.f32 0.0, %v1415
    %1417 = vmatprep.mubr.bf16.mxu0 0
    %1418 = vmatmul.mubr.bf16.gmra.mxu0 %v1281
    %v1419 = vpop.f32.mrf.mxu0
    %v1420 = vadd.f32 0.0, %v1419
    %v1421 = vpop.f32.mrf.mxu0
    %v1422 = vadd.f32 0.0, %v1421
    %v1423 = vpop.f32.mrf.mxu0
    %v1424 = vadd.f32 0.0, %v1423
    %v1425 = vpop.f32.mrf.mxu0
    %v1426 = vadd.f32 0.0, %v1425
    %1427 = vdwg.mxu0
    %v1444 = vunpack.c.l.b16 %v1226
    %v1445 = vunpack.c.h.b16 %v1226
    %v1446 = vunpack.c.l.b16 %v1227
    %v1447 = vunpack.c.h.b16 %v1227
    %v1448 = vunpack.c.l.b16 %v1228
    %v1449 = vunpack.c.h.b16 %v1228
    %v1450 = vunpack.c.l.b16 %v1229
    %v1451 = vunpack.c.h.b16 %v1229
    %v1452 = vunpack.c.l.b16 %v1230
    %v1453 = vunpack.c.h.b16 %v1230
    %v1454 = vunpack.c.l.b16 %v1231
    %v1455 = vunpack.c.h.b16 %v1231
    %v1456 = vunpack.c.l.b16 %v1232
    %v1457 = vunpack.c.h.b16 %v1232
    %v1458 = vunpack.c.l.b16 %v1233
    %v1459 = vunpack.c.h.b16 %v1233
    %v1460 = vunpack.c.l.b16 %v1234
    %v1461 = vunpack.c.h.b16 %v1234
    %v1462 = vunpack.c.l.b16 %v1235
    %v1463 = vunpack.c.h.b16 %v1235
    %v1464 = vunpack.c.l.b16 %v1236
    %v1465 = vunpack.c.h.b16 %v1236
    %v1466 = vunpack.c.l.b16 %v1237
    %v1467 = vunpack.c.h.b16 %v1237
    %v1468 = vunpack.c.l.b16 %v1238
    %v1469 = vunpack.c.h.b16 %v1238
    %v1470 = vunpack.c.l.b16 %v1239
    %v1471 = vunpack.c.h.b16 %v1239
    %v1472 = vunpack.c.l.b16 %v1240
    %v1473 = vunpack.c.h.b16 %v1240
    %v1474 = vunpack.c.l.b16 %v1241
    %v1475 = vunpack.c.h.b16 %v1241
    %v1476 = vpack.c.b16 %v1446, %v1444
    %v1477 = vpack.c.b16 %v1447, %v1445
    %v1478 = vpack.c.b16 %v1450, %v1448
    %v1479 = vpack.c.b16 %v1451, %v1449
    %v1480 = vpack.c.b16 %v1454, %v1452
    %v1481 = vpack.c.b16 %v1455, %v1453
    %v1482 = vpack.c.b16 %v1458, %v1456
    %v1483 = vpack.c.b16 %v1459, %v1457
    %v1484 = vpack.c.b16 %v1462, %v1460
    %v1485 = vpack.c.b16 %v1463, %v1461
    %v1486 = vpack.c.b16 %v1466, %v1464
    %v1487 = vpack.c.b16 %v1467, %v1465
    %v1488 = vpack.c.b16 %v1470, %v1468
    %v1489 = vpack.c.b16 %v1471, %v1469
    %v1490 = vpack.c.b16 %v1474, %v1472
    %v1491 = vpack.c.b16 %v1475, %v1473
    %1508 = vmatprep.subr.bf16.mxu0 %v1491
    %1509 = vmatpush1.bf16.msra.mxu0 %v1490
    %1510 = vmatprep.subr.bf16.mxu0 %v1489
    %1511 = vmatpush1.bf16.msra.mxu0 %v1488
    %1512 = vmatprep.subr.bf16.mxu0 %v1487
    %1513 = vmatpush1.bf16.msra.mxu0 %v1486
    %1514 = vmatprep.subr.bf16.mxu0 %v1485
    %1515 = vmatpush1.bf16.msra.mxu0 %v1484
    %1516 = vmatprep.subr.bf16.mxu0 %v1483
    %1517 = vmatpush1.bf16.msra.mxu0 %v1482
    %1518 = vmatprep.subr.bf16.mxu0 %v1481
    %1519 = vmatpush1.bf16.msra.mxu0 %v1480
    %1520 = vmatprep.subr.bf16.mxu0 %v1479
    %1521 = vmatpush1.bf16.msra.mxu0 %v1478
    %1522 = vmatprep.subr.bf16.mxu0 %v1477
    %1523 = vmatpush1.bf16.msra.mxu0 %v1476
    %1524 = vmatprep.subr.bf16.mxu0 0
    %1525 = vmatpush2.bf16.msra.mxu0 0
    %1526 = vmatprep.subr.bf16.mxu0 0
    %1527 = vmatpush2.bf16.msra.mxu0 0
    %1528 = vmatprep.subr.bf16.mxu0 0
    %1529 = vmatpush2.bf16.msra.mxu0 0
    %1530 = vmatprep.subr.bf16.mxu0 0
    %1531 = vmatpush2.bf16.msra.mxu0 0
    %1532 = vmatprep.subr.bf16.mxu0 0
    %1533 = vmatpush2.bf16.msra.mxu0 0
    %1534 = vmatprep.subr.bf16.mxu0 0
    %1535 = vmatpush2.bf16.msra.mxu0 0
    %1536 = vmatprep.subr.bf16.mxu0 0
    %1537 = vmatpush2.bf16.msra.mxu0 0
    %1538 = vmatprep.subr.bf16.mxu0 0
    %1539 = vmatpush2.bf16.msra.mxu0 0
    %1540 = vmatprep.mubr.bf16.mxu0 0
    %1541 = vmatmul.mubr.bf16.gmra.mxu0 %v1223
    %v1542 = vpop.f32.mrf.mxu0
    %v1543 = vadd.f32 %v1400, %v1542
    %v1544 = vpop.f32.mrf.mxu0
    %v1545 = vadd.f32 %v1402, %v1544
    %v1546 = vpop.f32.mrf.mxu0
    %v1547 = vadd.f32 %v1404, %v1546
    %v1548 = vpop.f32.mrf.mxu0
    %v1549 = vadd.f32 %v1406, %v1548
    %1550 = vmatprep.mubr.bf16.mxu0 0
    %1551 = vmatmul.mubr.bf16.gmra.mxu0 %v1224
    %v1552 = vpop.f32.mrf.mxu0
    %v1553 = vadd.f32 %v1410, %v1552
    %v1554 = vpop.f32.mrf.mxu0
    %v1555 = vadd.f32 %v1412, %v1554
    %v1556 = vpop.f32.mrf.mxu0
    %v1557 = vadd.f32 %v1414, %v1556
    %v1558 = vpop.f32.mrf.mxu0
    %v1559 = vadd.f32 %v1416, %v1558
    %1560 = vmatprep.mubr.bf16.mxu0 0
    %1561 = vmatmul.mubr.bf16.gmra.mxu0 %v1225
    %v1562 = vpop.f32.mrf.mxu0
    %v1563 = vadd.f32 %v1420, %v1562
    %v1564 = vpop.f32.mrf.mxu0
    %v1565 = vadd.f32 %v1422, %v1564
    %v1566 = vpop.f32.mrf.mxu0
    %v1567 = vadd.f32 %v1424, %v1566
    %v1568 = vpop.f32.mrf.mxu0
    %v1569 = vadd.f32 %v1426, %v1568
    %1570 = vdwg.mxu0
    %s1571 = scalar_lea.vmem [#allocation7], 256
    %v1572 = vld [vmem:[%s1571] sm:$0xff]
    %v1573 = vld [vmem:[%s1571 + $0x8] sm:$0xff]
    %v1574 = vld [vmem:[%s1571 + $0x10] sm:$0xff]
    %v1575 = vld [vmem:[%s1571 + $0x18] sm:$0xff]
    %v1576 = vld [vmem:[%s1571 + $0x20] sm:$0xff]
    %v1577 = vld [vmem:[%s1571 + $0x28] sm:$0xff]
    %v1578 = vld [vmem:[%s1571 + $0x30] sm:$0xff]
    %v1579 = vld [vmem:[%s1571 + $0x38] sm:$0xff]
    %v1580 = vld [vmem:[%s1571 + $0x40] sm:$0xff]
    %v1581 = vld [vmem:[%s1571 + $0x48] sm:$0xff]
    %v1582 = vld [vmem:[%s1571 + $0x50] sm:$0xff]
    %v1583 = vld [vmem:[%s1571 + $0x58] sm:$0xff]
    %v1584 = vld [vmem:[%s1571 + $0x60] sm:$0xff]
    %v1585 = vld [vmem:[%s1571 + $0x68] sm:$0xff]
    %v1586 = vld [vmem:[%s1571 + $0x70] sm:$0xff]
    %v1587 = vld [vmem:[%s1571 + $0x78] sm:$0xff]
    %v1591 = vrot.slane %v1223, 1
    %v1592 = vrot.slane %v1224, 1
    %v1593 = vsel %vm798, %v1591, %v1592
    %v1594 = vrot.slane %v1225, 1
    %v1595 = vsel %vm798, %v1592, %v1594
    %v1615 = vunpack.c.l.b16 %v1572
    %v1616 = vunpack.c.h.b16 %v1572
    %v1617 = vunpack.c.l.b16 %v1573
    %v1618 = vunpack.c.h.b16 %v1573
    %v1619 = vunpack.c.l.b16 %v1574
    %v1620 = vunpack.c.h.b16 %v1574
    %v1621 = vunpack.c.l.b16 %v1575
    %v1622 = vunpack.c.h.b16 %v1575
    %v1623 = vunpack.c.l.b16 %v1576
    %v1624 = vunpack.c.h.b16 %v1576
    %v1625 = vunpack.c.l.b16 %v1577
    %v1626 = vunpack.c.h.b16 %v1577
    %v1627 = vunpack.c.l.b16 %v1578
    %v1628 = vunpack.c.h.b16 %v1578
    %v1629 = vunpack.c.l.b16 %v1579
    %v1630 = vunpack.c.h.b16 %v1579
    %v1631 = vunpack.c.l.b16 %v1580
    %v1632 = vunpack.c.h.b16 %v1580
    %v1633 = vunpack.c.l.b16 %v1581
    %v1634 = vunpack.c.h.b16 %v1581
    %v1635 = vunpack.c.l.b16 %v1582
    %v1636 = vunpack.c.h.b16 %v1582
    %v1637 = vunpack.c.l.b16 %v1583
    %v1638 = vunpack.c.h.b16 %v1583
    %v1639 = vunpack.c.l.b16 %v1584
    %v1640 = vunpack.c.h.b16 %v1584
    %v1641 = vunpack.c.l.b16 %v1585
    %v1642 = vunpack.c.h.b16 %v1585
    %v1643 = vunpack.c.l.b16 %v1586
    %v1644 = vunpack.c.h.b16 %v1586
    %v1645 = vunpack.c.l.b16 %v1587
    %v1646 = vunpack.c.h.b16 %v1587
    %v1647 = vpack.c.b16 %v1617, %v1615
    %v1648 = vpack.c.b16 %v1618, %v1616
    %v1649 = vpack.c.b16 %v1621, %v1619
    %v1650 = vpack.c.b16 %v1622, %v1620
    %v1651 = vpack.c.b16 %v1625, %v1623
    %v1652 = vpack.c.b16 %v1626, %v1624
    %v1653 = vpack.c.b16 %v1629, %v1627
    %v1654 = vpack.c.b16 %v1630, %v1628
    %v1655 = vpack.c.b16 %v1633, %v1631
    %v1656 = vpack.c.b16 %v1634, %v1632
    %v1657 = vpack.c.b16 %v1637, %v1635
    %v1658 = vpack.c.b16 %v1638, %v1636
    %v1659 = vpack.c.b16 %v1641, %v1639
    %v1660 = vpack.c.b16 %v1642, %v1640
    %v1661 = vpack.c.b16 %v1645, %v1643
    %v1662 = vpack.c.b16 %v1646, %v1644
    %1679 = vmatprep.subr.bf16.mxu0 %v1662
    %1680 = vmatpush1.bf16.msra.mxu0 %v1661
    %1681 = vmatprep.subr.bf16.mxu0 %v1660
    %1682 = vmatpush1.bf16.msra.mxu0 %v1659
    %1683 = vmatprep.subr.bf16.mxu0 %v1658
    %1684 = vmatpush1.bf16.msra.mxu0 %v1657
    %1685 = vmatprep.subr.bf16.mxu0 %v1656
    %1686 = vmatpush1.bf16.msra.mxu0 %v1655
    %1687 = vmatprep.subr.bf16.mxu0 %v1654
    %1688 = vmatpush1.bf16.msra.mxu0 %v1653
    %1689 = vmatprep.subr.bf16.mxu0 %v1652
    %1690 = vmatpush1.bf16.msra.mxu0 %v1651
    %1691 = vmatprep.subr.bf16.mxu0 %v1650
    %1692 = vmatpush1.bf16.msra.mxu0 %v1649
    %1693 = vmatprep.subr.bf16.mxu0 %v1648
    %1694 = vmatpush1.bf16.msra.mxu0 %v1647
    %1695 = vmatprep.subr.bf16.mxu0 0
    %1696 = vmatpush2.bf16.msra.mxu0 0
    %1697 = vmatprep.subr.bf16.mxu0 0
    %1698 = vmatpush2.bf16.msra.mxu0 0
    %1699 = vmatprep.subr.bf16.mxu0 0
    %1700 = vmatpush2.bf16.msra.mxu0 0
    %1701 = vmatprep.subr.bf16.mxu0 0
    %1702 = vmatpush2.bf16.msra.mxu0 0
    %1703 = vmatprep.subr.bf16.mxu0 0
    %1704 = vmatpush2.bf16.msra.mxu0 0
    %1705 = vmatprep.subr.bf16.mxu0 0
    %1706 = vmatpush2.bf16.msra.mxu0 0
    %1707 = vmatprep.subr.bf16.mxu0 0
    %1708 = vmatpush2.bf16.msra.mxu0 0
    %1709 = vmatprep.subr.bf16.mxu0 0
    %1710 = vmatpush2.bf16.msra.mxu0 0
    %1711 = vmatprep.mubr.bf16.mxu0 0
    %1712 = vmatmul.mubr.bf16.gmra.mxu0 %v1593
    %v1713 = vpop.f32.mrf.mxu0
    %v1714 = vadd.f32 0.0, %v1713
    %v1715 = vpop.f32.mrf.mxu0
    %v1716 = vadd.f32 0.0, %v1715
    %v1717 = vpop.f32.mrf.mxu0
    %v1718 = vadd.f32 0.0, %v1717
    %v1719 = vpop.f32.mrf.mxu0
    %v1720 = vadd.f32 0.0, %v1719
    %1721 = vmatprep.mubr.bf16.mxu0 0
    %1722 = vmatmul.mubr.bf16.gmra.mxu0 %v1595
    %v1723 = vpop.f32.mrf.mxu0
    %v1724 = vadd.f32 0.0, %v1723
    %v1725 = vpop.f32.mrf.mxu0
    %v1726 = vadd.f32 0.0, %v1725
    %v1727 = vpop.f32.mrf.mxu0
    %v1728 = vadd.f32 0.0, %v1727
    %v1729 = vpop.f32.mrf.mxu0
    %v1730 = vadd.f32 0.0, %v1729
    %1731 = vmatprep.mubr.bf16.mxu0 0
    %1732 = vmatmul.mubr.bf16.gmra.mxu0 %v1594
    %v1733 = vpop.f32.mrf.mxu0
    %v1734 = vadd.f32 0.0, %v1733
    %v1735 = vpop.f32.mrf.mxu0
    %v1736 = vadd.f32 0.0, %v1735
    %v1737 = vpop.f32.mrf.mxu0
    %v1738 = vadd.f32 0.0, %v1737
    %v1739 = vpop.f32.mrf.mxu0
    %v1740 = vadd.f32 0.0, %v1739
    %1741 = vdwg.mxu0
    %v1742 = vadd.f32 %v1543, %v1714
    %v1743 = vadd.f32 %v1545, %v1716
    %v1744 = vadd.f32 %v1547, %v1718
    %v1745 = vadd.f32 %v1549, %v1720
    %v1746 = vadd.f32 %v1553, %v1724
    %v1747 = vadd.f32 %v1555, %v1726
    %v1748 = vadd.f32 %v1557, %v1728
    %v1749 = vadd.f32 %v1559, %v1730
    %v1750 = vadd.f32 %v1563, %v1734
    %v1751 = vadd.f32 %v1565, %v1736
    %v1752 = vadd.f32 %v1567, %v1738
    %v1753 = vadd.f32 %v1569, %v1740
    %v1754 = vmax.f32 %v1742, %v1743
    %v1755 = vmax.f32 %v1744, %v1745
    %v1756 = vmax.f32 %v1746, %v1747
    %v1757 = vmax.f32 %v1748, %v1749
    %v1758 = vmax.f32 %v1750, %v1751
    %v1759 = vmax.f32 %v1752, %v1753
    %v1760 = vld [vmem:[%s6] sm:$0x1]
    %v1762 = vlaneseq
    %v1763 = vshrl.u32 %v1762, 7
    %v1764 = vsub.s32 0, %v1763
    %v1765 = vrot.slane %v1760, %v1764
    %v1767 = vadd.f32 %v1754, %v1765
    %v1768 = vadd.f32 %v1755, %v1765
    %v1769 = vadd.f32 %v1756, %v1765
    %v1770 = vadd.f32 %v1757, %v1765
    %v1771 = vadd.f32 %v1758, %v1765
    %v1772 = vadd.f32 %v1759, %v1765
    %v1773 = vmax.f32 %v1767, 0.0
    %v1774 = vmax.f32 %v1768, 0.0
    %v1775 = vmax.f32 %v1769, 0.0
    %v1776 = vmax.f32 %v1770, 0.0
    %v1777 = vmax.f32 %v1771, 0.0
    %v1778 = vmax.f32 %v1772, 0.0
    %v1779 = vpack.c.bf16 %v1774, %v1773
    %v1780 = vpack.c.bf16 %v1776, %v1775
    %v1781 = vpack.c.bf16 %v1778, %v1777
    %v1782 = vld [vmem:[#allocation8] sm:$0xf]
    %v1783 = vld [vmem:[#allocation8 + $0x4] sm:$0xf]
    %v1784 = vld [vmem:[#allocation8 + $0x8] sm:$0xf]
    %v1785 = vld [vmem:[#allocation8 + $0xc] sm:$0xf]
    %v1790 = vunpack.c.l.b16 %v1782
    %v1791 = vunpack.c.l.b16 %v1783
    %v1792 = vunpack.c.l.b16 %v1784
    %v1793 = vunpack.c.l.b16 %v1785
    %v1794 = vpack.c.b16 %v1791, %v1790
    %v1795 = vpack.c.b16 %v1793, %v1792
    %vm1796 = vcmask 375808
    %v1798 = vsel %vm1796, %v1794, 0
    %v1801 = vsel %vm1796, %v1795, 0
    %v1804 = vsel %vm1069, %v1781, 0
    %1806 = vmatprep.subr.bf16.mxu0 0
    %1807 = vmatpush1.bf16.msra.mxu0 0
    %1808 = vmatprep.subr.bf16.mxu0 0
    %1809 = vmatpush1.bf16.msra.mxu0 0
    %1810 = vmatprep.subr.bf16.mxu0 0
    %1811 = vmatpush1.bf16.msra.mxu0 0
    %1812 = vmatprep.subr.bf16.mxu0 0
    %1813 = vmatpush1.bf16.msra.mxu0 0
    %1814 = vmatprep.subr.bf16.mxu0 0
    %1815 = vmatpush1.bf16.msra.mxu0 0
    %1816 = vmatprep.subr.bf16.mxu0 0
    %1817 = vmatpush1.bf16.msra.mxu0 %v1804
    %1818 = vmatprep.subr.bf16.mxu0 0
    %1819 = vmatpush1.bf16.msra.mxu0 %v1780
    %1820 = vmatprep.subr.bf16.mxu0 0
    %1821 = vmatpush1.bf16.msra.mxu0 %v1779
    %1822 = vmatprep.subr.bf16.mxu0 0
    %1823 = vmatpush2.bf16.msra.mxu0 0
    %1824 = vmatprep.subr.bf16.mxu0 0
    %1825 = vmatpush2.bf16.msra.mxu0 0
    %1826 = vmatprep.subr.bf16.mxu0 0
    %1827 = vmatpush2.bf16.msra.mxu0 0
    %1828 = vmatprep.subr.bf16.mxu0 0
    %1829 = vmatpush2.bf16.msra.mxu0 0
    %1830 = vmatprep.subr.bf16.mxu0 0
    %1831 = vmatpush2.bf16.msra.mxu0 0
    %1832 = vmatprep.subr.bf16.mxu0 0
    %1833 = vmatpush2.bf16.msra.mxu0 0
    %1834 = vmatprep.subr.bf16.mxu0 0
    %1835 = vmatpush2.bf16.msra.mxu0 0
    %1836 = vmatprep.subr.bf16.mxu0 0
    %1837 = vmatpush2.bf16.msra.mxu0 0
    %1838 = vmatprep.mubr.bf16.mxu0 0
    %1839 = vmatmul.mubr.bf16.gmra.mxu0 %v1798
    %v1840 = vpop.f32.mrf.mxu0
    %v1841 = vadd.f32 0.0, %v1840
    %v1842 = vpop.f32.mrf.mxu0
    %v1843 = vpop.f32.mrf.mxu0
    %v1844 = vadd.f32 0.0, %v1843
    %v1845 = vpop.f32.mrf.mxu0
    %1846 = vmatprep.mubr.bf16.mxu0 0
    %1847 = vmatmul.mubr.bf16.gmra.mxu0 %v1801
    %v1848 = vpop.f32.mrf.mxu0
    %v1849 = vadd.f32 0.0, %v1848
    %v1850 = vpop.f32.mrf.mxu0
    %v1851 = vpop.f32.mrf.mxu0
    %v1852 = vadd.f32 0.0, %v1851
    %v1853 = vpop.f32.mrf.mxu0
    %1854 = vdwg.mxu0
    %v1855 = vld [vmem:[#allocation10] sm:$0xf]
    %v1856 = vld [vmem:[#allocation10 + $0x4] sm:$0xf]
    %v1857 = vld [vmem:[#allocation10 + $0x8] sm:$0xf]
    %v1858 = vld [vmem:[#allocation10 + $0xc] sm:$0xf]
    %v1863 = vunpack.c.l.b16 %v1855
    %v1864 = vunpack.c.l.b16 %v1856
    %v1865 = vunpack.c.l.b16 %v1857
    %v1866 = vunpack.c.l.b16 %v1858
    %v1867 = vpack.c.b16 %v1864, %v1863
    %v1868 = vpack.c.b16 %v1866, %v1865
    %v1870 = vsel %vm1796, %v1867, 0
    %v1873 = vsel %vm1796, %v1868, 0
    %1875 = vmatprep.subr.bf16.mxu0 0
    %1876 = vmatpush1.bf16.msra.mxu0 0
    %1877 = vmatprep.subr.bf16.mxu0 0
    %1878 = vmatpush1.bf16.msra.mxu0 0
    %1879 = vmatprep.subr.bf16.mxu0 0
    %1880 = vmatpush1.bf16.msra.mxu0 0
    %1881 = vmatprep.subr.bf16.mxu0 0
    %1882 = vmatpush1.bf16.msra.mxu0 0
    %1883 = vmatprep.subr.bf16.mxu0 0
    %1884 = vmatpush1.bf16.msra.mxu0 0
    %1885 = vmatprep.subr.bf16.mxu0 0
    %1886 = vmatpush1.bf16.msra.mxu0 %v1804
    %1887 = vmatprep.subr.bf16.mxu0 0
    %1888 = vmatpush1.bf16.msra.mxu0 %v1780
    %1889 = vmatprep.subr.bf16.mxu0 0
    %1890 = vmatpush1.bf16.msra.mxu0 %v1779
    %1891 = vmatprep.subr.bf16.mxu0 0
    %1892 = vmatpush2.bf16.msra.mxu0 0
    %1893 = vmatprep.subr.bf16.mxu0 0
    %1894 = vmatpush2.bf16.msra.mxu0 0
    %1895 = vmatprep.subr.bf16.mxu0 0
    %1896 = vmatpush2.bf16.msra.mxu0 0
    %1897 = vmatprep.subr.bf16.mxu0 0
    %1898 = vmatpush2.bf16.msra.mxu0 0
    %1899 = vmatprep.subr.bf16.mxu0 0
    %1900 = vmatpush2.bf16.msra.mxu0 0
    %1901 = vmatprep.subr.bf16.mxu0 0
    %1902 = vmatpush2.bf16.msra.mxu0 0
    %1903 = vmatprep.subr.bf16.mxu0 0
    %1904 = vmatpush2.bf16.msra.mxu0 0
    %1905 = vmatprep.subr.bf16.mxu0 0
    %1906 = vmatpush2.bf16.msra.mxu0 0
    %1907 = vmatprep.mubr.bf16.mxu0 0
    %1908 = vmatmul.mubr.bf16.gmra.mxu0 %v1870
    %v1909 = vpop.f32.mrf.mxu0
    %v1910 = vadd.f32 0.0, %v1909
    %v1911 = vpop.f32.mrf.mxu0
    %v1912 = vpop.f32.mrf.mxu0
    %v1913 = vadd.f32 0.0, %v1912
    %v1914 = vpop.f32.mrf.mxu0
    %1915 = vmatprep.mubr.bf16.mxu0 0
    %1916 = vmatmul.mubr.bf16.gmra.mxu0 %v1873
    %v1917 = vpop.f32.mrf.mxu0
    %v1918 = vadd.f32 0.0, %v1917
    %v1919 = vpop.f32.mrf.mxu0
    %v1920 = vpop.f32.mrf.mxu0
    %v1921 = vadd.f32 0.0, %v1920
    %v1922 = vpop.f32.mrf.mxu0
    %1923 = vdwg.mxu0
    %v1924 = vmax.f32 %v1841, %v1910
    %v1925 = vmax.f32 %v1844, %v1913
    %v1926 = vmax.f32 %v1849, %v1918
    %v1927 = vmax.f32 %v1852, %v1921
    %v1928 = vpack.c.bf16 %v1925, %v1924
    %v1929 = vpack.c.bf16 %v1927, %v1926
    %v1930 = vld [vmem:[#allocation11] sm:$0xff]
    %v1931 = vld [vmem:[#allocation11 + $0x8] sm:$0xff]
    %v1932 = vld [vmem:[#allocation11 + $0x10] sm:$0xff]
    %v1933 = vld [vmem:[#allocation11 + $0x18] sm:$0xff]
    %v1934 = vld [vmem:[#allocation11 + $0x20] sm:$0xff]
    %v1935 = vld [vmem:[#allocation11 + $0x28] sm:$0xff]
    %v1936 = vld [vmem:[#allocation11 + $0x30] sm:$0xff]
    %v1937 = vld [vmem:[#allocation11 + $0x38] sm:$0xff]
    %v1938 = vld [vmem:[#allocation11 + $0x40] sm:$0xff]
    %v1939 = vld [vmem:[#allocation11 + $0x48] sm:$0xff]
    %v1940 = vld [vmem:[#allocation11 + $0x50] sm:$0xff]
    %v1941 = vld [vmem:[#allocation11 + $0x58] sm:$0xff]
    %v1942 = vld [vmem:[#allocation11 + $0x60] sm:$0xff]
    %v1943 = vld [vmem:[#allocation11 + $0x68] sm:$0xff]
    %v1944 = vld [vmem:[#allocation11 + $0x70] sm:$0xff]
    %v1945 = vld [vmem:[#allocation11 + $0x78] sm:$0xff]
    %s1946 = scalar_lea.vmem [#allocation11], 128
    %v1947 = vld [vmem:[%s1946] sm:$0xff]
    %v1948 = vld [vmem:[%s1946 + $0x8] sm:$0xff]
    %v1949 = vld [vmem:[%s1946 + $0x10] sm:$0xff]
    %v1950 = vld [vmem:[%s1946 + $0x18] sm:$0xff]
    %v1951 = vld [vmem:[%s1946 + $0x20] sm:$0xff]
    %v1952 = vld [vmem:[%s1946 + $0x28] sm:$0xff]
    %v1953 = vld [vmem:[%s1946 + $0x30] sm:$0xff]
    %v1954 = vld [vmem:[%s1946 + $0x38] sm:$0xff]
    %v1955 = vld [vmem:[%s1946 + $0x40] sm:$0xff]
    %v1956 = vld [vmem:[%s1946 + $0x48] sm:$0xff]
    %v1957 = vld [vmem:[%s1946 + $0x50] sm:$0xff]
    %v1958 = vld [vmem:[%s1946 + $0x58] sm:$0xff]
    %v1959 = vld [vmem:[%s1946 + $0x60] sm:$0xff]
    %v1960 = vld [vmem:[%s1946 + $0x68] sm:$0xff]
    %v1961 = vld [vmem:[%s1946 + $0x70] sm:$0xff]
    %v1962 = vld [vmem:[%s1946 + $0x78] sm:$0xff]
    %v1964 = vshrl.u32 %v1928, 16
    %v1966 = vshll.u32 %v1928, 16
    %v1968 = vrot.slane %v1966, 1
    %v1969 = vor.u32 %v1964, %v1968
    %v1971 = vshll.u32 %v1929, 16
    %v1973 = vrot.slane %v1971, 1
    %v1974 = vsel %vm405, %v1969, %v1973
    %v1975 = vshrl.u32 %v1929, 16
    %v1977 = vor.u32 %v1975, %v1973
    %v1996 = vunpack.c.l.b16 %v1947
    %v1997 = vunpack.c.h.b16 %v1947
    %v1998 = vunpack.c.l.b16 %v1948
    %v1999 = vunpack.c.h.b16 %v1948
    %v2000 = vunpack.c.l.b16 %v1949
    %v2001 = vunpack.c.h.b16 %v1949
    %v2002 = vunpack.c.l.b16 %v1950
    %v2003 = vunpack.c.h.b16 %v1950
    %v2004 = vunpack.c.l.b16 %v1951
    %v2005 = vunpack.c.h.b16 %v1951
    %v2006 = vunpack.c.l.b16 %v1952
    %v2007 = vunpack.c.h.b16 %v1952
    %v2008 = vunpack.c.l.b16 %v1953
    %v2009 = vunpack.c.h.b16 %v1953
    %v2010 = vunpack.c.l.b16 %v1954
    %v2011 = vunpack.c.h.b16 %v1954
    %v2012 = vunpack.c.l.b16 %v1955
    %v2013 = vunpack.c.h.b16 %v1955
    %v2014 = vunpack.c.l.b16 %v1956
    %v2015 = vunpack.c.h.b16 %v1956
    %v2016 = vunpack.c.l.b16 %v1957
    %v2017 = vunpack.c.h.b16 %v1957
    %v2018 = vunpack.c.l.b16 %v1958
    %v2019 = vunpack.c.h.b16 %v1958
    %v2020 = vunpack.c.l.b16 %v1959
    %v2021 = vunpack.c.h.b16 %v1959
    %v2022 = vunpack.c.l.b16 %v1960
    %v2023 = vunpack.c.h.b16 %v1960
    %v2024 = vunpack.c.l.b16 %v1961
    %v2025 = vunpack.c.h.b16 %v1961
    %v2026 = vunpack.c.l.b16 %v1962
    %v2027 = vunpack.c.h.b16 %v1962
    %v2028 = vpack.c.b16 %v1998, %v1996
    %v2029 = vpack.c.b16 %v1999, %v1997
    %v2030 = vpack.c.b16 %v2002, %v2000
    %v2031 = vpack.c.b16 %v2003, %v2001
    %v2032 = vpack.c.b16 %v2006, %v2004
    %v2033 = vpack.c.b16 %v2007, %v2005
    %v2034 = vpack.c.b16 %v2010, %v2008
    %v2035 = vpack.c.b16 %v2011, %v2009
    %v2036 = vpack.c.b16 %v2014, %v2012
    %v2037 = vpack.c.b16 %v2015, %v2013
    %v2038 = vpack.c.b16 %v2018, %v2016
    %v2039 = vpack.c.b16 %v2019, %v2017
    %v2040 = vpack.c.b16 %v2022, %v2020
    %v2041 = vpack.c.b16 %v2023, %v2021
    %v2042 = vpack.c.b16 %v2026, %v2024
    %v2043 = vpack.c.b16 %v2027, %v2025
    %2060 = vmatprep.subr.bf16.mxu0 %v2043
    %2061 = vmatpush1.bf16.msra.mxu0 %v2042
    %2062 = vmatprep.subr.bf16.mxu0 %v2041
    %2063 = vmatpush1.bf16.msra.mxu0 %v2040
    %2064 = vmatprep.subr.bf16.mxu0 %v2039
    %2065 = vmatpush1.bf16.msra.mxu0 %v2038
    %2066 = vmatprep.subr.bf16.mxu0 %v2037
    %2067 = vmatpush1.bf16.msra.mxu0 %v2036
    %2068 = vmatprep.subr.bf16.mxu0 %v2035
    %2069 = vmatpush1.bf16.msra.mxu0 %v2034
    %2070 = vmatprep.subr.bf16.mxu0 %v2033
    %2071 = vmatpush1.bf16.msra.mxu0 %v2032
    %2072 = vmatprep.subr.bf16.mxu0 %v2031
    %2073 = vmatpush1.bf16.msra.mxu0 %v2030
    %2074 = vmatprep.subr.bf16.mxu0 %v2029
    %2075 = vmatpush1.bf16.msra.mxu0 %v2028
    %2076 = vmatprep.subr.bf16.mxu0 0
    %2077 = vmatpush2.bf16.msra.mxu0 0
    %2078 = vmatprep.subr.bf16.mxu0 0
    %2079 = vmatpush2.bf16.msra.mxu0 0
    %2080 = vmatprep.subr.bf16.mxu0 0
    %2081 = vmatpush2.bf16.msra.mxu0 0
    %2082 = vmatprep.subr.bf16.mxu0 0
    %2083 = vmatpush2.bf16.msra.mxu0 0
    %2084 = vmatprep.subr.bf16.mxu0 0
    %2085 = vmatpush2.bf16.msra.mxu0 0
    %2086 = vmatprep.subr.bf16.mxu0 0
    %2087 = vmatpush2.bf16.msra.mxu0 0
    %2088 = vmatprep.subr.bf16.mxu0 0
    %2089 = vmatpush2.bf16.msra.mxu0 0
    %2090 = vmatprep.subr.bf16.mxu0 0
    %2091 = vmatpush2.bf16.msra.mxu0 0
    %2092 = vmatprep.mubr.bf16.mxu0 0
    %2093 = vmatmul.mubr.bf16.gmra.mxu0 %v1974
    %v2094 = vpop.f32.mrf.mxu0
    %v2095 = vadd.f32 0.0, %v2094
    %v2096 = vpop.f32.mrf.mxu0
    %v2097 = vadd.f32 0.0, %v2096
    %v2098 = vpop.f32.mrf.mxu0
    %v2099 = vadd.f32 0.0, %v2098
    %v2100 = vpop.f32.mrf.mxu0
    %v2101 = vadd.f32 0.0, %v2100
    %2102 = vmatprep.mubr.bf16.mxu0 0
    %2103 = vmatmul.mubr.bf16.gmra.mxu0 %v1977
    %v2104 = vpop.f32.mrf.mxu0
    %v2105 = vadd.f32 0.0, %v2104
    %v2106 = vpop.f32.mrf.mxu0
    %v2107 = vadd.f32 0.0, %v2106
    %v2108 = vpop.f32.mrf.mxu0
    %v2109 = vadd.f32 0.0, %v2108
    %v2110 = vpop.f32.mrf.mxu0
    %v2111 = vadd.f32 0.0, %v2110
    %2112 = vdwg.mxu0
    %v2129 = vunpack.c.l.b16 %v1930
    %v2130 = vunpack.c.h.b16 %v1930
    %v2131 = vunpack.c.l.b16 %v1931
    %v2132 = vunpack.c.h.b16 %v1931
    %v2133 = vunpack.c.l.b16 %v1932
    %v2134 = vunpack.c.h.b16 %v1932
    %v2135 = vunpack.c.l.b16 %v1933
    %v2136 = vunpack.c.h.b16 %v1933
    %v2137 = vunpack.c.l.b16 %v1934
    %v2138 = vunpack.c.h.b16 %v1934
    %v2139 = vunpack.c.l.b16 %v1935
    %v2140 = vunpack.c.h.b16 %v1935
    %v2141 = vunpack.c.l.b16 %v1936
    %v2142 = vunpack.c.h.b16 %v1936
    %v2143 = vunpack.c.l.b16 %v1937
    %v2144 = vunpack.c.h.b16 %v1937
    %v2145 = vunpack.c.l.b16 %v1938
    %v2146 = vunpack.c.h.b16 %v1938
    %v2147 = vunpack.c.l.b16 %v1939
    %v2148 = vunpack.c.h.b16 %v1939
    %v2149 = vunpack.c.l.b16 %v1940
    %v2150 = vunpack.c.h.b16 %v1940
    %v2151 = vunpack.c.l.b16 %v1941
    %v2152 = vunpack.c.h.b16 %v1941
    %v2153 = vunpack.c.l.b16 %v1942
    %v2154 = vunpack.c.h.b16 %v1942
    %v2155 = vunpack.c.l.b16 %v1943
    %v2156 = vunpack.c.h.b16 %v1943
    %v2157 = vunpack.c.l.b16 %v1944
    %v2158 = vunpack.c.h.b16 %v1944
    %v2159 = vunpack.c.l.b16 %v1945
    %v2160 = vunpack.c.h.b16 %v1945
    %v2161 = vpack.c.b16 %v2131, %v2129
    %v2162 = vpack.c.b16 %v2132, %v2130
    %v2163 = vpack.c.b16 %v2135, %v2133
    %v2164 = vpack.c.b16 %v2136, %v2134
    %v2165 = vpack.c.b16 %v2139, %v2137
    %v2166 = vpack.c.b16 %v2140, %v2138
    %v2167 = vpack.c.b16 %v2143, %v2141
    %v2168 = vpack.c.b16 %v2144, %v2142
    %v2169 = vpack.c.b16 %v2147, %v2145
    %v2170 = vpack.c.b16 %v2148, %v2146
    %v2171 = vpack.c.b16 %v2151, %v2149
    %v2172 = vpack.c.b16 %v2152, %v2150
    %v2173 = vpack.c.b16 %v2155, %v2153
    %v2174 = vpack.c.b16 %v2156, %v2154
    %v2175 = vpack.c.b16 %v2159, %v2157
    %v2176 = vpack.c.b16 %v2160, %v2158
    %2193 = vmatprep.subr.bf16.mxu0 %v2176
    %2194 = vmatpush1.bf16.msra.mxu0 %v2175
    %2195 = vmatprep.subr.bf16.mxu0 %v2174
    %2196 = vmatpush1.bf16.msra.mxu0 %v2173
    %2197 = vmatprep.subr.bf16.mxu0 %v2172
    %2198 = vmatpush1.bf16.msra.mxu0 %v2171
    %2199 = vmatprep.subr.bf16.mxu0 %v2170
    %2200 = vmatpush1.bf16.msra.mxu0 %v2169
    %2201 = vmatprep.subr.bf16.mxu0 %v2168
    %2202 = vmatpush1.bf16.msra.mxu0 %v2167
    %2203 = vmatprep.subr.bf16.mxu0 %v2166
    %2204 = vmatpush1.bf16.msra.mxu0 %v2165
    %2205 = vmatprep.subr.bf16.mxu0 %v2164
    %2206 = vmatpush1.bf16.msra.mxu0 %v2163
    %2207 = vmatprep.subr.bf16.mxu0 %v2162
    %2208 = vmatpush1.bf16.msra.mxu0 %v2161
    %2209 = vmatprep.subr.bf16.mxu0 0
    %2210 = vmatpush2.bf16.msra.mxu0 0
    %2211 = vmatprep.subr.bf16.mxu0 0
    %2212 = vmatpush2.bf16.msra.mxu0 0
    %2213 = vmatprep.subr.bf16.mxu0 0
    %2214 = vmatpush2.bf16.msra.mxu0 0
    %2215 = vmatprep.subr.bf16.mxu0 0
    %2216 = vmatpush2.bf16.msra.mxu0 0
    %2217 = vmatprep.subr.bf16.mxu0 0
    %2218 = vmatpush2.bf16.msra.mxu0 0
    %2219 = vmatprep.subr.bf16.mxu0 0
    %2220 = vmatpush2.bf16.msra.mxu0 0
    %2221 = vmatprep.subr.bf16.mxu0 0
    %2222 = vmatpush2.bf16.msra.mxu0 0
    %2223 = vmatprep.subr.bf16.mxu0 0
    %2224 = vmatpush2.bf16.msra.mxu0 0
    %2225 = vmatprep.mubr.bf16.mxu0 0
    %2226 = vmatmul.mubr.bf16.gmra.mxu0 %v1928
    %v2227 = vpop.f32.mrf.mxu0
    %v2228 = vadd.f32 %v2095, %v2227
    %v2229 = vpop.f32.mrf.mxu0
    %v2230 = vadd.f32 %v2097, %v2229
    %v2231 = vpop.f32.mrf.mxu0
    %v2232 = vadd.f32 %v2099, %v2231
    %v2233 = vpop.f32.mrf.mxu0
    %v2234 = vadd.f32 %v2101, %v2233
    %2235 = vmatprep.mubr.bf16.mxu0 0
    %2236 = vmatmul.mubr.bf16.gmra.mxu0 %v1929
    %v2237 = vpop.f32.mrf.mxu0
    %v2238 = vadd.f32 %v2105, %v2237
    %v2239 = vpop.f32.mrf.mxu0
    %v2240 = vadd.f32 %v2107, %v2239
    %v2241 = vpop.f32.mrf.mxu0
    %v2242 = vadd.f32 %v2109, %v2241
    %v2243 = vpop.f32.mrf.mxu0
    %v2244 = vadd.f32 %v2111, %v2243
    %2245 = vdwg.mxu0
    %s2246 = scalar_lea.vmem [#allocation11], 256
    %v2247 = vld [vmem:[%s2246] sm:$0xff]
    %v2248 = vld [vmem:[%s2246 + $0x8] sm:$0xff]
    %v2249 = vld [vmem:[%s2246 + $0x10] sm:$0xff]
    %v2250 = vld [vmem:[%s2246 + $0x18] sm:$0xff]
    %v2251 = vld [vmem:[%s2246 + $0x20] sm:$0xff]
    %v2252 = vld [vmem:[%s2246 + $0x28] sm:$0xff]
    %v2253 = vld [vmem:[%s2246 + $0x30] sm:$0xff]
    %v2254 = vld [vmem:[%s2246 + $0x38] sm:$0xff]
    %v2255 = vld [vmem:[%s2246 + $0x40] sm:$0xff]
    %v2256 = vld [vmem:[%s2246 + $0x48] sm:$0xff]
    %v2257 = vld [vmem:[%s2246 + $0x50] sm:$0xff]
    %v2258 = vld [vmem:[%s2246 + $0x58] sm:$0xff]
    %v2259 = vld [vmem:[%s2246 + $0x60] sm:$0xff]
    %v2260 = vld [vmem:[%s2246 + $0x68] sm:$0xff]
    %v2261 = vld [vmem:[%s2246 + $0x70] sm:$0xff]
    %v2262 = vld [vmem:[%s2246 + $0x78] sm:$0xff]
    %v2265 = vrot.slane %v1928, 1
    %v2266 = vrot.slane %v1929, 1
    %v2267 = vsel %vm798, %v2265, %v2266
    %v2286 = vunpack.c.l.b16 %v2247
    %v2287 = vunpack.c.h.b16 %v2247
    %v2288 = vunpack.c.l.b16 %v2248
    %v2289 = vunpack.c.h.b16 %v2248
    %v2290 = vunpack.c.l.b16 %v2249
    %v2291 = vunpack.c.h.b16 %v2249
    %v2292 = vunpack.c.l.b16 %v2250
    %v2293 = vunpack.c.h.b16 %v2250
    %v2294 = vunpack.c.l.b16 %v2251
    %v2295 = vunpack.c.h.b16 %v2251
    %v2296 = vunpack.c.l.b16 %v2252
    %v2297 = vunpack.c.h.b16 %v2252
    %v2298 = vunpack.c.l.b16 %v2253
    %v2299 = vunpack.c.h.b16 %v2253
    %v2300 = vunpack.c.l.b16 %v2254
    %v2301 = vunpack.c.h.b16 %v2254
    %v2302 = vunpack.c.l.b16 %v2255
    %v2303 = vunpack.c.h.b16 %v2255
    %v2304 = vunpack.c.l.b16 %v2256
    %v2305 = vunpack.c.h.b16 %v2256
    %v2306 = vunpack.c.l.b16 %v2257
    %v2307 = vunpack.c.h.b16 %v2257
    %v2308 = vunpack.c.l.b16 %v2258
    %v2309 = vunpack.c.h.b16 %v2258
    %v2310 = vunpack.c.l.b16 %v2259
    %v2311 = vunpack.c.h.b16 %v2259
    %v2312 = vunpack.c.l.b16 %v2260
    %v2313 = vunpack.c.h.b16 %v2260
    %v2314 = vunpack.c.l.b16 %v2261
    %v2315 = vunpack.c.h.b16 %v2261
    %v2316 = vunpack.c.l.b16 %v2262
    %v2317 = vunpack.c.h.b16 %v2262
    %v2318 = vpack.c.b16 %v2288, %v2286
    %v2319 = vpack.c.b16 %v2289, %v2287
    %v2320 = vpack.c.b16 %v2292, %v2290
    %v2321 = vpack.c.b16 %v2293, %v2291
    %v2322 = vpack.c.b16 %v2296, %v2294
    %v2323 = vpack.c.b16 %v2297, %v2295
    %v2324 = vpack.c.b16 %v2300, %v2298
    %v2325 = vpack.c.b16 %v2301, %v2299
    %v2326 = vpack.c.b16 %v2304, %v2302
    %v2327 = vpack.c.b16 %v2305, %v2303
    %v2328 = vpack.c.b16 %v2308, %v2306
    %v2329 = vpack.c.b16 %v2309, %v2307
    %v2330 = vpack.c.b16 %v2312, %v2310
    %v2331 = vpack.c.b16 %v2313, %v2311
    %v2332 = vpack.c.b16 %v2316, %v2314
    %v2333 = vpack.c.b16 %v2317, %v2315
    %2350 = vmatprep.subr.bf16.mxu0 %v2333
    %2351 = vmatpush1.bf16.msra.mxu0 %v2332
    %2352 = vmatprep.subr.bf16.mxu0 %v2331
    %2353 = vmatpush1.bf16.msra.mxu0 %v2330
    %2354 = vmatprep.subr.bf16.mxu0 %v2329
    %2355 = vmatpush1.bf16.msra.mxu0 %v2328
    %2356 = vmatprep.subr.bf16.mxu0 %v2327
    %2357 = vmatpush1.bf16.msra.mxu0 %v2326
    %2358 = vmatprep.subr.bf16.mxu0 %v2325
    %2359 = vmatpush1.bf16.msra.mxu0 %v2324
    %2360 = vmatprep.subr.bf16.mxu0 %v2323
    %2361 = vmatpush1.bf16.msra.mxu0 %v2322
    %2362 = vmatprep.subr.bf16.mxu0 %v2321
    %2363 = vmatpush1.bf16.msra.mxu0 %v2320
    %2364 = vmatprep.subr.bf16.mxu0 %v2319
    %2365 = vmatpush1.bf16.msra.mxu0 %v2318
    %2366 = vmatprep.subr.bf16.mxu0 0
    %2367 = vmatpush2.bf16.msra.mxu0 0
    %2368 = vmatprep.subr.bf16.mxu0 0
    %2369 = vmatpush2.bf16.msra.mxu0 0
    %2370 = vmatprep.subr.bf16.mxu0 0
    %2371 = vmatpush2.bf16.msra.mxu0 0
    %2372 = vmatprep.subr.bf16.mxu0 0
    %2373 = vmatpush2.bf16.msra.mxu0 0
    %2374 = vmatprep.subr.bf16.mxu0 0
    %2375 = vmatpush2.bf16.msra.mxu0 0
    %2376 = vmatprep.subr.bf16.mxu0 0
    %2377 = vmatpush2.bf16.msra.mxu0 0
    %2378 = vmatprep.subr.bf16.mxu0 0
    %2379 = vmatpush2.bf16.msra.mxu0 0
    %2380 = vmatprep.subr.bf16.mxu0 0
    %2381 = vmatpush2.bf16.msra.mxu0 0
    %2382 = vmatprep.mubr.bf16.mxu0 0
    %2383 = vmatmul.mubr.bf16.gmra.mxu0 %v2267
    %v2384 = vpop.f32.mrf.mxu0
    %v2385 = vadd.f32 0.0, %v2384
    %v2386 = vpop.f32.mrf.mxu0
    %v2387 = vadd.f32 0.0, %v2386
    %v2388 = vpop.f32.mrf.mxu0
    %v2389 = vadd.f32 0.0, %v2388
    %v2390 = vpop.f32.mrf.mxu0
    %v2391 = vadd.f32 0.0, %v2390
    %2392 = vmatprep.mubr.bf16.mxu0 0
    %2393 = vmatmul.mubr.bf16.gmra.mxu0 %v2266
    %v2394 = vpop.f32.mrf.mxu0
    %v2395 = vadd.f32 0.0, %v2394
    %v2396 = vpop.f32.mrf.mxu0
    %v2397 = vadd.f32 0.0, %v2396
    %v2398 = vpop.f32.mrf.mxu0
    %v2399 = vadd.f32 0.0, %v2398
    %v2400 = vpop.f32.mrf.mxu0
    %v2401 = vadd.f32 0.0, %v2400
    %2402 = vdwg.mxu0
    %v2403 = vadd.f32 %v2228, %v2385
    %v2404 = vadd.f32 %v2230, %v2387
    %v2405 = vadd.f32 %v2232, %v2389
    %v2406 = vadd.f32 %v2234, %v2391
    %v2407 = vadd.f32 %v2238, %v2395
    %v2408 = vadd.f32 %v2240, %v2397
    %v2409 = vadd.f32 %v2242, %v2399
    %v2410 = vadd.f32 %v2244, %v2401
    %v2411 = vmax.f32 %v2403, %v2404
    %v2412 = vmax.f32 %v2405, %v2406
    %v2413 = vmax.f32 %v2407, %v2408
    %v2414 = vmax.f32 %v2409, %v2410
    %v2415 = vld [vmem:[#allocation13] sm:$0x1]
    %v2417 = vlaneseq
    %v2418 = vshrl.u32 %v2417, 7
    %v2419 = vsub.s32 0, %v2418
    %v2420 = vrot.slane %v2415, %v2419
    %v2422 = vadd.f32 %v2411, %v2420
    %v2423 = vadd.f32 %v2412, %v2420
    %v2424 = vadd.f32 %v2413, %v2420
    %v2425 = vadd.f32 %v2414, %v2420
    %v2426 = vmax.f32 %v2422, 0.0
    %v2427 = vmax.f32 %v2423, 0.0
    %v2428 = vmax.f32 %v2424, 0.0
    %v2429 = vmax.f32 %v2425, 0.0
    %v2430 = vpack.c.bf16 %v2427, %v2426
    %v2431 = vpack.c.bf16 %v2429, %v2428
    %v2432 = vld [vmem:[#allocation14] sm:$0xf]
    %v2433 = vld [vmem:[#allocation14 + $0x4] sm:$0xf]
    %v2436 = vunpack.c.l.b16 %v2432
    %v2437 = vunpack.c.l.b16 %v2433
    %v2438 = vpack.c.b16 %v2437, %v2436
    %vm2439 = vcmask 244736
    %v2441 = vsel %vm2439, %v2438, 0
    %v2444 = vsel %vm1069, %v2431, 0
    %2446 = vmatprep.subr.bf16.mxu0 0
    %2447 = vmatpush1.bf16.msra.mxu0 0
    %2448 = vmatprep.subr.bf16.mxu0 0
    %2449 = vmatpush1.bf16.msra.mxu0 0
    %2450 = vmatprep.subr.bf16.mxu0 0
    %2451 = vmatpush1.bf16.msra.mxu0 0
    %2452 = vmatprep.subr.bf16.mxu0 0
    %2453 = vmatpush1.bf16.msra.mxu0 0
    %2454 = vmatprep.subr.bf16.mxu0 0
    %2455 = vmatpush1.bf16.msra.mxu0 0
    %2456 = vmatprep.subr.bf16.mxu0 0
    %2457 = vmatpush1.bf16.msra.mxu0 0
    %2458 = vmatprep.subr.bf16.mxu0 0
    %2459 = vmatpush1.bf16.msra.mxu0 %v2444
    %2460 = vmatprep.subr.bf16.mxu0 0
    %2461 = vmatpush1.bf16.msra.mxu0 %v2430
    %2462 = vmatprep.subr.bf16.mxu0 0
    %2463 = vmatpush2.bf16.msra.mxu0 0
    %2464 = vmatprep.subr.bf16.mxu0 0
    %2465 = vmatpush2.bf16.msra.mxu0 0
    %2466 = vmatprep.subr.bf16.mxu0 0
    %2467 = vmatpush2.bf16.msra.mxu0 0
    %2468 = vmatprep.subr.bf16.mxu0 0
    %2469 = vmatpush2.bf16.msra.mxu0 0
    %2470 = vmatprep.subr.bf16.mxu0 0
    %2471 = vmatpush2.bf16.msra.mxu0 0
    %2472 = vmatprep.subr.bf16.mxu0 0
    %2473 = vmatpush2.bf16.msra.mxu0 0
    %2474 = vmatprep.subr.bf16.mxu0 0
    %2475 = vmatpush2.bf16.msra.mxu0 0
    %2476 = vmatprep.subr.bf16.mxu0 0
    %2477 = vmatpush2.bf16.msra.mxu0 0
    %2478 = vmatprep.mubr.bf16.mxu0 0
    %2479 = vmatmul.mubr.bf16.gmra.mxu0 %v2441
    %v2480 = vpop.f32.mrf.mxu0
    %v2481 = vadd.f32 0.0, %v2480
    %v2482 = vpop.f32.mrf.mxu0
    %v2483 = vpop.f32.mrf.mxu0
    %v2484 = vadd.f32 0.0, %v2483
    %v2485 = vpop.f32.mrf.mxu0
    %2486 = vdwg.mxu0
    %v2487 = vld [vmem:[#allocation16] sm:$0xf]
    %v2488 = vld [vmem:[#allocation16 + $0x4] sm:$0xf]
    %v2491 = vunpack.c.l.b16 %v2487
    %v2492 = vunpack.c.l.b16 %v2488
    %v2493 = vpack.c.b16 %v2492, %v2491
    %v2495 = vsel %vm2439, %v2493, 0
    %2497 = vmatprep.subr.bf16.mxu0 0
    %2498 = vmatpush1.bf16.msra.mxu0 0
    %2499 = vmatprep.subr.bf16.mxu0 0
    %2500 = vmatpush1.bf16.msra.mxu0 0
    %2501 = vmatprep.subr.bf16.mxu0 0
    %2502 = vmatpush1.bf16.msra.mxu0 0
    %2503 = vmatprep.subr.bf16.mxu0 0
    %2504 = vmatpush1.bf16.msra.mxu0 0
    %2505 = vmatprep.subr.bf16.mxu0 0
    %2506 = vmatpush1.bf16.msra.mxu0 0
    %2507 = vmatprep.subr.bf16.mxu0 0
    %2508 = vmatpush1.bf16.msra.mxu0 0
    %2509 = vmatprep.subr.bf16.mxu0 0
    %2510 = vmatpush1.bf16.msra.mxu0 %v2444
    %2511 = vmatprep.subr.bf16.mxu0 0
    %2512 = vmatpush1.bf16.msra.mxu0 %v2430
    %2513 = vmatprep.subr.bf16.mxu0 0
    %2514 = vmatpush2.bf16.msra.mxu0 0
    %2515 = vmatprep.subr.bf16.mxu0 0
    %2516 = vmatpush2.bf16.msra.mxu0 0
    %2517 = vmatprep.subr.bf16.mxu0 0
    %2518 = vmatpush2.bf16.msra.mxu0 0
    %2519 = vmatprep.subr.bf16.mxu0 0
    %2520 = vmatpush2.bf16.msra.mxu0 0
    %2521 = vmatprep.subr.bf16.mxu0 0
    %2522 = vmatpush2.bf16.msra.mxu0 0
    %2523 = vmatprep.subr.bf16.mxu0 0
    %2524 = vmatpush2.bf16.msra.mxu0 0
    %2525 = vmatprep.subr.bf16.mxu0 0
    %2526 = vmatpush2.bf16.msra.mxu0 0
    %2527 = vmatprep.subr.bf16.mxu0 0
    %2528 = vmatpush2.bf16.msra.mxu0 0
    %2529 = vmatprep.mubr.bf16.mxu0 0
    %2530 = vmatmul.mubr.bf16.gmra.mxu0 %v2495
    %v2531 = vpop.f32.mrf.mxu0
    %v2532 = vadd.f32 0.0, %v2531
    %v2533 = vpop.f32.mrf.mxu0
    %v2534 = vpop.f32.mrf.mxu0
    %v2535 = vadd.f32 0.0, %v2534
    %v2536 = vpop.f32.mrf.mxu0
    %2537 = vdwg.mxu0
    %v2538 = vmax.f32 %v2481, %v2532
    %v2539 = vmax.f32 %v2484, %v2535
    %v2540 = vpack.c.bf16 %v2539, %v2538
    %v2541 = vld [vmem:[#allocation17] sm:$0xff]
    %v2542 = vld [vmem:[#allocation17 + $0x8] sm:$0xff]
    %v2543 = vld [vmem:[#allocation17 + $0x10] sm:$0xff]
    %v2544 = vld [vmem:[#allocation17 + $0x18] sm:$0xff]
    %v2545 = vld [vmem:[#allocation17 + $0x20] sm:$0xff]
    %v2546 = vld [vmem:[#allocation17 + $0x28] sm:$0xff]
    %v2547 = vld [vmem:[#allocation17 + $0x30] sm:$0xff]
    %v2548 = vld [vmem:[#allocation17 + $0x38] sm:$0xff]
    %v2549 = vld [vmem:[#allocation17 + $0x40] sm:$0xff]
    %v2550 = vld [vmem:[#allocation17 + $0x48] sm:$0xff]
    %v2551 = vld [vmem:[#allocation17 + $0x50] sm:$0xff]
    %v2552 = vld [vmem:[#allocation17 + $0x58] sm:$0xff]
    %v2553 = vld [vmem:[#allocation17 + $0x60] sm:$0xff]
    %v2554 = vld [vmem:[#allocation17 + $0x68] sm:$0xff]
    %v2555 = vld [vmem:[#allocation17 + $0x70] sm:$0xff]
    %v2556 = vld [vmem:[#allocation17 + $0x78] sm:$0xff]
    %s2557 = scalar_lea.vmem [#allocation17], 128
    %v2558 = vld [vmem:[%s2557] sm:$0xff]
    %v2559 = vld [vmem:[%s2557 + $0x8] sm:$0xff]
    %v2560 = vld [vmem:[%s2557 + $0x10] sm:$0xff]
    %v2561 = vld [vmem:[%s2557 + $0x18] sm:$0xff]
    %v2562 = vld [vmem:[%s2557 + $0x20] sm:$0xff]
    %v2563 = vld [vmem:[%s2557 + $0x28] sm:$0xff]
    %v2564 = vld [vmem:[%s2557 + $0x30] sm:$0xff]
    %v2565 = vld [vmem:[%s2557 + $0x38] sm:$0xff]
    %v2566 = vld [vmem:[%s2557 + $0x40] sm:$0xff]
    %v2567 = vld [vmem:[%s2557 + $0x48] sm:$0xff]
    %v2568 = vld [vmem:[%s2557 + $0x50] sm:$0xff]
    %v2569 = vld [vmem:[%s2557 + $0x58] sm:$0xff]
    %v2570 = vld [vmem:[%s2557 + $0x60] sm:$0xff]
    %v2571 = vld [vmem:[%s2557 + $0x68] sm:$0xff]
    %v2572 = vld [vmem:[%s2557 + $0x70] sm:$0xff]
    %v2573 = vld [vmem:[%s2557 + $0x78] sm:$0xff]
    %v2575 = vshrl.u32 %v2540, 16
    %v2577 = vshll.u32 %v2540, 16
    %v2579 = vrot.slane %v2577, 1
    %v2580 = vor.u32 %v2575, %v2579
    %v2598 = vunpack.c.l.b16 %v2558
    %v2599 = vunpack.c.h.b16 %v2558
    %v2600 = vunpack.c.l.b16 %v2559
    %v2601 = vunpack.c.h.b16 %v2559
    %v2602 = vunpack.c.l.b16 %v2560
    %v2603 = vunpack.c.h.b16 %v2560
    %v2604 = vunpack.c.l.b16 %v2561
    %v2605 = vunpack.c.h.b16 %v2561
    %v2606 = vunpack.c.l.b16 %v2562
    %v2607 = vunpack.c.h.b16 %v2562
    %v2608 = vunpack.c.l.b16 %v2563
    %v2609 = vunpack.c.h.b16 %v2563
    %v2610 = vunpack.c.l.b16 %v2564
    %v2611 = vunpack.c.h.b16 %v2564
    %v2612 = vunpack.c.l.b16 %v2565
    %v2613 = vunpack.c.h.b16 %v2565
    %v2614 = vunpack.c.l.b16 %v2566
    %v2615 = vunpack.c.h.b16 %v2566
    %v2616 = vunpack.c.l.b16 %v2567
    %v2617 = vunpack.c.h.b16 %v2567
    %v2618 = vunpack.c.l.b16 %v2568
    %v2619 = vunpack.c.h.b16 %v2568
    %v2620 = vunpack.c.l.b16 %v2569
    %v2621 = vunpack.c.h.b16 %v2569
    %v2622 = vunpack.c.l.b16 %v2570
    %v2623 = vunpack.c.h.b16 %v2570
    %v2624 = vunpack.c.l.b16 %v2571
    %v2625 = vunpack.c.h.b16 %v2571
    %v2626 = vunpack.c.l.b16 %v2572
    %v2627 = vunpack.c.h.b16 %v2572
    %v2628 = vunpack.c.l.b16 %v2573
    %v2629 = vunpack.c.h.b16 %v2573
    %v2630 = vpack.c.b16 %v2600, %v2598
    %v2631 = vpack.c.b16 %v2601, %v2599
    %v2632 = vpack.c.b16 %v2604, %v2602
    %v2633 = vpack.c.b16 %v2605, %v2603
    %v2634 = vpack.c.b16 %v2608, %v2606
    %v2635 = vpack.c.b16 %v2609, %v2607
    %v2636 = vpack.c.b16 %v2612, %v2610
    %v2637 = vpack.c.b16 %v2613, %v2611
    %v2638 = vpack.c.b16 %v2616, %v2614
    %v2639 = vpack.c.b16 %v2617, %v2615
    %v2640 = vpack.c.b16 %v2620, %v2618
    %v2641 = vpack.c.b16 %v2621, %v2619
    %v2642 = vpack.c.b16 %v2624, %v2622
    %v2643 = vpack.c.b16 %v2625, %v2623
    %v2644 = vpack.c.b16 %v2628, %v2626
    %v2645 = vpack.c.b16 %v2629, %v2627
    %2662 = vmatprep.subr.bf16.mxu0 %v2645
    %2663 = vmatpush1.bf16.msra.mxu0 %v2644
    %2664 = vmatprep.subr.bf16.mxu0 %v2643
    %2665 = vmatpush1.bf16.msra.mxu0 %v2642
    %2666 = vmatprep.subr.bf16.mxu0 %v2641
    %2667 = vmatpush1.bf16.msra.mxu0 %v2640
    %2668 = vmatprep.subr.bf16.mxu0 %v2639
    %2669 = vmatpush1.bf16.msra.mxu0 %v2638
    %2670 = vmatprep.subr.bf16.mxu0 %v2637
    %2671 = vmatpush1.bf16.msra.mxu0 %v2636
    %2672 = vmatprep.subr.bf16.mxu0 %v2635
    %2673 = vmatpush1.bf16.msra.mxu0 %v2634
    %2674 = vmatprep.subr.bf16.mxu0 %v2633
    %2675 = vmatpush1.bf16.msra.mxu0 %v2632
    %2676 = vmatprep.subr.bf16.mxu0 %v2631
    %2677 = vmatpush1.bf16.msra.mxu0 %v2630
    %2678 = vmatprep.subr.bf16.mxu0 0
    %2679 = vmatpush2.bf16.msra.mxu0 0
    %2680 = vmatprep.subr.bf16.mxu0 0
    %2681 = vmatpush2.bf16.msra.mxu0 0
    %2682 = vmatprep.subr.bf16.mxu0 0
    %2683 = vmatpush2.bf16.msra.mxu0 0
    %2684 = vmatprep.subr.bf16.mxu0 0
    %2685 = vmatpush2.bf16.msra.mxu0 0
    %2686 = vmatprep.subr.bf16.mxu0 0
    %2687 = vmatpush2.bf16.msra.mxu0 0
    %2688 = vmatprep.subr.bf16.mxu0 0
    %2689 = vmatpush2.bf16.msra.mxu0 0
    %2690 = vmatprep.subr.bf16.mxu0 0
    %2691 = vmatpush2.bf16.msra.mxu0 0
    %2692 = vmatprep.subr.bf16.mxu0 0
    %2693 = vmatpush2.bf16.msra.mxu0 0
    %2694 = vmatprep.mubr.bf16.mxu0 0
    %2695 = vmatmul.mubr.bf16.gmra.mxu0 %v2580
    %v2696 = vpop.f32.mrf.mxu0
    %v2697 = vadd.f32 0.0, %v2696
    %v2698 = vpop.f32.mrf.mxu0
    %v2699 = vadd.f32 0.0, %v2698
    %v2700 = vpop.f32.mrf.mxu0
    %v2701 = vadd.f32 0.0, %v2700
    %v2702 = vpop.f32.mrf.mxu0
    %v2703 = vadd.f32 0.0, %v2702
    %2704 = vdwg.mxu0
    %v2721 = vunpack.c.l.b16 %v2541
    %v2722 = vunpack.c.h.b16 %v2541
    %v2723 = vunpack.c.l.b16 %v2542
    %v2724 = vunpack.c.h.b16 %v2542
    %v2725 = vunpack.c.l.b16 %v2543
    %v2726 = vunpack.c.h.b16 %v2543
    %v2727 = vunpack.c.l.b16 %v2544
    %v2728 = vunpack.c.h.b16 %v2544
    %v2729 = vunpack.c.l.b16 %v2545
    %v2730 = vunpack.c.h.b16 %v2545
    %v2731 = vunpack.c.l.b16 %v2546
    %v2732 = vunpack.c.h.b16 %v2546
    %v2733 = vunpack.c.l.b16 %v2547
    %v2734 = vunpack.c.h.b16 %v2547
    %v2735 = vunpack.c.l.b16 %v2548
    %v2736 = vunpack.c.h.b16 %v2548
    %v2737 = vunpack.c.l.b16 %v2549
    %v2738 = vunpack.c.h.b16 %v2549
    %v2739 = vunpack.c.l.b16 %v2550
    %v2740 = vunpack.c.h.b16 %v2550
    %v2741 = vunpack.c.l.b16 %v2551
    %v2742 = vunpack.c.h.b16 %v2551
    %v2743 = vunpack.c.l.b16 %v2552
    %v2744 = vunpack.c.h.b16 %v2552
    %v2745 = vunpack.c.l.b16 %v2553
    %v2746 = vunpack.c.h.b16 %v2553
    %v2747 = vunpack.c.l.b16 %v2554
    %v2748 = vunpack.c.h.b16 %v2554
    %v2749 = vunpack.c.l.b16 %v2555
    %v2750 = vunpack.c.h.b16 %v2555
    %v2751 = vunpack.c.l.b16 %v2556
    %v2752 = vunpack.c.h.b16 %v2556
    %v2753 = vpack.c.b16 %v2723, %v2721
    %v2754 = vpack.c.b16 %v2724, %v2722
    %v2755 = vpack.c.b16 %v2727, %v2725
    %v2756 = vpack.c.b16 %v2728, %v2726
    %v2757 = vpack.c.b16 %v2731, %v2729
    %v2758 = vpack.c.b16 %v2732, %v2730
    %v2759 = vpack.c.b16 %v2735, %v2733
    %v2760 = vpack.c.b16 %v2736, %v2734
    %v2761 = vpack.c.b16 %v2739, %v2737
    %v2762 = vpack.c.b16 %v2740, %v2738
    %v2763 = vpack.c.b16 %v2743, %v2741
    %v2764 = vpack.c.b16 %v2744, %v2742
    %v2765 = vpack.c.b16 %v2747, %v2745
    %v2766 = vpack.c.b16 %v2748, %v2746
    %v2767 = vpack.c.b16 %v2751, %v2749
    %v2768 = vpack.c.b16 %v2752, %v2750
    %2785 = vmatprep.subr.bf16.mxu0 %v2768
    %2786 = vmatpush1.bf16.msra.mxu0 %v2767
    %2787 = vmatprep.subr.bf16.mxu0 %v2766
    %2788 = vmatpush1.bf16.msra.mxu0 %v2765
    %2789 = vmatprep.subr.bf16.mxu0 %v2764
    %2790 = vmatpush1.bf16.msra.mxu0 %v2763
    %2791 = vmatprep.subr.bf16.mxu0 %v2762
    %2792 = vmatpush1.bf16.msra.mxu0 %v2761
    %2793 = vmatprep.subr.bf16.mxu0 %v2760
    %2794 = vmatpush1.bf16.msra.mxu0 %v2759
    %2795 = vmatprep.subr.bf16.mxu0 %v2758
    %2796 = vmatpush1.bf16.msra.mxu0 %v2757
    %2797 = vmatprep.subr.bf16.mxu0 %v2756
    %2798 = vmatpush1.bf16.msra.mxu0 %v2755
    %2799 = vmatprep.subr.bf16.mxu0 %v2754
    %2800 = vmatpush1.bf16.msra.mxu0 %v2753
    %2801 = vmatprep.subr.bf16.mxu0 0
    %2802 = vmatpush2.bf16.msra.mxu0 0
    %2803 = vmatprep.subr.bf16.mxu0 0
    %2804 = vmatpush2.bf16.msra.mxu0 0
    %2805 = vmatprep.subr.bf16.mxu0 0
    %2806 = vmatpush2.bf16.msra.mxu0 0
    %2807 = vmatprep.subr.bf16.mxu0 0
    %2808 = vmatpush2.bf16.msra.mxu0 0
    %2809 = vmatprep.subr.bf16.mxu0 0
    %2810 = vmatpush2.bf16.msra.mxu0 0
    %2811 = vmatprep.subr.bf16.mxu0 0
    %2812 = vmatpush2.bf16.msra.mxu0 0
    %2813 = vmatprep.subr.bf16.mxu0 0
    %2814 = vmatpush2.bf16.msra.mxu0 0
    %2815 = vmatprep.subr.bf16.mxu0 0
    %2816 = vmatpush2.bf16.msra.mxu0 0
    %2817 = vmatprep.mubr.bf16.mxu0 0
    %2818 = vmatmul.mubr.bf16.gmra.mxu0 %v2540
    %v2819 = vpop.f32.mrf.mxu0
    %v2820 = vadd.f32 %v2697, %v2819
    %v2821 = vpop.f32.mrf.mxu0
    %v2822 = vadd.f32 %v2699, %v2821
    %v2823 = vpop.f32.mrf.mxu0
    %v2824 = vadd.f32 %v2701, %v2823
    %v2825 = vpop.f32.mrf.mxu0
    %v2826 = vadd.f32 %v2703, %v2825
    %2827 = vdwg.mxu0
    %s2828 = scalar_lea.vmem [#allocation17], 256
    %v2829 = vld [vmem:[%s2828] sm:$0xff]
    %v2830 = vld [vmem:[%s2828 + $0x8] sm:$0xff]
    %v2831 = vld [vmem:[%s2828 + $0x10] sm:$0xff]
    %v2832 = vld [vmem:[%s2828 + $0x18] sm:$0xff]
    %v2833 = vld [vmem:[%s2828 + $0x20] sm:$0xff]
    %v2834 = vld [vmem:[%s2828 + $0x28] sm:$0xff]
    %v2835 = vld [vmem:[%s2828 + $0x30] sm:$0xff]
    %v2836 = vld [vmem:[%s2828 + $0x38] sm:$0xff]
    %v2837 = vld [vmem:[%s2828 + $0x40] sm:$0xff]
    %v2838 = vld [vmem:[%s2828 + $0x48] sm:$0xff]
    %v2839 = vld [vmem:[%s2828 + $0x50] sm:$0xff]
    %v2840 = vld [vmem:[%s2828 + $0x58] sm:$0xff]
    %v2841 = vld [vmem:[%s2828 + $0x60] sm:$0xff]
    %v2842 = vld [vmem:[%s2828 + $0x68] sm:$0xff]
    %v2843 = vld [vmem:[%s2828 + $0x70] sm:$0xff]
    %v2844 = vld [vmem:[%s2828 + $0x78] sm:$0xff]
    %v2846 = vrot.slane %v2540, 1
    %v2864 = vunpack.c.l.b16 %v2829
    %v2865 = vunpack.c.h.b16 %v2829
    %v2866 = vunpack.c.l.b16 %v2830
    %v2867 = vunpack.c.h.b16 %v2830
    %v2868 = vunpack.c.l.b16 %v2831
    %v2869 = vunpack.c.h.b16 %v2831
    %v2870 = vunpack.c.l.b16 %v2832
    %v2871 = vunpack.c.h.b16 %v2832
    %v2872 = vunpack.c.l.b16 %v2833
    %v2873 = vunpack.c.h.b16 %v2833
    %v2874 = vunpack.c.l.b16 %v2834
    %v2875 = vunpack.c.h.b16 %v2834
    %v2876 = vunpack.c.l.b16 %v2835
    %v2877 = vunpack.c.h.b16 %v2835
    %v2878 = vunpack.c.l.b16 %v2836
    %v2879 = vunpack.c.h.b16 %v2836
    %v2880 = vunpack.c.l.b16 %v2837
    %v2881 = vunpack.c.h.b16 %v2837
    %v2882 = vunpack.c.l.b16 %v2838
    %v2883 = vunpack.c.h.b16 %v2838
    %v2884 = vunpack.c.l.b16 %v2839
    %v2885 = vunpack.c.h.b16 %v2839
    %v2886 = vunpack.c.l.b16 %v2840
    %v2887 = vunpack.c.h.b16 %v2840
    %v2888 = vunpack.c.l.b16 %v2841
    %v2889 = vunpack.c.h.b16 %v2841
    %v2890 = vunpack.c.l.b16 %v2842
    %v2891 = vunpack.c.h.b16 %v2842
    %v2892 = vunpack.c.l.b16 %v2843
    %v2893 = vunpack.c.h.b16 %v2843
    %v2894 = vunpack.c.l.b16 %v2844
    %v2895 = vunpack.c.h.b16 %v2844
    %v2896 = vpack.c.b16 %v2866, %v2864
    %v2897 = vpack.c.b16 %v2867, %v2865
    %v2898 = vpack.c.b16 %v2870, %v2868
    %v2899 = vpack.c.b16 %v2871, %v2869
    %v2900 = vpack.c.b16 %v2874, %v2872
    %v2901 = vpack.c.b16 %v2875, %v2873
    %v2902 = vpack.c.b16 %v2878, %v2876
    %v2903 = vpack.c.b16 %v2879, %v2877
    %v2904 = vpack.c.b16 %v2882, %v2880
    %v2905 = vpack.c.b16 %v2883, %v2881
    %v2906 = vpack.c.b16 %v2886, %v2884
    %v2907 = vpack.c.b16 %v2887, %v2885
    %v2908 = vpack.c.b16 %v2890, %v2888
    %v2909 = vpack.c.b16 %v2891, %v2889
    %v2910 = vpack.c.b16 %v2894, %v2892
    %v2911 = vpack.c.b16 %v2895, %v2893
    %2928 = vmatprep.subr.bf16.mxu0 %v2911
    %2929 = vmatpush1.bf16.msra.mxu0 %v2910
    %2930 = vmatprep.subr.bf16.mxu0 %v2909
    %2931 = vmatpush1.bf16.msra.mxu0 %v2908
    %2932 = vmatprep.subr.bf16.mxu0 %v2907
    %2933 = vmatpush1.bf16.msra.mxu0 %v2906
    %2934 = vmatprep.subr.bf16.mxu0 %v2905
    %2935 = vmatpush1.bf16.msra.mxu0 %v2904
    %2936 = vmatprep.subr.bf16.mxu0 %v2903
    %2937 = vmatpush1.bf16.msra.mxu0 %v2902
    %2938 = vmatprep.subr.bf16.mxu0 %v2901
    %2939 = vmatpush1.bf16.msra.mxu0 %v2900
    %2940 = vmatprep.subr.bf16.mxu0 %v2899
    %2941 = vmatpush1.bf16.msra.mxu0 %v2898
    %2942 = vmatprep.subr.bf16.mxu0 %v2897
    %2943 = vmatpush1.bf16.msra.mxu0 %v2896
    %2944 = vmatprep.subr.bf16.mxu0 0
    %2945 = vmatpush2.bf16.msra.mxu0 0
    %2946 = vmatprep.subr.bf16.mxu0 0
    %2947 = vmatpush2.bf16.msra.mxu0 0
    %2948 = vmatprep.subr.bf16.mxu0 0
    %2949 = vmatpush2.bf16.msra.mxu0 0
    %2950 = vmatprep.subr.bf16.mxu0 0
    %2951 = vmatpush2.bf16.msra.mxu0 0
    %2952 = vmatprep.subr.bf16.mxu0 0
    %2953 = vmatpush2.bf16.msra.mxu0 0
    %2954 = vmatprep.subr.bf16.mxu0 0
    %2955 = vmatpush2.bf16.msra.mxu0 0
    %2956 = vmatprep.subr.bf16.mxu0 0
    %2957 = vmatpush2.bf16.msra.mxu0 0
    %2958 = vmatprep.subr.bf16.mxu0 0
    %2959 = vmatpush2.bf16.msra.mxu0 0
    %2960 = vmatprep.mubr.bf16.mxu0 0
    %2961 = vmatmul.mubr.bf16.gmra.mxu0 %v2846
    %v2962 = vpop.f32.mrf.mxu0
    %v2963 = vadd.f32 0.0, %v2962
    %v2964 = vpop.f32.mrf.mxu0
    %v2965 = vadd.f32 0.0, %v2964
    %v2966 = vpop.f32.mrf.mxu0
    %v2967 = vadd.f32 0.0, %v2966
    %v2968 = vpop.f32.mrf.mxu0
    %v2969 = vadd.f32 0.0, %v2968
    %2970 = vdwg.mxu0
    %v2971 = vadd.f32 %v2820, %v2963
    %v2972 = vadd.f32 %v2822, %v2965
    %v2973 = vadd.f32 %v2824, %v2967
    %v2974 = vadd.f32 %v2826, %v2969
    %v2975 = vmax.f32 %v2971, %v2972
    %v2976 = vmax.f32 %v2973, %v2974
    %v2977 = vld [vmem:[#allocation19] sm:$0x1]
    %v2979 = vlaneseq
    %v2980 = vshrl.u32 %v2979, 7
    %v2981 = vsub.s32 0, %v2980
    %v2982 = vrot.slane %v2977, %v2981
    %v2984 = vadd.f32 %v2975, %v2982
    %v2985 = vadd.f32 %v2976, %v2982
    %v2986 = vmax.f32 %v2984, 0.0
    %v2987 = vmax.f32 %v2985, 0.0
    %v2988 = vpack.c.bf16 %v2987, %v2986
    %v2989 = vld [vmem:[#allocation20] sm:$0xf]
    %v2990 = vld [vmem:[#allocation20 + $0x4] sm:$0xf]
    %v2993 = vunpack.c.l.b16 %v2989
    %v2994 = vunpack.c.l.b16 %v2990
    %v2995 = vpack.c.b16 %v2994, %v2993
    %vm2996 = vcmask 113664
    %v2998 = vsel %vm2996, %v2995, 0
    %v3001 = vsel %vm1069, %v2988, 0
    %3003 = vmatprep.subr.bf16.mxu0 0
    %3004 = vmatpush1.bf16.msra.mxu0 0
    %3005 = vmatprep.subr.bf16.mxu0 0
    %3006 = vmatpush1.bf16.msra.mxu0 0
    %3007 = vmatprep.subr.bf16.mxu0 0
    %3008 = vmatpush1.bf16.msra.mxu0 0
    %3009 = vmatprep.subr.bf16.mxu0 0
    %3010 = vmatpush1.bf16.msra.mxu0 0
    %3011 = vmatprep.subr.bf16.mxu0 0
    %3012 = vmatpush1.bf16.msra.mxu0 0
    %3013 = vmatprep.subr.bf16.mxu0 0
    %3014 = vmatpush1.bf16.msra.mxu0 0
    %3015 = vmatprep.subr.bf16.mxu0 0
    %3016 = vmatpush1.bf16.msra.mxu0 0
    %3017 = vmatprep.subr.bf16.mxu0 0
    %3018 = vmatpush1.bf16.msra.mxu0 %v3001
    %3019 = vmatprep.subr.bf16.mxu0 0
    %3020 = vmatpush2.bf16.msra.mxu0 0
    %3021 = vmatprep.subr.bf16.mxu0 0
    %3022 = vmatpush2.bf16.msra.mxu0 0
    %3023 = vmatprep.subr.bf16.mxu0 0
    %3024 = vmatpush2.bf16.msra.mxu0 0
    %3025 = vmatprep.subr.bf16.mxu0 0
    %3026 = vmatpush2.bf16.msra.mxu0 0
    %3027 = vmatprep.subr.bf16.mxu0 0
    %3028 = vmatpush2.bf16.msra.mxu0 0
    %3029 = vmatprep.subr.bf16.mxu0 0
    %3030 = vmatpush2.bf16.msra.mxu0 0
    %3031 = vmatprep.subr.bf16.mxu0 0
    %3032 = vmatpush2.bf16.msra.mxu0 0
    %3033 = vmatprep.subr.bf16.mxu0 0
    %3034 = vmatpush2.bf16.msra.mxu0 0
    %3035 = vmatprep.mubr.bf16.mxu0 0
    %3036 = vmatmul.mubr.bf16.gmra.mxu0 %v2998
    %v3037 = vpop.f32.mrf.mxu0
    %v3038 = vadd.f32 0.0, %v3037
    %v3039 = vpop.f32.mrf.mxu0
    %v3040 = vpop.f32.mrf.mxu0
    %v3041 = vadd.f32 0.0, %v3040
    %v3042 = vpop.f32.mrf.mxu0
    %3043 = vdwg.mxu0
    %v3044 = vld [vmem:[#allocation22] sm:$0xf]
    %v3045 = vld [vmem:[#allocation22 + $0x4] sm:$0xf]
    %v3048 = vunpack.c.l.b16 %v3044
    %v3049 = vunpack.c.l.b16 %v3045
    %v3050 = vpack.c.b16 %v3049, %v3048
    %v3052 = vsel %vm2996, %v3050, 0
    %3054 = vmatprep.subr.bf16.mxu0 0
    %3055 = vmatpush1.bf16.msra.mxu0 0
    %3056 = vmatprep.subr.bf16.mxu0 0
    %3057 = vmatpush1.bf16.msra.mxu0 0
    %3058 = vmatprep.subr.bf16.mxu0 0
    %3059 = vmatpush1.bf16.msra.mxu0 0
    %3060 = vmatprep.subr.bf16.mxu0 0
    %3061 = vmatpush1.bf16.msra.mxu0 0
    %3062 = vmatprep.subr.bf16.mxu0 0
    %3063 = vmatpush1.bf16.msra.mxu0 0
    %3064 = vmatprep.subr.bf16.mxu0 0
    %3065 = vmatpush1.bf16.msra.mxu0 0
    %3066 = vmatprep.subr.bf16.mxu0 0
    %3067 = vmatpush1.bf16.msra.mxu0 0
    %3068 = vmatprep.subr.bf16.mxu0 0
    %3069 = vmatpush1.bf16.msra.mxu0 %v3001
    %3070 = vmatprep.subr.bf16.mxu0 0
    %3071 = vmatpush2.bf16.msra.mxu0 0
    %3072 = vmatprep.subr.bf16.mxu0 0
    %3073 = vmatpush2.bf16.msra.mxu0 0
    %3074 = vmatprep.subr.bf16.mxu0 0
    %3075 = vmatpush2.bf16.msra.mxu0 0
    %3076 = vmatprep.subr.bf16.mxu0 0
    %3077 = vmatpush2.bf16.msra.mxu0 0
    %3078 = vmatprep.subr.bf16.mxu0 0
    %3079 = vmatpush2.bf16.msra.mxu0 0
    %3080 = vmatprep.subr.bf16.mxu0 0
    %3081 = vmatpush2.bf16.msra.mxu0 0
    %3082 = vmatprep.subr.bf16.mxu0 0
    %3083 = vmatpush2.bf16.msra.mxu0 0
    %3084 = vmatprep.subr.bf16.mxu0 0
    %3085 = vmatpush2.bf16.msra.mxu0 0
    %3086 = vmatprep.mubr.bf16.mxu0 0
    %3087 = vmatmul.mubr.bf16.gmra.mxu0 %v3052
    %v3088 = vpop.f32.mrf.mxu0
    %v3089 = vadd.f32 0.0, %v3088
    %v3090 = vpop.f32.mrf.mxu0
    %v3091 = vpop.f32.mrf.mxu0
    %v3092 = vadd.f32 0.0, %v3091
    %v3093 = vpop.f32.mrf.mxu0
    %3094 = vdwg.mxu0
    %v3095 = vmax.f32 %v3038, %v3089
    %v3096 = vmax.f32 %v3041, %v3092
    %v3097 = vpack.c.bf16 %v3096, %v3095
    %v3098 = vld [vmem:[#allocation23] sm:$0xff]
    %v3099 = vld [vmem:[#allocation23 + $0x8] sm:$0xff]
    %v3100 = vld [vmem:[#allocation23 + $0x10] sm:$0xff]
    %v3101 = vld [vmem:[#allocation23 + $0x18] sm:$0xff]
    %v3102 = vld [vmem:[#allocation23 + $0x20] sm:$0xff]
    %v3103 = vld [vmem:[#allocation23 + $0x28] sm:$0xff]
    %v3104 = vld [vmem:[#allocation23 + $0x30] sm:$0xff]
    %v3105 = vld [vmem:[#allocation23 + $0x38] sm:$0xff]
    %v3106 = vld [vmem:[#allocation23 + $0x40] sm:$0xff]
    %v3107 = vld [vmem:[#allocation23 + $0x48] sm:$0xff]
    %v3108 = vld [vmem:[#allocation23 + $0x50] sm:$0xff]
    %v3109 = vld [vmem:[#allocation23 + $0x58] sm:$0xff]
    %v3110 = vld [vmem:[#allocation23 + $0x60] sm:$0xff]
    %v3111 = vld [vmem:[#allocation23 + $0x68] sm:$0xff]
    %v3112 = vld [vmem:[#allocation23 + $0x70] sm:$0xff]
    %v3113 = vld [vmem:[#allocation23 + $0x78] sm:$0xff]
    %s3114 = scalar_lea.vmem [#allocation23], 128
    %v3115 = vld [vmem:[%s3114] sm:$0xff]
    %v3116 = vld [vmem:[%s3114 + $0x8] sm:$0xff]
    %v3117 = vld [vmem:[%s3114 + $0x10] sm:$0xff]
    %v3118 = vld [vmem:[%s3114 + $0x18] sm:$0xff]
    %v3119 = vld [vmem:[%s3114 + $0x20] sm:$0xff]
    %v3120 = vld [vmem:[%s3114 + $0x28] sm:$0xff]
    %v3121 = vld [vmem:[%s3114 + $0x30] sm:$0xff]
    %v3122 = vld [vmem:[%s3114 + $0x38] sm:$0xff]
    %v3123 = vld [vmem:[%s3114 + $0x40] sm:$0xff]
    %v3124 = vld [vmem:[%s3114 + $0x48] sm:$0xff]
    %v3125 = vld [vmem:[%s3114 + $0x50] sm:$0xff]
    %v3126 = vld [vmem:[%s3114 + $0x58] sm:$0xff]
    %v3127 = vld [vmem:[%s3114 + $0x60] sm:$0xff]
    %v3128 = vld [vmem:[%s3114 + $0x68] sm:$0xff]
    %v3129 = vld [vmem:[%s3114 + $0x70] sm:$0xff]
    %v3130 = vld [vmem:[%s3114 + $0x78] sm:$0xff]
    %v3132 = vshrl.u32 %v3097, 16
    %v3134 = vshll.u32 %v3097, 16
    %v3136 = vrot.slane %v3134, 1
    %v3137 = vor.u32 %v3132, %v3136
    %v3155 = vunpack.c.l.b16 %v3115
    %v3156 = vunpack.c.h.b16 %v3115
    %v3157 = vunpack.c.l.b16 %v3116
    %v3158 = vunpack.c.h.b16 %v3116
    %v3159 = vunpack.c.l.b16 %v3117
    %v3160 = vunpack.c.h.b16 %v3117
    %v3161 = vunpack.c.l.b16 %v3118
    %v3162 = vunpack.c.h.b16 %v3118
    %v3163 = vunpack.c.l.b16 %v3119
    %v3164 = vunpack.c.h.b16 %v3119
    %v3165 = vunpack.c.l.b16 %v3120
    %v3166 = vunpack.c.h.b16 %v3120
    %v3167 = vunpack.c.l.b16 %v3121
    %v3168 = vunpack.c.h.b16 %v3121
    %v3169 = vunpack.c.l.b16 %v3122
    %v3170 = vunpack.c.h.b16 %v3122
    %v3171 = vunpack.c.l.b16 %v3123
    %v3172 = vunpack.c.h.b16 %v3123
    %v3173 = vunpack.c.l.b16 %v3124
    %v3174 = vunpack.c.h.b16 %v3124
    %v3175 = vunpack.c.l.b16 %v3125
    %v3176 = vunpack.c.h.b16 %v3125
    %v3177 = vunpack.c.l.b16 %v3126
    %v3178 = vunpack.c.h.b16 %v3126
    %v3179 = vunpack.c.l.b16 %v3127
    %v3180 = vunpack.c.h.b16 %v3127
    %v3181 = vunpack.c.l.b16 %v3128
    %v3182 = vunpack.c.h.b16 %v3128
    %v3183 = vunpack.c.l.b16 %v3129
    %v3184 = vunpack.c.h.b16 %v3129
    %v3185 = vunpack.c.l.b16 %v3130
    %v3186 = vunpack.c.h.b16 %v3130
    %v3187 = vpack.c.b16 %v3157, %v3155
    %v3188 = vpack.c.b16 %v3158, %v3156
    %v3189 = vpack.c.b16 %v3161, %v3159
    %v3190 = vpack.c.b16 %v3162, %v3160
    %v3191 = vpack.c.b16 %v3165, %v3163
    %v3192 = vpack.c.b16 %v3166, %v3164
    %v3193 = vpack.c.b16 %v3169, %v3167
    %v3194 = vpack.c.b16 %v3170, %v3168
    %v3195 = vpack.c.b16 %v3173, %v3171
    %v3196 = vpack.c.b16 %v3174, %v3172
    %v3197 = vpack.c.b16 %v3177, %v3175
    %v3198 = vpack.c.b16 %v3178, %v3176
    %v3199 = vpack.c.b16 %v3181, %v3179
    %v3200 = vpack.c.b16 %v3182, %v3180
    %v3201 = vpack.c.b16 %v3185, %v3183
    %v3202 = vpack.c.b16 %v3186, %v3184
    %3219 = vmatprep.subr.bf16.mxu0 %v3202
    %3220 = vmatpush1.bf16.msra.mxu0 %v3201
    %3221 = vmatprep.subr.bf16.mxu0 %v3200
    %3222 = vmatpush1.bf16.msra.mxu0 %v3199
    %3223 = vmatprep.subr.bf16.mxu0 %v3198
    %3224 = vmatpush1.bf16.msra.mxu0 %v3197
    %3225 = vmatprep.subr.bf16.mxu0 %v3196
    %3226 = vmatpush1.bf16.msra.mxu0 %v3195
    %3227 = vmatprep.subr.bf16.mxu0 %v3194
    %3228 = vmatpush1.bf16.msra.mxu0 %v3193
    %3229 = vmatprep.subr.bf16.mxu0 %v3192
    %3230 = vmatpush1.bf16.msra.mxu0 %v3191
    %3231 = vmatprep.subr.bf16.mxu0 %v3190
    %3232 = vmatpush1.bf16.msra.mxu0 %v3189
    %3233 = vmatprep.subr.bf16.mxu0 %v3188
    %3234 = vmatpush1.bf16.msra.mxu0 %v3187
    %3235 = vmatprep.subr.bf16.mxu0 0
    %3236 = vmatpush2.bf16.msra.mxu0 0
    %3237 = vmatprep.subr.bf16.mxu0 0
    %3238 = vmatpush2.bf16.msra.mxu0 0
    %3239 = vmatprep.subr.bf16.mxu0 0
    %3240 = vmatpush2.bf16.msra.mxu0 0
    %3241 = vmatprep.subr.bf16.mxu0 0
    %3242 = vmatpush2.bf16.msra.mxu0 0
    %3243 = vmatprep.subr.bf16.mxu0 0
    %3244 = vmatpush2.bf16.msra.mxu0 0
    %3245 = vmatprep.subr.bf16.mxu0 0
    %3246 = vmatpush2.bf16.msra.mxu0 0
    %3247 = vmatprep.subr.bf16.mxu0 0
    %3248 = vmatpush2.bf16.msra.mxu0 0
    %3249 = vmatprep.subr.bf16.mxu0 0
    %3250 = vmatpush2.bf16.msra.mxu0 0
    %3251 = vmatprep.mubr.bf16.mxu0 0
    %3252 = vmatmul.mubr.bf16.gmra.mxu0 %v3137
    %v3253 = vpop.f32.mrf.mxu0
    %v3254 = vadd.f32 0.0, %v3253
    %v3255 = vpop.f32.mrf.mxu0
    %v3256 = vadd.f32 0.0, %v3255
    %v3257 = vpop.f32.mrf.mxu0
    %v3258 = vadd.f32 0.0, %v3257
    %v3259 = vpop.f32.mrf.mxu0
    %v3260 = vadd.f32 0.0, %v3259
    %3261 = vdwg.mxu0
    %v3278 = vunpack.c.l.b16 %v3098
    %v3279 = vunpack.c.h.b16 %v3098
    %v3280 = vunpack.c.l.b16 %v3099
    %v3281 = vunpack.c.h.b16 %v3099
    %v3282 = vunpack.c.l.b16 %v3100
    %v3283 = vunpack.c.h.b16 %v3100
    %v3284 = vunpack.c.l.b16 %v3101
    %v3285 = vunpack.c.h.b16 %v3101
    %v3286 = vunpack.c.l.b16 %v3102
    %v3287 = vunpack.c.h.b16 %v3102
    %v3288 = vunpack.c.l.b16 %v3103
    %v3289 = vunpack.c.h.b16 %v3103
    %v3290 = vunpack.c.l.b16 %v3104
    %v3291 = vunpack.c.h.b16 %v3104
    %v3292 = vunpack.c.l.b16 %v3105
    %v3293 = vunpack.c.h.b16 %v3105
    %v3294 = vunpack.c.l.b16 %v3106
    %v3295 = vunpack.c.h.b16 %v3106
    %v3296 = vunpack.c.l.b16 %v3107
    %v3297 = vunpack.c.h.b16 %v3107
    %v3298 = vunpack.c.l.b16 %v3108
    %v3299 = vunpack.c.h.b16 %v3108
    %v3300 = vunpack.c.l.b16 %v3109
    %v3301 = vunpack.c.h.b16 %v3109
    %v3302 = vunpack.c.l.b16 %v3110
    %v3303 = vunpack.c.h.b16 %v3110
    %v3304 = vunpack.c.l.b16 %v3111
    %v3305 = vunpack.c.h.b16 %v3111
    %v3306 = vunpack.c.l.b16 %v3112
    %v3307 = vunpack.c.h.b16 %v3112
    %v3308 = vunpack.c.l.b16 %v3113
    %v3309 = vunpack.c.h.b16 %v3113
    %v3310 = vpack.c.b16 %v3280, %v3278
    %v3311 = vpack.c.b16 %v3281, %v3279
    %v3312 = vpack.c.b16 %v3284, %v3282
    %v3313 = vpack.c.b16 %v3285, %v3283
    %v3314 = vpack.c.b16 %v3288, %v3286
    %v3315 = vpack.c.b16 %v3289, %v3287
    %v3316 = vpack.c.b16 %v3292, %v3290
    %v3317 = vpack.c.b16 %v3293, %v3291
    %v3318 = vpack.c.b16 %v3296, %v3294
    %v3319 = vpack.c.b16 %v3297, %v3295
    %v3320 = vpack.c.b16 %v3300, %v3298
    %v3321 = vpack.c.b16 %v3301, %v3299
    %v3322 = vpack.c.b16 %v3304, %v3302
    %v3323 = vpack.c.b16 %v3305, %v3303
    %v3324 = vpack.c.b16 %v3308, %v3306
    %v3325 = vpack.c.b16 %v3309, %v3307
    %3342 = vmatprep.subr.bf16.mxu0 %v3325
    %3343 = vmatpush1.bf16.msra.mxu0 %v3324
    %3344 = vmatprep.subr.bf16.mxu0 %v3323
    %3345 = vmatpush1.bf16.msra.mxu0 %v3322
    %3346 = vmatprep.subr.bf16.mxu0 %v3321
    %3347 = vmatpush1.bf16.msra.mxu0 %v3320
    %3348 = vmatprep.subr.bf16.mxu0 %v3319
    %3349 = vmatpush1.bf16.msra.mxu0 %v3318
    %3350 = vmatprep.subr.bf16.mxu0 %v3317
    %3351 = vmatpush1.bf16.msra.mxu0 %v3316
    %3352 = vmatprep.subr.bf16.mxu0 %v3315
    %3353 = vmatpush1.bf16.msra.mxu0 %v3314
    %3354 = vmatprep.subr.bf16.mxu0 %v3313
    %3355 = vmatpush1.bf16.msra.mxu0 %v3312
    %3356 = vmatprep.subr.bf16.mxu0 %v3311
    %3357 = vmatpush1.bf16.msra.mxu0 %v3310
    %3358 = vmatprep.subr.bf16.mxu0 0
    %3359 = vmatpush2.bf16.msra.mxu0 0
    %3360 = vmatprep.subr.bf16.mxu0 0
    %3361 = vmatpush2.bf16.msra.mxu0 0
    %3362 = vmatprep.subr.bf16.mxu0 0
    %3363 = vmatpush2.bf16.msra.mxu0 0
    %3364 = vmatprep.subr.bf16.mxu0 0
    %3365 = vmatpush2.bf16.msra.mxu0 0
    %3366 = vmatprep.subr.bf16.mxu0 0
    %3367 = vmatpush2.bf16.msra.mxu0 0
    %3368 = vmatprep.subr.bf16.mxu0 0
    %3369 = vmatpush2.bf16.msra.mxu0 0
    %3370 = vmatprep.subr.bf16.mxu0 0
    %3371 = vmatpush2.bf16.msra.mxu0 0
    %3372 = vmatprep.subr.bf16.mxu0 0
    %3373 = vmatpush2.bf16.msra.mxu0 0
    %3374 = vmatprep.mubr.bf16.mxu0 0
    %3375 = vmatmul.mubr.bf16.gmra.mxu0 %v3097
    %v3376 = vpop.f32.mrf.mxu0
    %v3377 = vadd.f32 %v3254, %v3376
    %v3378 = vpop.f32.mrf.mxu0
    %v3379 = vadd.f32 %v3256, %v3378
    %v3380 = vpop.f32.mrf.mxu0
    %v3381 = vadd.f32 %v3258, %v3380
    %v3382 = vpop.f32.mrf.mxu0
    %v3383 = vadd.f32 %v3260, %v3382
    %3384 = vdwg.mxu0
    %s3385 = scalar_lea.vmem [#allocation23], 256
    %v3386 = vld [vmem:[%s3385] sm:$0xff]
    %v3387 = vld [vmem:[%s3385 + $0x8] sm:$0xff]
    %v3388 = vld [vmem:[%s3385 + $0x10] sm:$0xff]
    %v3389 = vld [vmem:[%s3385 + $0x18] sm:$0xff]
    %v3390 = vld [vmem:[%s3385 + $0x20] sm:$0xff]
    %v3391 = vld [vmem:[%s3385 + $0x28] sm:$0xff]
    %v3392 = vld [vmem:[%s3385 + $0x30] sm:$0xff]
    %v3393 = vld [vmem:[%s3385 + $0x38] sm:$0xff]
    %v3394 = vld [vmem:[%s3385 + $0x40] sm:$0xff]
    %v3395 = vld [vmem:[%s3385 + $0x48] sm:$0xff]
    %v3396 = vld [vmem:[%s3385 + $0x50] sm:$0xff]
    %v3397 = vld [vmem:[%s3385 + $0x58] sm:$0xff]
    %v3398 = vld [vmem:[%s3385 + $0x60] sm:$0xff]
    %v3399 = vld [vmem:[%s3385 + $0x68] sm:$0xff]
    %v3400 = vld [vmem:[%s3385 + $0x70] sm:$0xff]
    %v3401 = vld [vmem:[%s3385 + $0x78] sm:$0xff]
    %v3403 = vrot.slane %v3097, 1
    %v3421 = vunpack.c.l.b16 %v3386
    %v3422 = vunpack.c.h.b16 %v3386
    %v3423 = vunpack.c.l.b16 %v3387
    %v3424 = vunpack.c.h.b16 %v3387
    %v3425 = vunpack.c.l.b16 %v3388
    %v3426 = vunpack.c.h.b16 %v3388
    %v3427 = vunpack.c.l.b16 %v3389
    %v3428 = vunpack.c.h.b16 %v3389
    %v3429 = vunpack.c.l.b16 %v3390
    %v3430 = vunpack.c.h.b16 %v3390
    %v3431 = vunpack.c.l.b16 %v3391
    %v3432 = vunpack.c.h.b16 %v3391
    %v3433 = vunpack.c.l.b16 %v3392
    %v3434 = vunpack.c.h.b16 %v3392
    %v3435 = vunpack.c.l.b16 %v3393
    %v3436 = vunpack.c.h.b16 %v3393
    %v3437 = vunpack.c.l.b16 %v3394
    %v3438 = vunpack.c.h.b16 %v3394
    %v3439 = vunpack.c.l.b16 %v3395
    %v3440 = vunpack.c.h.b16 %v3395
    %v3441 = vunpack.c.l.b16 %v3396
    %v3442 = vunpack.c.h.b16 %v3396
    %v3443 = vunpack.c.l.b16 %v3397
    %v3444 = vunpack.c.h.b16 %v3397
    %v3445 = vunpack.c.l.b16 %v3398
    %v3446 = vunpack.c.h.b16 %v3398
    %v3447 = vunpack.c.l.b16 %v3399
    %v3448 = vunpack.c.h.b16 %v3399
    %v3449 = vunpack.c.l.b16 %v3400
    %v3450 = vunpack.c.h.b16 %v3400
    %v3451 = vunpack.c.l.b16 %v3401
    %v3452 = vunpack.c.h.b16 %v3401
    %v3453 = vpack.c.b16 %v3423, %v3421
    %v3454 = vpack.c.b16 %v3424, %v3422
    %v3455 = vpack.c.b16 %v3427, %v3425
    %v3456 = vpack.c.b16 %v3428, %v3426
    %v3457 = vpack.c.b16 %v3431, %v3429
    %v3458 = vpack.c.b16 %v3432, %v3430
    %v3459 = vpack.c.b16 %v3435, %v3433
    %v3460 = vpack.c.b16 %v3436, %v3434
    %v3461 = vpack.c.b16 %v3439, %v3437
    %v3462 = vpack.c.b16 %v3440, %v3438
    %v3463 = vpack.c.b16 %v3443, %v3441
    %v3464 = vpack.c.b16 %v3444, %v3442
    %v3465 = vpack.c.b16 %v3447, %v3445
    %v3466 = vpack.c.b16 %v3448, %v3446
    %v3467 = vpack.c.b16 %v3451, %v3449
    %v3468 = vpack.c.b16 %v3452, %v3450
    %3485 = vmatprep.subr.bf16.mxu0 %v3468
    %3486 = vmatpush1.bf16.msra.mxu0 %v3467
    %3487 = vmatprep.subr.bf16.mxu0 %v3466
    %3488 = vmatpush1.bf16.msra.mxu0 %v3465
    %3489 = vmatprep.subr.bf16.mxu0 %v3464
    %3490 = vmatpush1.bf16.msra.mxu0 %v3463
    %3491 = vmatprep.subr.bf16.mxu0 %v3462
    %3492 = vmatpush1.bf16.msra.mxu0 %v3461
    %3493 = vmatprep.subr.bf16.mxu0 %v3460
    %3494 = vmatpush1.bf16.msra.mxu0 %v3459
    %3495 = vmatprep.subr.bf16.mxu0 %v3458
    %3496 = vmatpush1.bf16.msra.mxu0 %v3457
    %3497 = vmatprep.subr.bf16.mxu0 %v3456
    %3498 = vmatpush1.bf16.msra.mxu0 %v3455
    %3499 = vmatprep.subr.bf16.mxu0 %v3454
    %3500 = vmatpush1.bf16.msra.mxu0 %v3453
    %3501 = vmatprep.subr.bf16.mxu0 0
    %3502 = vmatpush2.bf16.msra.mxu0 0
    %3503 = vmatprep.subr.bf16.mxu0 0
    %3504 = vmatpush2.bf16.msra.mxu0 0
    %3505 = vmatprep.subr.bf16.mxu0 0
    %3506 = vmatpush2.bf16.msra.mxu0 0
    %3507 = vmatprep.subr.bf16.mxu0 0
    %3508 = vmatpush2.bf16.msra.mxu0 0
    %3509 = vmatprep.subr.bf16.mxu0 0
    %3510 = vmatpush2.bf16.msra.mxu0 0
    %3511 = vmatprep.subr.bf16.mxu0 0
    %3512 = vmatpush2.bf16.msra.mxu0 0
    %3513 = vmatprep.subr.bf16.mxu0 0
    %3514 = vmatpush2.bf16.msra.mxu0 0
    %3515 = vmatprep.subr.bf16.mxu0 0
    %3516 = vmatpush2.bf16.msra.mxu0 0
    %3517 = vmatprep.mubr.bf16.mxu0 0
    %3518 = vmatmul.mubr.bf16.gmra.mxu0 %v3403
    %v3519 = vpop.f32.mrf.mxu0
    %v3520 = vadd.f32 0.0, %v3519
    %v3521 = vpop.f32.mrf.mxu0
    %v3522 = vadd.f32 0.0, %v3521
    %v3523 = vpop.f32.mrf.mxu0
    %v3524 = vadd.f32 0.0, %v3523
    %v3525 = vpop.f32.mrf.mxu0
    %v3526 = vadd.f32 0.0, %v3525
    %3527 = vdwg.mxu0
    %v3528 = vadd.f32 %v3377, %v3520
    %v3529 = vadd.f32 %v3379, %v3522
    %v3530 = vadd.f32 %v3381, %v3524
    %v3531 = vadd.f32 %v3383, %v3526
    %v3532 = vmax.f32 %v3528, %v3529
    %v3533 = vmax.f32 %v3530, %v3531
    %v3534 = vld [vmem:[#allocation25] sm:$0x1]
    %v3536 = vlaneseq
    %v3537 = vshrl.u32 %v3536, 7
    %v3538 = vsub.s32 0, %v3537
    %v3539 = vrot.slane %v3534, %v3538
    %v3541 = vadd.f32 %v3532, %v3539
    %v3542 = vadd.f32 %v3533, %v3539
    %v3543 = vmax.f32 %v3541, 0.0
    %v3544 = vmax.f32 %v3542, 0.0
    %v3545 = vpack.c.bf16 %v3544, %v3543
    %v3546 = vld [vmem:[#allocation26] sm:$0x1]
    %v3548 = vsel %vm2996, %v3546, 0
    %v3551 = vsel %vm1069, %v3545, 0
    %3553 = vmatprep.subr.bf16.mxu0 0
    %3554 = vmatpush1.bf16.msra.mxu0 0
    %3555 = vmatprep.subr.bf16.mxu0 0
    %3556 = vmatpush1.bf16.msra.mxu0 0
    %3557 = vmatprep.subr.bf16.mxu0 0
    %3558 = vmatpush1.bf16.msra.mxu0 0
    %3559 = vmatprep.subr.bf16.mxu0 0
    %3560 = vmatpush1.bf16.msra.mxu0 0
    %3561 = vmatprep.subr.bf16.mxu0 0
    %3562 = vmatpush1.bf16.msra.mxu0 0
    %3563 = vmatprep.subr.bf16.mxu0 0
    %3564 = vmatpush1.bf16.msra.mxu0 0
    %3565 = vmatprep.subr.bf16.mxu0 0
    %3566 = vmatpush1.bf16.msra.mxu0 0
    %3567 = vmatprep.subr.bf16.mxu0 0
    %3568 = vmatpush1.bf16.msra.mxu0 %v3551
    %3569 = vmatprep.subr.bf16.mxu0 0
    %3570 = vmatpush2.bf16.msra.mxu0 0
    %3571 = vmatprep.subr.bf16.mxu0 0
    %3572 = vmatpush2.bf16.msra.mxu0 0
    %3573 = vmatprep.subr.bf16.mxu0 0
    %3574 = vmatpush2.bf16.msra.mxu0 0
    %3575 = vmatprep.subr.bf16.mxu0 0
    %3576 = vmatpush2.bf16.msra.mxu0 0
    %3577 = vmatprep.subr.bf16.mxu0 0
    %3578 = vmatpush2.bf16.msra.mxu0 0
    %3579 = vmatprep.subr.bf16.mxu0 0
    %3580 = vmatpush2.bf16.msra.mxu0 0
    %3581 = vmatprep.subr.bf16.mxu0 0
    %3582 = vmatpush2.bf16.msra.mxu0 0
    %3583 = vmatprep.subr.bf16.mxu0 0
    %3584 = vmatpush2.bf16.msra.mxu0 0
    %3585 = vmatprep.mubr.bf16.mxu0 0
    %3586 = vmatmul.mubr.bf16.gmra.mxu0 %v3548
    %v3587 = vpop.f32.mrf.mxu0
    %v3588 = vadd.f32 0.0, %v3587
    %v3589 = vpop.f32.mrf.mxu0
    %v3590 = vpop.f32.mrf.mxu0
    %v3591 = vpop.f32.mrf.mxu0
    %3592 = vdwg.mxu0
    %v3593 = vld [vmem:[#allocation28] sm:$0x1]
    %v3595 = vsel %vm2996, %v3593, 0
    %3597 = vmatprep.subr.bf16.mxu0 0
    %3598 = vmatpush1.bf16.msra.mxu0 0
    %3599 = vmatprep.subr.bf16.mxu0 0
    %3600 = vmatpush1.bf16.msra.mxu0 0
    %3601 = vmatprep.subr.bf16.mxu0 0
    %3602 = vmatpush1.bf16.msra.mxu0 0
    %3603 = vmatprep.subr.bf16.mxu0 0
    %3604 = vmatpush1.bf16.msra.mxu0 0
    %3605 = vmatprep.subr.bf16.mxu0 0
    %3606 = vmatpush1.bf16.msra.mxu0 0
    %3607 = vmatprep.subr.bf16.mxu0 0
    %3608 = vmatpush1.bf16.msra.mxu0 0
    %3609 = vmatprep.subr.bf16.mxu0 0
    %3610 = vmatpush1.bf16.msra.mxu0 0
    %3611 = vmatprep.subr.bf16.mxu0 0
    %3612 = vmatpush1.bf16.msra.mxu0 %v3551
    %3613 = vmatprep.subr.bf16.mxu0 0
    %3614 = vmatpush2.bf16.msra.mxu0 0
    %3615 = vmatprep.subr.bf16.mxu0 0
    %3616 = vmatpush2.bf16.msra.mxu0 0
    %3617 = vmatprep.subr.bf16.mxu0 0
    %3618 = vmatpush2.bf16.msra.mxu0 0
    %3619 = vmatprep.subr.bf16.mxu0 0
    %3620 = vmatpush2.bf16.msra.mxu0 0
    %3621 = vmatprep.subr.bf16.mxu0 0
    %3622 = vmatpush2.bf16.msra.mxu0 0
    %3623 = vmatprep.subr.bf16.mxu0 0
    %3624 = vmatpush2.bf16.msra.mxu0 0
    %3625 = vmatprep.subr.bf16.mxu0 0
    %3626 = vmatpush2.bf16.msra.mxu0 0
    %3627 = vmatprep.subr.bf16.mxu0 0
    %3628 = vmatpush2.bf16.msra.mxu0 0
    %3629 = vmatprep.mubr.bf16.mxu0 0
    %3630 = vmatmul.mubr.bf16.gmra.mxu0 %v3595
    %v3631 = vpop.f32.mrf.mxu0
    %v3632 = vadd.f32 0.0, %v3631
    %v3633 = vpop.f32.mrf.mxu0
    %v3634 = vpop.f32.mrf.mxu0
    %v3635 = vpop.f32.mrf.mxu0
    %3636 = vdwg.mxu0
    %v3637 = vmax.f32 %v3588, %v3632
    %v3638 = vpack.c.bf16 %v3637, %v3637
    %v3639 = vld [vmem:[%s21] sm:$0xff]
    %v3640 = vld [vmem:[%s21 + $0x8] sm:$0xff]
    %v3641 = vld [vmem:[%s21 + $0x10] sm:$0xff]
    %v3642 = vld [vmem:[%s21 + $0x18] sm:$0xff]
    %v3643 = vld [vmem:[%s21 + $0x20] sm:$0xff]
    %v3644 = vld [vmem:[%s21 + $0x28] sm:$0xff]
    %v3645 = vld [vmem:[%s21 + $0x30] sm:$0xff]
    %v3646 = vld [vmem:[%s21 + $0x38] sm:$0xff]
    %v3647 = vld [vmem:[%s21 + $0x40] sm:$0xff]
    %v3648 = vld [vmem:[%s21 + $0x48] sm:$0xff]
    %v3649 = vld [vmem:[%s21 + $0x50] sm:$0xff]
    %v3650 = vld [vmem:[%s21 + $0x58] sm:$0xff]
    %v3651 = vld [vmem:[%s21 + $0x60] sm:$0xff]
    %v3652 = vld [vmem:[%s21 + $0x68] sm:$0xff]
    %v3653 = vld [vmem:[%s21 + $0x70] sm:$0xff]
    %v3654 = vld [vmem:[%s21 + $0x78] sm:$0xff]
    %v3655 = vld [vmem:[%s21 + $0x80] sm:$0xff]
    %v3656 = vld [vmem:[%s21 + $0x88] sm:$0xff]
    %v3657 = vld [vmem:[%s21 + $0x90] sm:$0xff]
    %v3658 = vld [vmem:[%s21 + $0x98] sm:$0xff]
    %v3659 = vld [vmem:[%s21 + $0xa0] sm:$0xff]
    %v3660 = vld [vmem:[%s21 + $0xa8] sm:$0xff]
    %v3661 = vld [vmem:[%s21 + $0xb0] sm:$0xff]
    %v3662 = vld [vmem:[%s21 + $0xb8] sm:$0xff]
    %v3663 = vld [vmem:[%s21 + $0xc0] sm:$0xff]
    %v3664 = vld [vmem:[%s21 + $0xc8] sm:$0xff]
    %v3665 = vld [vmem:[%s21 + $0xd0] sm:$0xff]
    %v3666 = vld [vmem:[%s21 + $0xd8] sm:$0xff]
    %v3667 = vld [vmem:[%s21 + $0xe0] sm:$0xff]
    %v3668 = vld [vmem:[%s21 + $0xe8] sm:$0xff]
    %v3669 = vld [vmem:[%s21 + $0xf0] sm:$0xff]
    %v3670 = vld [vmem:[%s21 + $0xf8] sm:$0xff]
    %v3671 = vld [vmem:[#allocation29] sm:$0xf]
    %v3673 = vlaneseq
    %v3674 = vshrl.u32 %v3673, 7
    %v3675 = vsub.s32 0, %v3674
    %v3676 = vrot.slane %v3671, %v3675
    %v3677 = vlaneseq
    %v3678 = vshrl.u32 %v3677, 7
    %v3679 = vsub.s32 1, %v3678
    %v3680 = vrot.slane %v3671, %v3679
    %v3681 = vlaneseq
    %v3682 = vshrl.u32 %v3681, 7
    %v3683 = vsub.s32 2, %v3682
    %v3684 = vrot.slane %v3671, %v3683
    %v3685 = vlaneseq
    %v3686 = vshrl.u32 %v3685, 7
    %v3687 = vsub.s32 3, %v3686
    %v3688 = vrot.slane %v3671, %v3687
    %v3725 = vunpack.c.l.b16 %v3639
    %v3726 = vunpack.c.h.b16 %v3639
    %v3727 = vunpack.c.l.b16 %v3640
    %v3728 = vunpack.c.h.b16 %v3640
    %v3729 = vunpack.c.l.b16 %v3641
    %v3730 = vunpack.c.h.b16 %v3641
    %v3731 = vunpack.c.l.b16 %v3642
    %v3732 = vunpack.c.h.b16 %v3642
    %v3733 = vunpack.c.l.b16 %v3643
    %v3734 = vunpack.c.h.b16 %v3643
    %v3735 = vunpack.c.l.b16 %v3644
    %v3736 = vunpack.c.h.b16 %v3644
    %v3737 = vunpack.c.l.b16 %v3645
    %v3738 = vunpack.c.h.b16 %v3645
    %v3739 = vunpack.c.l.b16 %v3646
    %v3740 = vunpack.c.h.b16 %v3646
    %v3741 = vunpack.c.l.b16 %v3647
    %v3742 = vunpack.c.h.b16 %v3647
    %v3743 = vunpack.c.l.b16 %v3648
    %v3744 = vunpack.c.h.b16 %v3648
    %v3745 = vunpack.c.l.b16 %v3649
    %v3746 = vunpack.c.h.b16 %v3649
    %v3747 = vunpack.c.l.b16 %v3650
    %v3748 = vunpack.c.h.b16 %v3650
    %v3749 = vunpack.c.l.b16 %v3651
    %v3750 = vunpack.c.h.b16 %v3651
    %v3751 = vunpack.c.l.b16 %v3652
    %v3752 = vunpack.c.h.b16 %v3652
    %v3753 = vunpack.c.l.b16 %v3653
    %v3754 = vunpack.c.h.b16 %v3653
    %v3755 = vunpack.c.l.b16 %v3654
    %v3756 = vunpack.c.h.b16 %v3654
    %v3757 = vunpack.c.l.b16 %v3655
    %v3758 = vunpack.c.h.b16 %v3655
    %v3759 = vunpack.c.l.b16 %v3656
    %v3760 = vunpack.c.h.b16 %v3656
    %v3761 = vunpack.c.l.b16 %v3657
    %v3762 = vunpack.c.h.b16 %v3657
    %v3763 = vunpack.c.l.b16 %v3658
    %v3764 = vunpack.c.h.b16 %v3658
    %v3765 = vunpack.c.l.b16 %v3659
    %v3766 = vunpack.c.h.b16 %v3659
    %v3767 = vunpack.c.l.b16 %v3660
    %v3768 = vunpack.c.h.b16 %v3660
    %v3769 = vunpack.c.l.b16 %v3661
    %v3770 = vunpack.c.h.b16 %v3661
    %v3771 = vunpack.c.l.b16 %v3662
    %v3772 = vunpack.c.h.b16 %v3662
    %v3773 = vunpack.c.l.b16 %v3663
    %v3774 = vunpack.c.h.b16 %v3663
    %v3775 = vunpack.c.l.b16 %v3664
    %v3776 = vunpack.c.h.b16 %v3664
    %v3777 = vunpack.c.l.b16 %v3665
    %v3778 = vunpack.c.h.b16 %v3665
    %v3779 = vunpack.c.l.b16 %v3666
    %v3780 = vunpack.c.h.b16 %v3666
    %v3781 = vunpack.c.l.b16 %v3667
    %v3782 = vunpack.c.h.b16 %v3667
    %v3783 = vunpack.c.l.b16 %v3668
    %v3784 = vunpack.c.h.b16 %v3668
    %v3785 = vunpack.c.l.b16 %v3669
    %v3786 = vunpack.c.h.b16 %v3669
    %v3787 = vunpack.c.l.b16 %v3670
    %v3788 = vunpack.c.h.b16 %v3670
    %v3789 = vpack.c.b16 %v3729, %v3725
    %v3790 = vpack.c.b16 %v3730, %v3726
    %v3791 = vpack.c.b16 %v3731, %v3727
    %v3792 = vpack.c.b16 %v3732, %v3728
    %v3793 = vpack.c.b16 %v3737, %v3733
    %v3794 = vpack.c.b16 %v3738, %v3734
    %v3795 = vpack.c.b16 %v3739, %v3735
    %v3796 = vpack.c.b16 %v3740, %v3736
    %v3797 = vpack.c.b16 %v3745, %v3741
    %v3798 = vpack.c.b16 %v3746, %v3742
    %v3799 = vpack.c.b16 %v3747, %v3743
    %v3800 = vpack.c.b16 %v3748, %v3744
    %v3801 = vpack.c.b16 %v3753, %v3749
    %v3802 = vpack.c.b16 %v3754, %v3750
    %v3803 = vpack.c.b16 %v3755, %v3751
    %v3804 = vpack.c.b16 %v3756, %v3752
    %v3805 = vpack.c.b16 %v3761, %v3757
    %v3806 = vpack.c.b16 %v3762, %v3758
    %v3807 = vpack.c.b16 %v3763, %v3759
    %v3808 = vpack.c.b16 %v3764, %v3760
    %v3809 = vpack.c.b16 %v3769, %v3765
    %v3810 = vpack.c.b16 %v3770, %v3766
    %v3811 = vpack.c.b16 %v3771, %v3767
    %v3812 = vpack.c.b16 %v3772, %v3768
    %v3813 = vpack.c.b16 %v3777, %v3773
    %v3814 = vpack.c.b16 %v3778, %v3774
    %v3815 = vpack.c.b16 %v3779, %v3775
    %v3816 = vpack.c.b16 %v3780, %v3776
    %v3817 = vpack.c.b16 %v3785, %v3781
    %v3818 = vpack.c.b16 %v3786, %v3782
    %v3819 = vpack.c.b16 %v3787, %v3783
    %v3820 = vpack.c.b16 %v3788, %v3784
    %3853 = vmatprep.subr.bf16.mxu0 %v3818
    %3854 = vmatpush1.bf16.msra.mxu0 %v3817
    %3855 = vmatprep.subr.bf16.mxu0 %v3814
    %3856 = vmatpush1.bf16.msra.mxu0 %v3813
    %3857 = vmatprep.subr.bf16.mxu0 %v3810
    %3858 = vmatpush1.bf16.msra.mxu0 %v3809
    %3859 = vmatprep.subr.bf16.mxu0 %v3806
    %3860 = vmatpush1.bf16.msra.mxu0 %v3805
    %3861 = vmatprep.subr.bf16.mxu0 %v3802
    %3862 = vmatpush1.bf16.msra.mxu0 %v3801
    %3863 = vmatprep.subr.bf16.mxu0 %v3798
    %3864 = vmatpush1.bf16.msra.mxu0 %v3797
    %3865 = vmatprep.subr.bf16.mxu0 %v3794
    %3866 = vmatpush1.bf16.msra.mxu0 %v3793
    %3867 = vmatprep.subr.bf16.mxu0 %v3790
    %3868 = vmatpush1.bf16.msra.mxu0 %v3789
    %3869 = vmatprep.subr.bf16.mxu0 0
    %3870 = vmatpush2.bf16.msra.mxu0 0
    %3871 = vmatprep.subr.bf16.mxu0 0
    %3872 = vmatpush2.bf16.msra.mxu0 0
    %3873 = vmatprep.subr.bf16.mxu0 0
    %3874 = vmatpush2.bf16.msra.mxu0 0
    %3875 = vmatprep.subr.bf16.mxu0 0
    %3876 = vmatpush2.bf16.msra.mxu0 0
    %3877 = vmatprep.subr.bf16.mxu0 0
    %3878 = vmatpush2.bf16.msra.mxu0 0
    %3879 = vmatprep.subr.bf16.mxu0 0
    %3880 = vmatpush2.bf16.msra.mxu0 0
    %3881 = vmatprep.subr.bf16.mxu0 0
    %3882 = vmatpush2.bf16.msra.mxu0 0
    %3883 = vmatprep.subr.bf16.mxu0 0
    %3884 = vmatpush2.bf16.msra.mxu0 0
    %3885 = vmatprep.mubr.bf16.mxu0 0
    %3886 = vmatmul.mubr.bf16.gmra.mxu0 %v3638
    %v3887 = vpop.f32.mrf.mxu0
    %v3888 = vadd.f32 %v3676, %v3887
    %v3889 = vpop.f32.mrf.mxu0
    %v3890 = vadd.f32 %v3680, %v3889
    %v3891 = vpop.f32.mrf.mxu0
    %v3892 = vpop.f32.mrf.mxu0
    %3893 = vdwg.mxu0
    %3894 = vmatprep.subr.bf16.mxu0 %v3820
    %3895 = vmatpush1.bf16.msra.mxu0 %v3819
    %3896 = vmatprep.subr.bf16.mxu0 %v3816
    %3897 = vmatpush1.bf16.msra.mxu0 %v3815
    %3898 = vmatprep.subr.bf16.mxu0 %v3812
    %3899 = vmatpush1.bf16.msra.mxu0 %v3811
    %3900 = vmatprep.subr.bf16.mxu0 %v3808
    %3901 = vmatpush1.bf16.msra.mxu0 %v3807
    %3902 = vmatprep.subr.bf16.mxu0 %v3804
    %3903 = vmatpush1.bf16.msra.mxu0 %v3803
    %3904 = vmatprep.subr.bf16.mxu0 %v3800
    %3905 = vmatpush1.bf16.msra.mxu0 %v3799
    %3906 = vmatprep.subr.bf16.mxu0 %v3796
    %3907 = vmatpush1.bf16.msra.mxu0 %v3795
    %3908 = vmatprep.subr.bf16.mxu0 %v3792
    %3909 = vmatpush1.bf16.msra.mxu0 %v3791
    %3910 = vmatprep.subr.bf16.mxu0 0
    %3911 = vmatpush2.bf16.msra.mxu0 0
    %3912 = vmatprep.subr.bf16.mxu0 0
    %3913 = vmatpush2.bf16.msra.mxu0 0
    %3914 = vmatprep.subr.bf16.mxu0 0
    %3915 = vmatpush2.bf16.msra.mxu0 0
    %3916 = vmatprep.subr.bf16.mxu0 0
    %3917 = vmatpush2.bf16.msra.mxu0 0
    %3918 = vmatprep.subr.bf16.mxu0 0
    %3919 = vmatpush2.bf16.msra.mxu0 0
    %3920 = vmatprep.subr.bf16.mxu0 0
    %3921 = vmatpush2.bf16.msra.mxu0 0
    %3922 = vmatprep.subr.bf16.mxu0 0
    %3923 = vmatpush2.bf16.msra.mxu0 0
    %3924 = vmatprep.subr.bf16.mxu0 0
    %3925 = vmatpush2.bf16.msra.mxu0 0
    %3926 = vmatprep.mubr.bf16.mxu0 0
    %3927 = vmatmul.mubr.bf16.gmra.mxu0 %v3638
    %v3928 = vpop.f32.mrf.mxu0
    %v3929 = vadd.f32 %v3684, %v3928
    %v3930 = vpop.f32.mrf.mxu0
    %v3931 = vadd.f32 %v3688, %v3930
    %v3932 = vpop.f32.mrf.mxu0
    %v3933 = vpop.f32.mrf.mxu0
    %3934 = vdwg.mxu0
    %v3935 = vmax.f32 %v3888, 0.0
    %v3936 = vmax.f32 %v3890, 0.0
    %v3937 = vmax.f32 %v3929, 0.0
    %v3938 = vmax.f32 %v3931, 0.0
    %v3939 = vpack.c.bf16 %v3935, %v3935
    %v3940 = vpack.c.bf16 %v3936, %v3936
    %v3941 = vpack.c.bf16 %v3937, %v3937
    %v3942 = vpack.c.bf16 %v3938, %v3938
    %v3943 = vld [vmem:[#allocation31] sm:$0xf]
    %v3944 = vld [vmem:[#allocation31 + $0x4] sm:$0xf]
    %v3945 = vld [vmem:[#allocation31 + $0x8] sm:$0xf]
    %v3946 = vld [vmem:[#allocation31 + $0xc] sm:$0xf]
    %v3947 = vld [vmem:[#allocation31 + $0x10] sm:$0xf]
    %v3948 = vld [vmem:[#allocation31 + $0x14] sm:$0xf]
    %v3949 = vld [vmem:[#allocation31 + $0x18] sm:$0xf]
    %v3950 = vld [vmem:[#allocation31 + $0x1c] sm:$0xf]
    %v3951 = vld [vmem:[#allocation31 + $0x20] sm:$0xf]
    %v3952 = vld [vmem:[#allocation31 + $0x24] sm:$0xf]
    %v3953 = vld [vmem:[#allocation31 + $0x28] sm:$0xf]
    %v3954 = vld [vmem:[#allocation31 + $0x2c] sm:$0xf]
    %v3955 = vld [vmem:[#allocation31 + $0x30] sm:$0xf]
    %v3956 = vld [vmem:[#allocation31 + $0x34] sm:$0xf]
    %v3957 = vld [vmem:[#allocation31 + $0x38] sm:$0xf]
    %v3958 = vld [vmem:[#allocation31 + $0x3c] sm:$0xf]
    %v3959 = vld [vmem:[#allocation31 + $0x40] sm:$0xf]
    %v3960 = vld [vmem:[#allocation31 + $0x44] sm:$0xf]
    %v3961 = vld [vmem:[#allocation31 + $0x48] sm:$0xf]
    %v3962 = vld [vmem:[#allocation31 + $0x4c] sm:$0xf]
    %v3963 = vld [vmem:[#allocation31 + $0x50] sm:$0xf]
    %v3964 = vld [vmem:[#allocation31 + $0x54] sm:$0xf]
    %v3965 = vld [vmem:[#allocation31 + $0x58] sm:$0xf]
    %v3966 = vld [vmem:[#allocation31 + $0x5c] sm:$0xf]
    %v3967 = vld [vmem:[#allocation31 + $0x60] sm:$0xf]
    %v3968 = vld [vmem:[#allocation31 + $0x64] sm:$0xf]
    %v3969 = vld [vmem:[#allocation31 + $0x68] sm:$0xf]
    %v3970 = vld [vmem:[#allocation31 + $0x6c] sm:$0xf]
    %v3971 = vld [vmem:[#allocation31 + $0x70] sm:$0xf]
    %v3972 = vld [vmem:[#allocation31 + $0x74] sm:$0xf]
    %v3973 = vld [vmem:[#allocation31 + $0x78] sm:$0xf]
    %v3974 = vld [vmem:[#allocation31 + $0x7c] sm:$0xf]
    %v3975 = vld [vmem:[#allocation31 + $0x80] sm:$0xf]
    %v3976 = vld [vmem:[#allocation31 + $0x84] sm:$0xf]
    %v3977 = vld [vmem:[#allocation31 + $0x88] sm:$0xf]
    %v3978 = vld [vmem:[#allocation31 + $0x8c] sm:$0xf]
    %v3979 = vld [vmem:[#allocation31 + $0x90] sm:$0xf]
    %v3980 = vld [vmem:[#allocation31 + $0x94] sm:$0xf]
    %v3981 = vld [vmem:[#allocation31 + $0x98] sm:$0xf]
    %v3982 = vld [vmem:[#allocation31 + $0x9c] sm:$0xf]
    %v3983 = vld [vmem:[#allocation31 + $0xa0] sm:$0xf]
    %v3984 = vld [vmem:[#allocation31 + $0xa4] sm:$0xf]
    %v3985 = vld [vmem:[#allocation31 + $0xa8] sm:$0xf]
    %v3986 = vld [vmem:[#allocation31 + $0xac] sm:$0xf]
    %v3987 = vld [vmem:[#allocation31 + $0xb0] sm:$0xf]
    %v3988 = vld [vmem:[#allocation31 + $0xb4] sm:$0xf]
    %v3989 = vld [vmem:[#allocation31 + $0xb8] sm:$0xf]
    %v3990 = vld [vmem:[#allocation31 + $0xbc] sm:$0xf]
    %v3991 = vld [vmem:[#allocation31 + $0xc0] sm:$0xf]
    %v3992 = vld [vmem:[#allocation31 + $0xc4] sm:$0xf]
    %v3993 = vld [vmem:[#allocation31 + $0xc8] sm:$0xf]
    %v3994 = vld [vmem:[#allocation31 + $0xcc] sm:$0xf]
    %v3995 = vld [vmem:[#allocation31 + $0xd0] sm:$0xf]
    %v3996 = vld [vmem:[#allocation31 + $0xd4] sm:$0xf]
    %v3997 = vld [vmem:[#allocation31 + $0xd8] sm:$0xf]
    %v3998 = vld [vmem:[#allocation31 + $0xdc] sm:$0xf]
    %v3999 = vld [vmem:[#allocation31 + $0xe0] sm:$0xf]
    %v4000 = vld [vmem:[#allocation31 + $0xe4] sm:$0xf]
    %v4001 = vld [vmem:[#allocation31 + $0xe8] sm:$0xf]
    %v4002 = vld [vmem:[#allocation31 + $0xec] sm:$0xf]
    %v4003 = vld [vmem:[#allocation31 + $0xf0] sm:$0xf]
    %v4004 = vld [vmem:[#allocation31 + $0xf4] sm:$0xf]
    %v4005 = vld [vmem:[#allocation31 + $0xf8] sm:$0xf]
    %v4006 = vld [vmem:[#allocation31 + $0xfc] sm:$0xf]
    %v4007 = vld [vmem:[#allocation32] sm:$0x1]
    %v4009 = vlaneseq
    %v4010 = vshrl.u32 %v4009, 7
    %v4011 = vsub.s32 0, %v4010
    %v4012 = vrot.slane %v4007, %v4011
    %v4078 = vunpack.c.l.b16 %v3943
    %v4079 = vunpack.c.l.b16 %v3944
    %v4080 = vunpack.c.l.b16 %v3945
    %v4081 = vunpack.c.l.b16 %v3946
    %v4082 = vunpack.c.l.b16 %v3947
    %v4083 = vunpack.c.l.b16 %v3948
    %v4084 = vunpack.c.l.b16 %v3949
    %v4085 = vunpack.c.l.b16 %v3950
    %v4086 = vunpack.c.l.b16 %v3951
    %v4087 = vunpack.c.l.b16 %v3952
    %v4088 = vunpack.c.l.b16 %v3953
    %v4089 = vunpack.c.l.b16 %v3954
    %v4090 = vunpack.c.l.b16 %v3955
    %v4091 = vunpack.c.l.b16 %v3956
    %v4092 = vunpack.c.l.b16 %v3957
    %v4093 = vunpack.c.l.b16 %v3958
    %v4094 = vunpack.c.l.b16 %v3959
    %v4095 = vunpack.c.l.b16 %v3960
    %v4096 = vunpack.c.l.b16 %v3961
    %v4097 = vunpack.c.l.b16 %v3962
    %v4098 = vunpack.c.l.b16 %v3963
    %v4099 = vunpack.c.l.b16 %v3964
    %v4100 = vunpack.c.l.b16 %v3965
    %v4101 = vunpack.c.l.b16 %v3966
    %v4102 = vunpack.c.l.b16 %v3967
    %v4103 = vunpack.c.l.b16 %v3968
    %v4104 = vunpack.c.l.b16 %v3969
    %v4105 = vunpack.c.l.b16 %v3970
    %v4106 = vunpack.c.l.b16 %v3971
    %v4107 = vunpack.c.l.b16 %v3972
    %v4108 = vunpack.c.l.b16 %v3973
    %v4109 = vunpack.c.l.b16 %v3974
    %v4110 = vunpack.c.l.b16 %v3975
    %v4111 = vunpack.c.l.b16 %v3976
    %v4112 = vunpack.c.l.b16 %v3977
    %v4113 = vunpack.c.l.b16 %v3978
    %v4114 = vunpack.c.l.b16 %v3979
    %v4115 = vunpack.c.l.b16 %v3980
    %v4116 = vunpack.c.l.b16 %v3981
    %v4117 = vunpack.c.l.b16 %v3982
    %v4118 = vunpack.c.l.b16 %v3983
    %v4119 = vunpack.c.l.b16 %v3984
    %v4120 = vunpack.c.l.b16 %v3985
    %v4121 = vunpack.c.l.b16 %v3986
    %v4122 = vunpack.c.l.b16 %v3987
    %v4123 = vunpack.c.l.b16 %v3988
    %v4124 = vunpack.c.l.b16 %v3989
    %v4125 = vunpack.c.l.b16 %v3990
    %v4126 = vunpack.c.l.b16 %v3991
    %v4127 = vunpack.c.l.b16 %v3992
    %v4128 = vunpack.c.l.b16 %v3993
    %v4129 = vunpack.c.l.b16 %v3994
    %v4130 = vunpack.c.l.b16 %v3995
    %v4131 = vunpack.c.l.b16 %v3996
    %v4132 = vunpack.c.l.b16 %v3997
    %v4133 = vunpack.c.l.b16 %v3998
    %v4134 = vunpack.c.l.b16 %v3999
    %v4135 = vunpack.c.l.b16 %v4000
    %v4136 = vunpack.c.l.b16 %v4001
    %v4137 = vunpack.c.l.b16 %v4002
    %v4138 = vunpack.c.l.b16 %v4003
    %v4139 = vunpack.c.l.b16 %v4004
    %v4140 = vunpack.c.l.b16 %v4005
    %v4141 = vunpack.c.l.b16 %v4006
    %v4142 = vpack.c.b16 %v4079, %v4078
    %v4143 = vpack.c.b16 %v4081, %v4080
    %v4144 = vpack.c.b16 %v4083, %v4082
    %v4145 = vpack.c.b16 %v4085, %v4084
    %v4146 = vpack.c.b16 %v4087, %v4086
    %v4147 = vpack.c.b16 %v4089, %v4088
    %v4148 = vpack.c.b16 %v4091, %v4090
    %v4149 = vpack.c.b16 %v4093, %v4092
    %v4150 = vpack.c.b16 %v4095, %v4094
    %v4151 = vpack.c.b16 %v4097, %v4096
    %v4152 = vpack.c.b16 %v4099, %v4098
    %v4153 = vpack.c.b16 %v4101, %v4100
    %v4154 = vpack.c.b16 %v4103, %v4102
    %v4155 = vpack.c.b16 %v4105, %v4104
    %v4156 = vpack.c.b16 %v4107, %v4106
    %v4157 = vpack.c.b16 %v4109, %v4108
    %v4158 = vpack.c.b16 %v4111, %v4110
    %v4159 = vpack.c.b16 %v4113, %v4112
    %v4160 = vpack.c.b16 %v4115, %v4114
    %v4161 = vpack.c.b16 %v4117, %v4116
    %v4162 = vpack.c.b16 %v4119, %v4118
    %v4163 = vpack.c.b16 %v4121, %v4120
    %v4164 = vpack.c.b16 %v4123, %v4122
    %v4165 = vpack.c.b16 %v4125, %v4124
    %v4166 = vpack.c.b16 %v4127, %v4126
    %v4167 = vpack.c.b16 %v4129, %v4128
    %v4168 = vpack.c.b16 %v4131, %v4130
    %v4169 = vpack.c.b16 %v4133, %v4132
    %v4170 = vpack.c.b16 %v4135, %v4134
    %v4171 = vpack.c.b16 %v4137, %v4136
    %v4172 = vpack.c.b16 %v4139, %v4138
    %v4173 = vpack.c.b16 %v4141, %v4140
    %4206 = vmatprep.subr.bf16.mxu0 0
    %4207 = vmatpush1.bf16.msra.mxu0 %v4149
    %4208 = vmatprep.subr.bf16.mxu0 0
    %4209 = vmatpush1.bf16.msra.mxu0 %v4148
    %4210 = vmatprep.subr.bf16.mxu0 0
    %4211 = vmatpush1.bf16.msra.mxu0 %v4147
    %4212 = vmatprep.subr.bf16.mxu0 0
    %4213 = vmatpush1.bf16.msra.mxu0 %v4146
    %4214 = vmatprep.subr.bf16.mxu0 0
    %4215 = vmatpush1.bf16.msra.mxu0 %v4145
    %4216 = vmatprep.subr.bf16.mxu0 0
    %4217 = vmatpush1.bf16.msra.mxu0 %v4144
    %4218 = vmatprep.subr.bf16.mxu0 0
    %4219 = vmatpush1.bf16.msra.mxu0 %v4143
    %4220 = vmatprep.subr.bf16.mxu0 0
    %4221 = vmatpush1.bf16.msra.mxu0 %v4142
    %4222 = vmatprep.subr.bf16.mxu0 0
    %4223 = vmatpush2.bf16.msra.mxu0 %v4157
    %4224 = vmatprep.subr.bf16.mxu0 0
    %4225 = vmatpush2.bf16.msra.mxu0 %v4156
    %4226 = vmatprep.subr.bf16.mxu0 0
    %4227 = vmatpush2.bf16.msra.mxu0 %v4155
    %4228 = vmatprep.subr.bf16.mxu0 0
    %4229 = vmatpush2.bf16.msra.mxu0 %v4154
    %4230 = vmatprep.subr.bf16.mxu0 0
    %4231 = vmatpush2.bf16.msra.mxu0 %v4153
    %4232 = vmatprep.subr.bf16.mxu0 0
    %4233 = vmatpush2.bf16.msra.mxu0 %v4152
    %4234 = vmatprep.subr.bf16.mxu0 0
    %4235 = vmatpush2.bf16.msra.mxu0 %v4151
    %4236 = vmatprep.subr.bf16.mxu0 0
    %4237 = vmatpush2.bf16.msra.mxu0 %v4150
    %4238 = vmatprep.mubr.bf16.mxu0 %v3940
    %4239 = vmatmul.mubr.bf16.gmra.mxu0 %v3939
    %v4240 = vpop.f32.mrf.mxu0
    %v4241 = vadd.f32 %v4012, %v4240
    %v4242 = vpop.f32.mrf.mxu0
    %v4243 = vpop.f32.mrf.mxu0
    %v4244 = vpop.f32.mrf.mxu0
    %4245 = vdwg.mxu0
    %4246 = vmatprep.subr.bf16.mxu0 0
    %4247 = vmatpush1.bf16.msra.mxu0 %v4165
    %4248 = vmatprep.subr.bf16.mxu0 0
    %4249 = vmatpush1.bf16.msra.mxu0 %v4164
    %4250 = vmatprep.subr.bf16.mxu0 0
    %4251 = vmatpush1.bf16.msra.mxu0 %v4163
    %4252 = vmatprep.subr.bf16.mxu0 0
    %4253 = vmatpush1.bf16.msra.mxu0 %v4162
    %4254 = vmatprep.subr.bf16.mxu0 0
    %4255 = vmatpush1.bf16.msra.mxu0 %v4161
    %4256 = vmatprep.subr.bf16.mxu0 0
    %4257 = vmatpush1.bf16.msra.mxu0 %v4160
    %4258 = vmatprep.subr.bf16.mxu0 0
    %4259 = vmatpush1.bf16.msra.mxu0 %v4159
    %4260 = vmatprep.subr.bf16.mxu0 0
    %4261 = vmatpush1.bf16.msra.mxu0 %v4158
    %4262 = vmatprep.subr.bf16.mxu0 0
    %4263 = vmatpush2.bf16.msra.mxu0 %v4173
    %4264 = vmatprep.subr.bf16.mxu0 0
    %4265 = vmatpush2.bf16.msra.mxu0 %v4172
    %4266 = vmatprep.subr.bf16.mxu0 0
    %4267 = vmatpush2.bf16.msra.mxu0 %v4171
    %4268 = vmatprep.subr.bf16.mxu0 0
    %4269 = vmatpush2.bf16.msra.mxu0 %v4170
    %4270 = vmatprep.subr.bf16.mxu0 0
    %4271 = vmatpush2.bf16.msra.mxu0 %v4169
    %4272 = vmatprep.subr.bf16.mxu0 0
    %4273 = vmatpush2.bf16.msra.mxu0 %v4168
    %4274 = vmatprep.subr.bf16.mxu0 0
    %4275 = vmatpush2.bf16.msra.mxu0 %v4167
    %4276 = vmatprep.subr.bf16.mxu0 0
    %4277 = vmatpush2.bf16.msra.mxu0 %v4166
    %4278 = vmatprep.mubr.bf16.mxu0 %v3942
    %4279 = vmatmul.mubr.bf16.gmra.mxu0 %v3941
    %v4280 = vpop.f32.mrf.mxu0
    %v4281 = vadd.f32 %v4241, %v4280
    %v4282 = vpop.f32.mrf.mxu0
    %v4283 = vpop.f32.mrf.mxu0
    %v4284 = vpop.f32.mrf.mxu0
    %4285 = vdwg.mxu0
    %v4286 = vmax.f32 %v4281, 0.0
    %v4287 = vld [vmem:[#allocation34] sm:$0x1]
    %v4289 = vlaneseq
    %v4290 = vshrl.u32 %v4289, 7
    %v4291 = vsub.s32 0, %v4290
    %v4292 = vrot.slane %v4287, %v4291
    %v4294 = vmul.f32 %v4286, %v4292
    %vm4295 = vcmask 1041408
    %v4296 = vsel %vm4295, %v4294, 0.0
    %4297 = vadd.xlane.f32.xlu0 %v4296
    %v4298 = vpop.xlane.xlu0 %4297
    %v4299 = vld [vmem:[#allocation2] sm:$0x1]
    %v4301 = vlaneseq
    %v4302 = vshrl.u32 %v4301, 7
    %v4303 = vsub.s32 0, %v4302
    %v4304 = vrot.slane %v4299, %v4303
    %v4306 = vadd.f32 %v4298, %v4304
    %v4307 = vsub.f32 0.0, %v4306
    %v4308 = vmul.f32 %v4307, 1.442695
    %v4309 = vpow.pop %v4308
    %v4310 = vadd.f32 %v4309, 1.0
    %v4311 = vrcp.pop %v4310
    %v4312 = vmul.f32 1.0, %v4311
    %vm4313 = vcmask 1024
    %4314 = vst.msk [vmem:[%s27] sm:$0x3] %vm4313, %v4312
    // Predicated region
    $region194: #{forward.1} parent=1 // pred_check
      _
    $region195: #{forward.1} parent=1 // pred_check_branch
      %4316 = sbr.rel (0) target = $region197
    $region196: #{forward.1} parent=1 // pred_region
      _
    $region197: #{forward.1} parent=1 // pred_fallthru
      _
    // Predicated region
    $region198: #{forward.1} parent=1 // pred_check
      _
    $region199: #{forward.1} parent=1 // pred_check_branch
      %4318 = sbr.rel (0) target = $region201
    $region200: #{forward.1} parent=1 // pred_region
      _
    $region201: #{forward.1} parent=1 // pred_fallthru
      _
    %4319 = vsyncpa [#allocation4], 1
    %4320 = vsyncpa [#allocation6], 1
    %4321 = vsyncpa [#allocation9], 1
    %4322 = vsyncpa [#allocation12], 1
    %4323 = vsyncpa [#allocation15], 1
    %4324 = vsyncpa [#allocation18], 1
    %4325 = vsyncpa [#allocation21], 1
    %4326 = vsyncpa [#allocation24], 1
    %4327 = vsyncpa [#allocation27], 1
    %4328 = vsyncpa [#allocation30], 1
    %4329 = vsyncpa [#allocation33], 1

</llo_original>
